<compile_context>
chip_gen: v7x
topology: tpu7x:2x2x1
jax: 0.10.0
libtpu: 0.0.40
codegen_flags: <defaults>
</compile_context>

<pallas_src>
import functools

import jax
import jax.numpy as jnp
from jax.experimental import pallas as pl
from jax.experimental.pallas import tpu as pltpu


# ----------------------------------------------------------------------------
# Pallas kernel: per-ray-tile triplane-decoder MLP + volume render + face blend
# ----------------------------------------------------------------------------
def _decode_render_kernel(z_ref, d_ref, tri_ref, face_ref,
                          w1_ref, b1_ref, w2_ref, b2_ref,
                          out_ref, *, feature_dim):
    S, Ct, T = tri_ref.shape
    D = w1_ref.shape[0]
    Co_pad = w2_ref.shape[0]
    C = feature_dim

    w1 = w1_ref[...]                                      # (D, Ct) bf16
    w2 = w2_ref[...]                                      # (Co_pad, D) f32
    # hoisted bias broadcasts (JAX does not CSE broadcast_in_dim in the loop)
    b1 = jnp.broadcast_to(b1_ref[...], (D, T))            # (D, T) f32
    b2 = jnp.broadcast_to(b2_ref[...], (Co_pad, T))       # (Co_pad, T) f32

    # lane-dense recurrence state: rays on the 128-lane axis
    trans = jnp.ones((1, T), jnp.float32)                 # transmittance
    depth = jnp.zeros((1, T), jnp.float32)
    pred = jnp.zeros((C, T), jnp.float32)

    for s in range(S):                                    # S is small; unrolled
        x_s = tri_ref[s]                                  # (Ct, T) bf16
        h = jnp.dot(w1, x_s, preferred_element_type=jnp.float32) + b1
        # stable softplus in f32 (v5e has no bf16 VPU/EUP)
        h = jnp.maximum(h, 0.0) + jnp.log1p(jnp.exp(-jnp.abs(h)))
        o = jnp.dot(w2, h, preferred_element_type=jnp.float32) + b2
        feat = o[:C, :]                                   # (C, T)
        sigma = o[C:C + 1, :]                             # (1, T), lane-dense
        # pi-GAN style density activation, noise_std == 0 (eval mode)
        # TODO(synk): some EG3D ray marchers use softplus-based density.
        alpha = 1.0 - jnp.exp(-d_ref[s] * jnp.maximum(sigma, 0.0))
        wgt = alpha * trans                               # (1, T)
        pred = pred + wgt * feat
        depth = depth + wgt * z_ref[s]
        trans = trans * (1.0 - alpha + 1e-10)

    # TODO(synk): exact face-sample insertion semantics of
    # render_volume(..., face_info=...) are not given; composite the face
    # surface weighted by the residual transmittance after all volume samples.
    ftex = face_ref[:C, :]
    falpha = face_ref[C:C + 1, :]
    fdepth = face_ref[C + 1:C + 2, :]
    fw = trans * falpha
    pred = pred + fw * ftex
    depth = depth + fw * fdepth

    # lane-dense output stores (rays on lanes); pad rows zeroed for determinism
    out_ref[:C, :] = pred
    out_ref[C:C + 1, :] = depth
    if Co_pad > C + 1:
        out_ref[C + 1:, :] = jnp.zeros((Co_pad - (C + 1), T), jnp.float32)


def _choose_tile(n, max_tile):
    """Largest ray tile dividing n, preferring >=2 grid steps (v7x megacore +
    double-buffered DMA) and a multiple-of-128 lane-dense width."""
    cap = min(max_tile, n)
    if n >= 256:
        cap = min(cap, n // 2)
    for step in (128, 8):
        t = (cap // step) * step
        while t >= step:
            if n % t == 0:
                return t
            t -= step
    return n


def decode_and_render(tri_feats, z_steps, deltas, face_cat, w1, b1, w2, b2,
                      *, feature_dim, max_tile=512):
    """tri_feats: (S, Ct, n) bf16; z_steps/deltas: (S,) f32;
    face_cat: (C+2, n) f32. Returns fused (Co_pad, n) f32 slab."""
    S, Ct, n = tri_feats.shape
    C = feature_dim
    D = w1.shape[1]
    Co = w2.shape[1]                                  # C + 1
    Co_pad = ((Co + 7) // 8) * 8                      # sublane-aligned output

    tile = _choose_tile(n, max_tile)
    grid = (n // tile,)

    # bf16 only on the dominant triplane stream / first matmul; second matmul
    # and all rendering math stay f32.
    w1t = jnp.transpose(w1).astype(jnp.bfloat16)                  # (D, Ct)
    b1c = b1.reshape(-1, 1).astype(jnp.float32)                   # (D, 1)
    w2t = jnp.zeros((Co_pad, D), jnp.float32).at[:Co].set(jnp.transpose(w2))
    b2c = jnp.zeros((Co_pad, 1), jnp.float32).at[:Co].set(b2.reshape(-1, 1))

    kernel = functools.partial(_decode_render_kernel, feature_dim=C)
    out = pl.pallas_call(
        kernel,
        out_shape=jax.ShapeDtypeStruct((Co_pad, n), jnp.float32),
        grid_spec=pltpu.PrefetchScalarGridSpec(
            num_scalar_prefetch=0,
            grid=grid,
            in_specs=[
                pl.BlockSpec(memory_space=pltpu.MemorySpace.SMEM),   # z (S,)
                pl.BlockSpec(memory_space=pltpu.MemorySpace.SMEM),   # deltas
                pl.BlockSpec((S, Ct, tile), lambda i: (0, 0, i)),    # triplane
                pl.BlockSpec((C + 2, tile), lambda i: (0, i)),       # face slab
                pl.BlockSpec((D, Ct), lambda i: (0, 0)),             # W1^T
                pl.BlockSpec((D, 1), lambda i: (0, 0)),              # b1
                pl.BlockSpec((Co_pad, D), lambda i: (0, 0)),         # W2^T pad
                pl.BlockSpec((Co_pad, 1), lambda i: (0, 0)),         # b2 pad
            ],
            out_specs=pl.BlockSpec((Co_pad, tile), lambda i: (0, i)),
        ),
        compiler_params=pltpu.CompilerParams(
            dimension_semantics=("parallel",),      # shard ray tiles across TCs
            vmem_limit_bytes=32 * 1024 * 1024),     # explicit: v5e default is 16 MiB
    )(z_steps, deltas, tri_feats, face_cat, w1t, b1c, w2t, b2c)
    return out


# ----------------------------------------------------------------------------
# JAX glue: rays, ray transform, triplane synthesis and bilinear sampling
# ----------------------------------------------------------------------------
def sample_triplane_cf(triplane, points):
    """triplane: (B, 3, C, R, R); points: (B, N, 3).
    Returns channels-first (B, C, N) in bf16 (cast fused with the gather)."""
    Rres = triplane.shape[-1]

    def sample_plane(plane, uv):
        # plane: (C, R, R), uv: (N, 2) in ~[-1, 1]; bilinear, border clamp
        u = jnp.clip((uv[:, 0] + 1.0) * 0.5 * (Rres - 1), 0.0, Rres - 1.0)
        v = jnp.clip((uv[:, 1] + 1.0) * 0.5 * (Rres - 1), 0.0, Rres - 1.0)
        u0 = jnp.floor(u).astype(jnp.int32)
        v0 = jnp.floor(v).astype(jnp.int32)
        u1 = jnp.minimum(u0 + 1, Rres - 1)
        v1 = jnp.minimum(v0 + 1, Rres - 1)
        wu = (u - u0.astype(jnp.float32))[None, :]
        wv = (v - v0.astype(jnp.float32))[None, :]

        def gather(yi, xi):
            return plane[:, yi, xi]                    # (C, N), channels-first

        f00 = gather(v0, u0)
        f01 = gather(v0, u1)
        f10 = gather(v1, u0)
        f11 = gather(v1, u1)
        return (f00 * (1 - wu) * (1 - wv) + f01 * wu * (1 - wv)
                + f10 * (1 - wu) * wv + f11 * wu * wv)

    def per_batch(tp_b, pts_b):
        xy = pts_b[:, :2]
        xz = jnp.stack([pts_b[:, 0], pts_b[:, 2]], axis=-1)
        yz = pts_b[:, 1:3]
        out = (sample_plane(tp_b[0], xy)
               + sample_plane(tp_b[1], xz)
               + sample_plane(tp_b[2], yz))
        return out.astype(jnp.bfloat16)

    return jax.vmap(per_batch)(triplane, points)        # (B, C, N) bf16


def eg3d_decoder_forward(params, w, c2w, face_texture, face_alpha, face_depth,
                         cfg):
    B = w.shape[0]
    V = cfg["volume_size"]
    S = cfg["coarse_steps"]
    C = cfg["feature_dim"]
    Rres = cfg["triplane_resolution"]
    P = V * V
    n_rays = B * P

    # --- get_ray_volume_ortho --------------------------------------------
    # TODO(synk): exact ray conventions of get_ray_volume_ortho are not given;
    # using a standard orthographic ray volume over [-1,1]^2.
    xs = jnp.linspace(-1.0, 1.0, V)
    ys = jnp.linspace(-1.0, 1.0, V)
    gy, gx = jnp.meshgrid(ys, xs, indexing="ij")
    origins = jnp.stack([gx, gy, jnp.zeros_like(gx)], axis=-1).reshape(P, 3)
    dirs = jnp.broadcast_to(jnp.array([0.0, 0.0, 1.0], jnp.float32), (P, 3))
    z_steps = jnp.linspace(cfg["ray_start"], cfg["ray_end"], S,
                           dtype=jnp.float32)                       # (S,)
    # TODO(synk): perturb=True / hierarchical sampling would need per-ray z
    # streamed into the kernel instead of SMEM scalars.
    deltas = jnp.concatenate(
        [z_steps[1:] - z_steps[:-1], jnp.array([1e10], jnp.float32)])

    # step-major points: (S, P, 3)
    pts = origins[None, :, :] + dirs[None, :, :] * z_steps[:, None, None]

    # --- transform_ray -----------------------------------------------------
    Rm = c2w[:, :3, :3]
    t = c2w[:, :3, 3]
    tp = jnp.einsum("bij,spj->bspi", Rm, pts) + t[:, None, None, :]  # (B,S,P,3)

    # coordinate normalization (matches the PyTorch forward)
    tp = jnp.stack([tp[..., 0] / 2.5,
                    tp[..., 1] / 2.0,
                    (tp[..., 2] + 2.0) / 2.5], axis=-1)

    # --- renderer: w -> triplane -------------------------------------------
    # TODO(synk): the real EG3DRenderer is a StyleGAN-style generator; replaced
    # with a deterministic linear+tanh synthesis of the same triplane shape.
    tri = jnp.tanh(w @ params["w_tri"]).reshape(B, 3, C, Rres, Rres)

    # triplane sampling (gather-heavy -> JAX glue), channels-first, bf16
    sampled = sample_triplane_cf(tri, tp.reshape(B, S * P, 3))      # (B, C, S*P)

    # single bf16 layout pass to (S, C, n_rays) for the kernel
    tri_feats = (sampled.reshape(B, C, S, P)
                 .transpose(2, 1, 0, 3)
                 .reshape(S, C, n_rays))

    # face maps NCHW -> one (C+2, n_rays) channels-first f32 slab
    ftex = jnp.transpose(face_texture, (1, 0, 2, 3)).reshape(C, n_rays)
    falpha = jnp.transpose(face_alpha, (1, 0, 2, 3)).reshape(1, n_rays)
    fdepth = jnp.transpose(face_depth, (1, 0, 2, 3)).reshape(1, n_rays)
    face_cat = jnp.concatenate([ftex, falpha, fdepth], axis=0).astype(jnp.float32)

    # TODO(synk): hierarchical_sample / sample_pdf (inverse-CDF resampling) and
    # last_back are not implemented; this configuration uses coarse samples only.
    out = decode_and_render(tri_feats, z_steps, deltas, face_cat,
                            params["w1"], params["b1"],
                            params["w2"], params["b2"],
                            feature_dim=C)

    pred = jnp.transpose(out[:C, :]).reshape(B, V, V, C)
    depth = out[C, :].reshape(B, V, V, 1)
    return {"pred": pred, "depth": depth,
            "face_alpha": face_alpha, "face_texture": face_texture}


def init_params(key, cfg):
    C = cfg["feature_dim"]
    D = cfg["triplane_decoder_dim"]
    Rres = cfg["triplane_resolution"]
    k1, k2, k3 = jax.random.split(key, 3)
    w_tri = 0.05 * jax.random.normal(k1, (cfg["w_dim"], 3 * C * Rres * Rres),
                                     jnp.float32)
    w1 = (1.0 / jnp.sqrt(C)) * jax.random.normal(k2, (C, D), jnp.float32)
    b1 = jnp.zeros((1, D), jnp.float32)
    w2 = (1.0 / jnp.sqrt(D)) * jax.random.normal(k3, (D, C + 1), jnp.float32)
    b2 = jnp.zeros((1, C + 1), jnp.float32)
    # TODO(synk): triplane_decoder_layers > 2 would add extra hidden layers.
    return dict(w_tri=w_tri, w1=w1, b1=b1, w2=w2, b2=b2)


if __name__ == "__main__":
    cfg = dict(w_dim=32, feature_dim=32, volume_size=16, coarse_steps=8,
               fine_steps=8, hierarchical_sample=False, fov=12.0,
               ray_start=0.5, ray_end=2.5, perturb=False, last_back=False,
               triplane_resolution=32, triplane_decoder_dim=64,
               triplane_decoder_layers=2)
    B = 2
    V = cfg["volume_size"]
    C = cfg["feature_dim"]

    key = jax.random.PRNGKey(0)
    ks = jax.random.split(key, 6)
    w = jax.random.normal(ks[0], (B, cfg["w_dim"]), jnp.float32)
    t = 0.1 * jax.random.normal(ks[1], (B, 3), jnp.float32)
    c2w = jnp.concatenate(
        [jnp.broadcast_to(jnp.eye(3, dtype=jnp.float32), (B, 3, 3)),
         t[:, :, None]], axis=-1)                                  # (B, 3, 4)
    face_texture = jax.random.normal(ks[2], (B, C, V, V), jnp.float32)
    face_alpha = jax.nn.sigmoid(jax.random.normal(ks[3], (B, 1, V, V),
                                                  jnp.float32))
    face_depth = 1.0 + 0.1 * jax.random.normal(ks[4], (B, 1, V, V),
                                               jnp.float32)
    params = init_params(ks[5], cfg)

    fwd = jax.jit(functools.partial(eg3d_decoder_forward, cfg=cfg))
    out = fwd(params, w, c2w, face_texture, face_alpha, face_depth)
    jax.block_until_ready(out)

    assert out["pred"].shape == (B, V, V, C)
    assert out["depth"].shape == (B, V, V, 1)
    assert bool(jnp.all(jnp.isfinite(out["pred"])))
    assert bool(jnp.all(jnp.isfinite(out["depth"])))
    print("KERNEL_OK")
</pallas_src>

<mosaic_0001>
module attributes {stable_mosaic.version = 11 : i64} {
  func.func @_decode_render_kernel(%arg0: i32, %arg1: memref<8xf32, #tpu.memory_space<smem>>, %arg2: memref<8xf32, #tpu.memory_space<smem>>, %arg3: memref<8x32x256xbf16, #tpu.memory_space<vmem>>, %arg4: memref<34x256xf32, #tpu.memory_space<vmem>>, %arg5: memref<64x32xbf16, #tpu.memory_space<vmem>>, %arg6: memref<64x1xf32, #tpu.memory_space<vmem>>, %arg7: memref<40x64xf32, #tpu.memory_space<vmem>>, %arg8: memref<40x1xf32, #tpu.memory_space<vmem>>, %arg9: memref<40x256xf32, #tpu.memory_space<vmem>>) attributes {dimension_semantics = [#tpu.dimension_semantics<parallel>], iteration_bounds = array<i64: 2>, scalar_prefetch = 0 : i64, scratch_operands = 0 : i64, tpu.core_type = #tpu.core_type<tc>, window_params = [{transform_indices = @transform_0, window_bounds = array<i64: 8>}, {transform_indices = @transform_1, window_bounds = array<i64: 8>}, {transform_indices = @transform_2, window_bounds = array<i64: 8, 32, 256>}, {transform_indices = @transform_3, window_bounds = array<i64: 34, 256>}, {pipeline_mode = #tpu.pipeline_mode<synchronous>, transform_indices = @transform_4, window_bounds = array<i64: 64, 32>}, {pipeline_mode = #tpu.pipeline_mode<synchronous>, transform_indices = @transform_5, window_bounds = array<i64: 64, 1>}, {pipeline_mode = #tpu.pipeline_mode<synchronous>, transform_indices = @transform_6, window_bounds = array<i64: 40, 64>}, {pipeline_mode = #tpu.pipeline_mode<synchronous>, transform_indices = @transform_7, window_bounds = array<i64: 40, 1>}, {transform_indices = @transform_8, window_bounds = array<i64: 40, 256>}]} {
    %c0 = arith.constant 0 : index
    %c0_0 = arith.constant 0 : index
    %0 = vector.load %arg5[%c0, %c0_0] : memref<64x32xbf16, #tpu.memory_space<vmem>>, vector<64x32xbf16>
    %c0_1 = arith.constant 0 : index
    %c0_2 = arith.constant 0 : index
    %1 = vector.load %arg7[%c0_1, %c0_2] : memref<40x64xf32, #tpu.memory_space<vmem>>, vector<40x64xf32>
    %c0_3 = arith.constant 0 : index
    %c0_4 = arith.constant 0 : index
    %2 = vector.load %arg6[%c0_3, %c0_4] : memref<64x1xf32, #tpu.memory_space<vmem>>, vector<64x1xf32>
    %3 = vector.shape_cast %2 : vector<64x1xf32> to vector<64x1xf32>
    %4 = vector.broadcast %3 : vector<64x1xf32> to vector<64x256xf32>
    %c0_5 = arith.constant 0 : index
    %c0_6 = arith.constant 0 : index
    %5 = vector.load %arg8[%c0_5, %c0_6] : memref<40x1xf32, #tpu.memory_space<vmem>>, vector<40x1xf32>
    %6 = vector.shape_cast %5 : vector<40x1xf32> to vector<40x1xf32>
    %7 = vector.broadcast %6 : vector<40x1xf32> to vector<40x256xf32>
    %cst = arith.constant 1.000000e+00 : f32
    %8 = vector.broadcast %cst : f32 to vector<1x256xf32>
    %cst_7 = arith.constant 0.000000e+00 : f32
    %9 = vector.broadcast %cst_7 : f32 to vector<1x256xf32>
    %cst_8 = arith.constant 0.000000e+00 : f32
    %10 = vector.broadcast %cst_8 : f32 to vector<32x256xf32>
    %c0_9 = arith.constant 0 : index
    %c0_10 = arith.constant 0 : index
    %c0_11 = arith.constant 0 : index
    %11 = vector.load %arg3[%c0_9, %c0_10, %c0_11] : memref<8x32x256xbf16, #tpu.memory_space<vmem>>, vector<1x32x256xbf16>
    %12 = vector.shape_cast %11 : vector<1x32x256xbf16> to vector<32x256xbf16>
    %cst_12 = arith.constant dense<0.000000e+00> : vector<64x256xf32>
    %13 = tpu.matmul %0, %12, %cst_12 {dimension_numbers = #tpu.dot_dimension_numbers<[1], [0], [0], [1], [0, 0, 1, 1], [], []>} : vector<64x32xbf16>, vector<32x256xbf16>, vector<64x256xf32> -> vector<64x256xf32>
    %14 = arith.addf %13, %4 : vector<64x256xf32>
    %cst_13 = arith.constant 0.000000e+00 : f32
    %15 = vector.broadcast %cst_13 : f32 to vector<64x256xf32>
    %16 = arith.maximumf %14, %15 : vector<64x256xf32>
    %17 = math.absf %14 : vector<64x256xf32>
    %cst_14 = arith.constant 0.000000e+00 : f32
    %18 = vector.broadcast %cst_14 : f32 to vector<64x256xf32>
    %19 = arith.subf %18, %17 : vector<64x256xf32>
    %20 = math.exp %19 : vector<64x256xf32>
    %21 = math.log1p %20 : vector<64x256xf32>
    %22 = arith.addf %16, %21 : vector<64x256xf32>
    %cst_15 = arith.constant dense<0.000000e+00> : vector<40x256xf32>
    %23 = tpu.matmul %1, %22, %cst_15 {dimension_numbers = #tpu.dot_dimension_numbers<[1], [0], [0], [1], [0, 0, 1, 1], [], []>} : vector<40x64xf32>, vector<64x256xf32>, vector<40x256xf32> -> vector<40x256xf32>
    %24 = arith.addf %23, %7 : vector<40x256xf32>
    %25 = vector.extract_strided_slice %24 {offsets = [0, 0], sizes = [32, 256], strides = [1, 1]} : vector<40x256xf32> to vector<32x256xf32>
    %26 = vector.extract_strided_slice %24 {offsets = [32, 0], sizes = [1, 256], strides = [1, 1]} : vector<40x256xf32> to vector<1x256xf32>
    %c0_16 = arith.constant 0 : index
    %27 = memref.load %arg2[%c0_16] : memref<8xf32, #tpu.memory_space<smem>>
    %cst_17 = arith.constant 0.000000e+00 : f32
    %28 = arith.subf %cst_17, %27 : f32
    %cst_18 = arith.constant 0.000000e+00 : f32
    %29 = vector.broadcast %cst_18 : f32 to vector<1x256xf32>
    %30 = arith.maximumf %26, %29 : vector<1x256xf32>
    %31 = vector.broadcast %28 : f32 to vector<1x256xf32>
    %32 = arith.mulf %31, %30 : vector<1x256xf32>
    %33 = math.exp %32 : vector<1x256xf32>
    %cst_19 = arith.constant 1.000000e+00 : f32
    %34 = vector.broadcast %cst_19 : f32 to vector<1x256xf32>
    %35 = arith.subf %34, %33 : vector<1x256xf32>
    %36 = arith.mulf %35, %8 : vector<1x256xf32>
    %37 = vector.broadcast %36 : vector<1x256xf32> to vector<32x256xf32>
    %38 = arith.mulf %37, %25 : vector<32x256xf32>
    %39 = arith.addf %10, %38 : vector<32x256xf32>
    %c0_20 = arith.constant 0 : index
    %40 = memref.load %arg1[%c0_20] : memref<8xf32, #tpu.memory_space<smem>>
    %41 = vector.broadcast %40 : f32 to vector<1x256xf32>
    %42 = arith.mulf %36, %41 : vector<1x256xf32>
    %43 = arith.addf %9, %42 : vector<1x256xf32>
    %cst_21 = arith.constant 1.000000e+00 : f32
    %44 = vector.broadcast %cst_21 : f32 to vector<1x256xf32>
    %45 = arith.subf %44, %35 : vector<1x256xf32>
    %cst_22 = arith.constant 1.000000e-10 : f32
    %46 = vector.broadcast %cst_22 : f32 to vector<1x256xf32>
    %47 = arith.addf %45, %46 : vector<1x256xf32>
    %48 = arith.mulf %8, %47 : vector<1x256xf32>
    %c1 = arith.constant 1 : index
    %c0_23 = arith.constant 0 : index
    %c0_24 = arith.constant 0 : index
    %49 = vector.load %arg3[%c1, %c0_23, %c0_24] : memref<8x32x256xbf16, #tpu.memory_space<vmem>>, vector<1x32x256xbf16>
    %50 = vector.shape_cast %49 : vector<1x32x256xbf16> to vector<32x256xbf16>
    %cst_25 = arith.constant dense<0.000000e+00> : vector<64x256xf32>
    %51 = tpu.matmul %0, %50, %cst_25 {dimension_numbers = #tpu.dot_dimension_numbers<[1], [0], [0], [1], [0, 0, 1, 1], [], []>} : vector<64x32xbf16>, vector<32x256xbf16>, vector<64x256xf32> -> vector<64x256xf32>
    %52 = arith.addf %51, %4 : vector<64x256xf32>
    %cst_26 = arith.constant 0.000000e+00 : f32
    %53 = vector.broadcast %cst_26 : f32 to vector<64x256xf32>
    %54 = arith.maximumf %52, %53 : vector<64x256xf32>
    %55 = math.absf %52 : vector<64x256xf32>
    %cst_27 = arith.constant 0.000000e+00 : f32
    %56 = vector.broadcast %cst_27 : f32 to vector<64x256xf32>
    %57 = arith.subf %56, %55 : vector<64x256xf32>
    %58 = math.exp %57 : vector<64x256xf32>
    %59 = math.log1p %58 : vector<64x256xf32>
    %60 = arith.addf %54, %59 : vector<64x256xf32>
    %cst_28 = arith.constant dense<0.000000e+00> : vector<40x256xf32>
    %61 = tpu.matmul %1, %60, %cst_28 {dimension_numbers = #tpu.dot_dimension_numbers<[1], [0], [0], [1], [0, 0, 1, 1], [], []>} : vector<40x64xf32>, vector<64x256xf32>, vector<40x256xf32> -> vector<40x256xf32>
    %62 = arith.addf %61, %7 : vector<40x256xf32>
    %63 = vector.extract_strided_slice %62 {offsets = [0, 0], sizes = [32, 256], strides = [1, 1]} : vector<40x256xf32> to vector<32x256xf32>
    %64 = vector.extract_strided_slice %62 {offsets = [32, 0], sizes = [1, 256], strides = [1, 1]} : vector<40x256xf32> to vector<1x256xf32>
    %c1_29 = arith.constant 1 : index
    %65 = memref.load %arg2[%c1_29] : memref<8xf32, #tpu.memory_space<smem>>
    %cst_30 = arith.constant 0.000000e+00 : f32
    %66 = arith.subf %cst_30, %65 : f32
    %cst_31 = arith.constant 0.000000e+00 : f32
    %67 = vector.broadcast %cst_31 : f32 to vector<1x256xf32>
    %68 = arith.maximumf %64, %67 : vector<1x256xf32>
    %69 = vector.broadcast %66 : f32 to vector<1x256xf32>
    %70 = arith.mulf %69, %68 : vector<1x256xf32>
    %71 = math.exp %70 : vector<1x256xf32>
    %cst_32 = arith.constant 1.000000e+00 : f32
    %72 = vector.broadcast %cst_32 : f32 to vector<1x256xf32>
    %73 = arith.subf %72, %71 : vector<1x256xf32>
    %74 = arith.mulf %73, %48 : vector<1x256xf32>
    %75 = vector.broadcast %74 : vector<1x256xf32> to vector<32x256xf32>
    %76 = arith.mulf %75, %63 : vector<32x256xf32>
    %77 = arith.addf %39, %76 : vector<32x256xf32>
    %c1_33 = arith.constant 1 : index
    %78 = memref.load %arg1[%c1_33] : memref<8xf32, #tpu.memory_space<smem>>
    %79 = vector.broadcast %78 : f32 to vector<1x256xf32>
    %80 = arith.mulf %74, %79 : vector<1x256xf32>
    %81 = arith.addf %43, %80 : vector<1x256xf32>
    %cst_34 = arith.constant 1.000000e+00 : f32
    %82 = vector.broadcast %cst_34 : f32 to vector<1x256xf32>
    %83 = arith.subf %82, %73 : vector<1x256xf32>
    %cst_35 = arith.constant 1.000000e-10 : f32
    %84 = vector.broadcast %cst_35 : f32 to vector<1x256xf32>
    %85 = arith.addf %83, %84 : vector<1x256xf32>
    %86 = arith.mulf %48, %85 : vector<1x256xf32>
    %c2 = arith.constant 2 : index
    %c0_36 = arith.constant 0 : index
    %c0_37 = arith.constant 0 : index
    %87 = vector.load %arg3[%c2, %c0_36, %c0_37] : memref<8x32x256xbf16, #tpu.memory_space<vmem>>, vector<1x32x256xbf16>
    %88 = vector.shape_cast %87 : vector<1x32x256xbf16> to vector<32x256xbf16>
    %cst_38 = arith.constant dense<0.000000e+00> : vector<64x256xf32>
    %89 = tpu.matmul %0, %88, %cst_38 {dimension_numbers = #tpu.dot_dimension_numbers<[1], [0], [0], [1], [0, 0, 1, 1], [], []>} : vector<64x32xbf16>, vector<32x256xbf16>, vector<64x256xf32> -> vector<64x256xf32>
    %90 = arith.addf %89, %4 : vector<64x256xf32>
    %cst_39 = arith.constant 0.000000e+00 : f32
    %91 = vector.broadcast %cst_39 : f32 to vector<64x256xf32>
    %92 = arith.maximumf %90, %91 : vector<64x256xf32>
    %93 = math.absf %90 : vector<64x256xf32>
    %cst_40 = arith.constant 0.000000e+00 : f32
    %94 = vector.broadcast %cst_40 : f32 to vector<64x256xf32>
    %95 = arith.subf %94, %93 : vector<64x256xf32>
    %96 = math.exp %95 : vector<64x256xf32>
    %97 = math.log1p %96 : vector<64x256xf32>
    %98 = arith.addf %92, %97 : vector<64x256xf32>
    %cst_41 = arith.constant dense<0.000000e+00> : vector<40x256xf32>
    %99 = tpu.matmul %1, %98, %cst_41 {dimension_numbers = #tpu.dot_dimension_numbers<[1], [0], [0], [1], [0, 0, 1, 1], [], []>} : vector<40x64xf32>, vector<64x256xf32>, vector<40x256xf32> -> vector<40x256xf32>
    %100 = arith.addf %99, %7 : vector<40x256xf32>
    %101 = vector.extract_strided_slice %100 {offsets = [0, 0], sizes = [32, 256], strides = [1, 1]} : vector<40x256xf32> to vector<32x256xf32>
    %102 = vector.extract_strided_slice %100 {offsets = [32, 0], sizes = [1, 256], strides = [1, 1]} : vector<40x256xf32> to vector<1x256xf32>
    %c2_42 = arith.constant 2 : index
    %103 = memref.load %arg2[%c2_42] : memref<8xf32, #tpu.memory_space<smem>>
    %cst_43 = arith.constant 0.000000e+00 : f32
    %104 = arith.subf %cst_43, %103 : f32
    %cst_44 = arith.constant 0.000000e+00 : f32
    %105 = vector.broadcast %cst_44 : f32 to vector<1x256xf32>
    %106 = arith.maximumf %102, %105 : vector<1x256xf32>
    %107 = vector.broadcast %104 : f32 to vector<1x256xf32>
    %108 = arith.mulf %107, %106 : vector<1x256xf32>
    %109 = math.exp %108 : vector<1x256xf32>
    %cst_45 = arith.constant 1.000000e+00 : f32
    %110 = vector.broadcast %cst_45 : f32 to vector<1x256xf32>
    %111 = arith.subf %110, %109 : vector<1x256xf32>
    %112 = arith.mulf %111, %86 : vector<1x256xf32>
    %113 = vector.broadcast %112 : vector<1x256xf32> to vector<32x256xf32>
    %114 = arith.mulf %113, %101 : vector<32x256xf32>
    %115 = arith.addf %77, %114 : vector<32x256xf32>
    %c2_46 = arith.constant 2 : index
    %116 = memref.load %arg1[%c2_46] : memref<8xf32, #tpu.memory_space<smem>>
    %117 = vector.broadcast %116 : f32 to vector<1x256xf32>
    %118 = arith.mulf %112, %117 : vector<1x256xf32>
    %119 = arith.addf %81, %118 : vector<1x256xf32>
    %cst_47 = arith.constant 1.000000e+00 : f32
    %120 = vector.broadcast %cst_47 : f32 to vector<1x256xf32>
    %121 = arith.subf %120, %111 : vector<1x256xf32>
    %cst_48 = arith.constant 1.000000e-10 : f32
    %122 = vector.broadcast %cst_48 : f32 to vector<1x256xf32>
    %123 = arith.addf %121, %122 : vector<1x256xf32>
    %124 = arith.mulf %86, %123 : vector<1x256xf32>
    %c3 = arith.constant 3 : index
    %c0_49 = arith.constant 0 : index
    %c0_50 = arith.constant 0 : index
    %125 = vector.load %arg3[%c3, %c0_49, %c0_50] : memref<8x32x256xbf16, #tpu.memory_space<vmem>>, vector<1x32x256xbf16>
    %126 = vector.shape_cast %125 : vector<1x32x256xbf16> to vector<32x256xbf16>
    %cst_51 = arith.constant dense<0.000000e+00> : vector<64x256xf32>
    %127 = tpu.matmul %0, %126, %cst_51 {dimension_numbers = #tpu.dot_dimension_numbers<[1], [0], [0], [1], [0, 0, 1, 1], [], []>} : vector<64x32xbf16>, vector<32x256xbf16>, vector<64x256xf32> -> vector<64x256xf32>
    %128 = arith.addf %127, %4 : vector<64x256xf32>
    %cst_52 = arith.constant 0.000000e+00 : f32
    %129 = vector.broadcast %cst_52 : f32 to vector<64x256xf32>
    %130 = arith.maximumf %128, %129 : vector<64x256xf32>
    %131 = math.absf %128 : vector<64x256xf32>
    %cst_53 = arith.constant 0.000000e+00 : f32
    %132 = vector.broadcast %cst_53 : f32 to vector<64x256xf32>
    %133 = arith.subf %132, %131 : vector<64x256xf32>
    %134 = math.exp %133 : vector<64x256xf32>
    %135 = math.log1p %134 : vector<64x256xf32>
    %136 = arith.addf %130, %135 : vector<64x256xf32>
    %cst_54 = arith.constant dense<0.000000e+00> : vector<40x256xf32>
    %137 = tpu.matmul %1, %136, %cst_54 {dimension_numbers = #tpu.dot_dimension_numbers<[1], [0], [0], [1], [0, 0, 1, 1], [], []>} : vector<40x64xf32>, vector<64x256xf32>, vector<40x256xf32> -> vector<40x256xf32>
    %138 = arith.addf %137, %7 : vector<40x256xf32>
    %139 = vector.extract_strided_slice %138 {offsets = [0, 0], sizes = [32, 256], strides = [1, 1]} : vector<40x256xf32> to vector<32x256xf32>
    %140 = vector.extract_strided_slice %138 {offsets = [32, 0], sizes = [1, 256], strides = [1, 1]} : vector<40x256xf32> to vector<1x256xf32>
    %c3_55 = arith.constant 3 : index
    %141 = memref.load %arg2[%c3_55] : memref<8xf32, #tpu.memory_space<smem>>
    %cst_56 = arith.constant 0.000000e+00 : f32
    %142 = arith.subf %cst_56, %141 : f32
    %cst_57 = arith.constant 0.000000e+00 : f32
    %143 = vector.broadcast %cst_57 : f32 to vector<1x256xf32>
    %144 = arith.maximumf %140, %143 : vector<1x256xf32>
    %145 = vector.broadcast %142 : f32 to vector<1x256xf32>
    %146 = arith.mulf %145, %144 : vector<1x256xf32>
    %147 = math.exp %146 : vector<1x256xf32>
    %cst_58 = arith.constant 1.000000e+00 : f32
    %148 = vector.broadcast %cst_58 : f32 to vector<1x256xf32>
    %149 = arith.subf %148, %147 : vector<1x256xf32>
    %150 = arith.mulf %149, %124 : vector<1x256xf32>
    %151 = vector.broadcast %150 : vector<1x256xf32> to vector<32x256xf32>
    %152 = arith.mulf %151, %139 : vector<32x256xf32>
    %153 = arith.addf %115, %152 : vector<32x256xf32>
    %c3_59 = arith.constant 3 : index
    %154 = memref.load %arg1[%c3_59] : memref<8xf32, #tpu.memory_space<smem>>
    %155 = vector.broadcast %154 : f32 to vector<1x256xf32>
    %156 = arith.mulf %150, %155 : vector<1x256xf32>
    %157 = arith.addf %119, %156 : vector<1x256xf32>
    %cst_60 = arith.constant 1.000000e+00 : f32
    %158 = vector.broadcast %cst_60 : f32 to vector<1x256xf32>
    %159 = arith.subf %158, %149 : vector<1x256xf32>
    %cst_61 = arith.constant 1.000000e-10 : f32
    %160 = vector.broadcast %cst_61 : f32 to vector<1x256xf32>
    %161 = arith.addf %159, %160 : vector<1x256xf32>
    %162 = arith.mulf %124, %161 : vector<1x256xf32>
    %c4 = arith.constant 4 : index
    %c0_62 = arith.constant 0 : index
    %c0_63 = arith.constant 0 : index
    %163 = vector.load %arg3[%c4, %c0_62, %c0_63] : memref<8x32x256xbf16, #tpu.memory_space<vmem>>, vector<1x32x256xbf16>
    %164 = vector.shape_cast %163 : vector<1x32x256xbf16> to vector<32x256xbf16>
    %cst_64 = arith.constant dense<0.000000e+00> : vector<64x256xf32>
    %165 = tpu.matmul %0, %164, %cst_64 {dimension_numbers = #tpu.dot_dimension_numbers<[1], [0], [0], [1], [0, 0, 1, 1], [], []>} : vector<64x32xbf16>, vector<32x256xbf16>, vector<64x256xf32> -> vector<64x256xf32>
    %166 = arith.addf %165, %4 : vector<64x256xf32>
    %cst_65 = arith.constant 0.000000e+00 : f32
    %167 = vector.broadcast %cst_65 : f32 to vector<64x256xf32>
    %168 = arith.maximumf %166, %167 : vector<64x256xf32>
    %169 = math.absf %166 : vector<64x256xf32>
    %cst_66 = arith.constant 0.000000e+00 : f32
    %170 = vector.broadcast %cst_66 : f32 to vector<64x256xf32>
    %171 = arith.subf %170, %169 : vector<64x256xf32>
    %172 = math.exp %171 : vector<64x256xf32>
    %173 = math.log1p %172 : vector<64x256xf32>
    %174 = arith.addf %168, %173 : vector<64x256xf32>
    %cst_67 = arith.constant dense<0.000000e+00> : vector<40x256xf32>
    %175 = tpu.matmul %1, %174, %cst_67 {dimension_numbers = #tpu.dot_dimension_numbers<[1], [0], [0], [1], [0, 0, 1, 1], [], []>} : vector<40x64xf32>, vector<64x256xf32>, vector<40x256xf32> -> vector<40x256xf32>
    %176 = arith.addf %175, %7 : vector<40x256xf32>
    %177 = vector.extract_strided_slice %176 {offsets = [0, 0], sizes = [32, 256], strides = [1, 1]} : vector<40x256xf32> to vector<32x256xf32>
    %178 = vector.extract_strided_slice %176 {offsets = [32, 0], sizes = [1, 256], strides = [1, 1]} : vector<40x256xf32> to vector<1x256xf32>
    %c4_68 = arith.constant 4 : index
    %179 = memref.load %arg2[%c4_68] : memref<8xf32, #tpu.memory_space<smem>>
    %cst_69 = arith.constant 0.000000e+00 : f32
    %180 = arith.subf %cst_69, %179 : f32
    %cst_70 = arith.constant 0.000000e+00 : f32
    %181 = vector.broadcast %cst_70 : f32 to vector<1x256xf32>
    %182 = arith.maximumf %178, %181 : vector<1x256xf32>
    %183 = vector.broadcast %180 : f32 to vector<1x256xf32>
    %184 = arith.mulf %183, %182 : vector<1x256xf32>
    %185 = math.exp %184 : vector<1x256xf32>
    %cst_71 = arith.constant 1.000000e+00 : f32
    %186 = vector.broadcast %cst_71 : f32 to vector<1x256xf32>
    %187 = arith.subf %186, %185 : vector<1x256xf32>
    %188 = arith.mulf %187, %162 : vector<1x256xf32>
    %189 = vector.broadcast %188 : vector<1x256xf32> to vector<32x256xf32>
    %190 = arith.mulf %189, %177 : vector<32x256xf32>
    %191 = arith.addf %153, %190 : vector<32x256xf32>
    %c4_72 = arith.constant 4 : index
    %192 = memref.load %arg1[%c4_72] : memref<8xf32, #tpu.memory_space<smem>>
    %193 = vector.broadcast %192 : f32 to vector<1x256xf32>
    %194 = arith.mulf %188, %193 : vector<1x256xf32>
    %195 = arith.addf %157, %194 : vector<1x256xf32>
    %cst_73 = arith.constant 1.000000e+00 : f32
    %196 = vector.broadcast %cst_73 : f32 to vector<1x256xf32>
    %197 = arith.subf %196, %187 : vector<1x256xf32>
    %cst_74 = arith.constant 1.000000e-10 : f32
    %198 = vector.broadcast %cst_74 : f32 to vector<1x256xf32>
    %199 = arith.addf %197, %198 : vector<1x256xf32>
    %200 = arith.mulf %162, %199 : vector<1x256xf32>
    %c5 = arith.constant 5 : index
    %c0_75 = arith.constant 0 : index
    %c0_76 = arith.constant 0 : index
    %201 = vector.load %arg3[%c5, %c0_75, %c0_76] : memref<8x32x256xbf16, #tpu.memory_space<vmem>>, vector<1x32x256xbf16>
    %202 = vector.shape_cast %201 : vector<1x32x256xbf16> to vector<32x256xbf16>
    %cst_77 = arith.constant dense<0.000000e+00> : vector<64x256xf32>
    %203 = tpu.matmul %0, %202, %cst_77 {dimension_numbers = #tpu.dot_dimension_numbers<[1], [0], [0], [1], [0, 0, 1, 1], [], []>} : vector<64x32xbf16>, vector<32x256xbf16>, vector<64x256xf32> -> vector<64x256xf32>
    %204 = arith.addf %203, %4 : vector<64x256xf32>
    %cst_78 = arith.constant 0.000000e+00 : f32
    %205 = vector.broadcast %cst_78 : f32 to vector<64x256xf32>
    %206 = arith.maximumf %204, %205 : vector<64x256xf32>
    %207 = math.absf %204 : vector<64x256xf32>
    %cst_79 = arith.constant 0.000000e+00 : f32
    %208 = vector.broadcast %cst_79 : f32 to vector<64x256xf32>
    %209 = arith.subf %208, %207 : vector<64x256xf32>
    %210 = math.exp %209 : vector<64x256xf32>
    %211 = math.log1p %210 : vector<64x256xf32>
    %212 = arith.addf %206, %211 : vector<64x256xf32>
    %cst_80 = arith.constant dense<0.000000e+00> : vector<40x256xf32>
    %213 = tpu.matmul %1, %212, %cst_80 {dimension_numbers = #tpu.dot_dimension_numbers<[1], [0], [0], [1], [0, 0, 1, 1], [], []>} : vector<40x64xf32>, vector<64x256xf32>, vector<40x256xf32> -> vector<40x256xf32>
    %214 = arith.addf %213, %7 : vector<40x256xf32>
    %215 = vector.extract_strided_slice %214 {offsets = [0, 0], sizes = [32, 256], strides = [1, 1]} : vector<40x256xf32> to vector<32x256xf32>
    %216 = vector.extract_strided_slice %214 {offsets = [32, 0], sizes = [1, 256], strides = [1, 1]} : vector<40x256xf32> to vector<1x256xf32>
    %c5_81 = arith.constant 5 : index
    %217 = memref.load %arg2[%c5_81] : memref<8xf32, #tpu.memory_space<smem>>
    %cst_82 = arith.constant 0.000000e+00 : f32
    %218 = arith.subf %cst_82, %217 : f32
    %cst_83 = arith.constant 0.000000e+00 : f32
    %219 = vector.broadcast %cst_83 : f32 to vector<1x256xf32>
    %220 = arith.maximumf %216, %219 : vector<1x256xf32>
    %221 = vector.broadcast %218 : f32 to vector<1x256xf32>
    %222 = arith.mulf %221, %220 : vector<1x256xf32>
    %223 = math.exp %222 : vector<1x256xf32>
    %cst_84 = arith.constant 1.000000e+00 : f32
    %224 = vector.broadcast %cst_84 : f32 to vector<1x256xf32>
    %225 = arith.subf %224, %223 : vector<1x256xf32>
    %226 = arith.mulf %225, %200 : vector<1x256xf32>
    %227 = vector.broadcast %226 : vector<1x256xf32> to vector<32x256xf32>
    %228 = arith.mulf %227, %215 : vector<32x256xf32>
    %229 = arith.addf %191, %228 : vector<32x256xf32>
    %c5_85 = arith.constant 5 : index
    %230 = memref.load %arg1[%c5_85] : memref<8xf32, #tpu.memory_space<smem>>
    %231 = vector.broadcast %230 : f32 to vector<1x256xf32>
    %232 = arith.mulf %226, %231 : vector<1x256xf32>
    %233 = arith.addf %195, %232 : vector<1x256xf32>
    %cst_86 = arith.constant 1.000000e+00 : f32
    %234 = vector.broadcast %cst_86 : f32 to vector<1x256xf32>
    %235 = arith.subf %234, %225 : vector<1x256xf32>
    %cst_87 = arith.constant 1.000000e-10 : f32
    %236 = vector.broadcast %cst_87 : f32 to vector<1x256xf32>
    %237 = arith.addf %235, %236 : vector<1x256xf32>
    %238 = arith.mulf %200, %237 : vector<1x256xf32>
    %c6 = arith.constant 6 : index
    %c0_88 = arith.constant 0 : index
    %c0_89 = arith.constant 0 : index
    %239 = vector.load %arg3[%c6, %c0_88, %c0_89] : memref<8x32x256xbf16, #tpu.memory_space<vmem>>, vector<1x32x256xbf16>
    %240 = vector.shape_cast %239 : vector<1x32x256xbf16> to vector<32x256xbf16>
    %cst_90 = arith.constant dense<0.000000e+00> : vector<64x256xf32>
    %241 = tpu.matmul %0, %240, %cst_90 {dimension_numbers = #tpu.dot_dimension_numbers<[1], [0], [0], [1], [0, 0, 1, 1], [], []>} : vector<64x32xbf16>, vector<32x256xbf16>, vector<64x256xf32> -> vector<64x256xf32>
    %242 = arith.addf %241, %4 : vector<64x256xf32>
    %cst_91 = arith.constant 0.000000e+00 : f32
    %243 = vector.broadcast %cst_91 : f32 to vector<64x256xf32>
    %244 = arith.maximumf %242, %243 : vector<64x256xf32>
    %245 = math.absf %242 : vector<64x256xf32>
    %cst_92 = arith.constant 0.000000e+00 : f32
    %246 = vector.broadcast %cst_92 : f32 to vector<64x256xf32>
    %247 = arith.subf %246, %245 : vector<64x256xf32>
    %248 = math.exp %247 : vector<64x256xf32>
    %249 = math.log1p %248 : vector<64x256xf32>
    %250 = arith.addf %244, %249 : vector<64x256xf32>
    %cst_93 = arith.constant dense<0.000000e+00> : vector<40x256xf32>
    %251 = tpu.matmul %1, %250, %cst_93 {dimension_numbers = #tpu.dot_dimension_numbers<[1], [0], [0], [1], [0, 0, 1, 1], [], []>} : vector<40x64xf32>, vector<64x256xf32>, vector<40x256xf32> -> vector<40x256xf32>
    %252 = arith.addf %251, %7 : vector<40x256xf32>
    %253 = vector.extract_strided_slice %252 {offsets = [0, 0], sizes = [32, 256], strides = [1, 1]} : vector<40x256xf32> to vector<32x256xf32>
    %254 = vector.extract_strided_slice %252 {offsets = [32, 0], sizes = [1, 256], strides = [1, 1]} : vector<40x256xf32> to vector<1x256xf32>
    %c6_94 = arith.constant 6 : index
    %255 = memref.load %arg2[%c6_94] : memref<8xf32, #tpu.memory_space<smem>>
    %cst_95 = arith.constant 0.000000e+00 : f32
    %256 = arith.subf %cst_95, %255 : f32
    %cst_96 = arith.constant 0.000000e+00 : f32
    %257 = vector.broadcast %cst_96 : f32 to vector<1x256xf32>
    %258 = arith.maximumf %254, %257 : vector<1x256xf32>
    %259 = vector.broadcast %256 : f32 to vector<1x256xf32>
    %260 = arith.mulf %259, %258 : vector<1x256xf32>
    %261 = math.exp %260 : vector<1x256xf32>
    %cst_97 = arith.constant 1.000000e+00 : f32
    %262 = vector.broadcast %cst_97 : f32 to vector<1x256xf32>
    %263 = arith.subf %262, %261 : vector<1x256xf32>
    %264 = arith.mulf %263, %238 : vector<1x256xf32>
    %265 = vector.broadcast %264 : vector<1x256xf32> to vector<32x256xf32>
    %266 = arith.mulf %265, %253 : vector<32x256xf32>
    %267 = arith.addf %229, %266 : vector<32x256xf32>
    %c6_98 = arith.constant 6 : index
    %268 = memref.load %arg1[%c6_98] : memref<8xf32, #tpu.memory_space<smem>>
    %269 = vector.broadcast %268 : f32 to vector<1x256xf32>
    %270 = arith.mulf %264, %269 : vector<1x256xf32>
    %271 = arith.addf %233, %270 : vector<1x256xf32>
    %cst_99 = arith.constant 1.000000e+00 : f32
    %272 = vector.broadcast %cst_99 : f32 to vector<1x256xf32>
    %273 = arith.subf %272, %263 : vector<1x256xf32>
    %cst_100 = arith.constant 1.000000e-10 : f32
    %274 = vector.broadcast %cst_100 : f32 to vector<1x256xf32>
    %275 = arith.addf %273, %274 : vector<1x256xf32>
    %276 = arith.mulf %238, %275 : vector<1x256xf32>
    %c7 = arith.constant 7 : index
    %c0_101 = arith.constant 0 : index
    %c0_102 = arith.constant 0 : index
    %277 = vector.load %arg3[%c7, %c0_101, %c0_102] : memref<8x32x256xbf16, #tpu.memory_space<vmem>>, vector<1x32x256xbf16>
    %278 = vector.shape_cast %277 : vector<1x32x256xbf16> to vector<32x256xbf16>
    %cst_103 = arith.constant dense<0.000000e+00> : vector<64x256xf32>
    %279 = tpu.matmul %0, %278, %cst_103 {dimension_numbers = #tpu.dot_dimension_numbers<[1], [0], [0], [1], [0, 0, 1, 1], [], []>} : vector<64x32xbf16>, vector<32x256xbf16>, vector<64x256xf32> -> vector<64x256xf32>
    %280 = arith.addf %279, %4 : vector<64x256xf32>
    %cst_104 = arith.constant 0.000000e+00 : f32
    %281 = vector.broadcast %cst_104 : f32 to vector<64x256xf32>
    %282 = arith.maximumf %280, %281 : vector<64x256xf32>
    %283 = math.absf %280 : vector<64x256xf32>
    %cst_105 = arith.constant 0.000000e+00 : f32
    %284 = vector.broadcast %cst_105 : f32 to vector<64x256xf32>
    %285 = arith.subf %284, %283 : vector<64x256xf32>
    %286 = math.exp %285 : vector<64x256xf32>
    %287 = math.log1p %286 : vector<64x256xf32>
    %288 = arith.addf %282, %287 : vector<64x256xf32>
    %cst_106 = arith.constant dense<0.000000e+00> : vector<40x256xf32>
    %289 = tpu.matmul %1, %288, %cst_106 {dimension_numbers = #tpu.dot_dimension_numbers<[1], [0], [0], [1], [0, 0, 1, 1], [], []>} : vector<40x64xf32>, vector<64x256xf32>, vector<40x256xf32> -> vector<40x256xf32>
    %290 = arith.addf %289, %7 : vector<40x256xf32>
    %291 = vector.extract_strided_slice %290 {offsets = [0, 0], sizes = [32, 256], strides = [1, 1]} : vector<40x256xf32> to vector<32x256xf32>
    %292 = vector.extract_strided_slice %290 {offsets = [32, 0], sizes = [1, 256], strides = [1, 1]} : vector<40x256xf32> to vector<1x256xf32>
    %c7_107 = arith.constant 7 : index
    %293 = memref.load %arg2[%c7_107] : memref<8xf32, #tpu.memory_space<smem>>
    %cst_108 = arith.constant 0.000000e+00 : f32
    %294 = arith.subf %cst_108, %293 : f32
    %cst_109 = arith.constant 0.000000e+00 : f32
    %295 = vector.broadcast %cst_109 : f32 to vector<1x256xf32>
    %296 = arith.maximumf %292, %295 : vector<1x256xf32>
    %297 = vector.broadcast %294 : f32 to vector<1x256xf32>
    %298 = arith.mulf %297, %296 : vector<1x256xf32>
    %299 = math.exp %298 : vector<1x256xf32>
    %cst_110 = arith.constant 1.000000e+00 : f32
    %300 = vector.broadcast %cst_110 : f32 to vector<1x256xf32>
    %301 = arith.subf %300, %299 : vector<1x256xf32>
    %302 = arith.mulf %301, %276 : vector<1x256xf32>
    %303 = vector.broadcast %302 : vector<1x256xf32> to vector<32x256xf32>
    %304 = arith.mulf %303, %291 : vector<32x256xf32>
    %305 = arith.addf %267, %304 : vector<32x256xf32>
    %c7_111 = arith.constant 7 : index
    %306 = memref.load %arg1[%c7_111] : memref<8xf32, #tpu.memory_space<smem>>
    %307 = vector.broadcast %306 : f32 to vector<1x256xf32>
    %308 = arith.mulf %302, %307 : vector<1x256xf32>
    %309 = arith.addf %271, %308 : vector<1x256xf32>
    %cst_112 = arith.constant 1.000000e+00 : f32
    %310 = vector.broadcast %cst_112 : f32 to vector<1x256xf32>
    %311 = arith.subf %310, %301 : vector<1x256xf32>
    %cst_113 = arith.constant 1.000000e-10 : f32
    %312 = vector.broadcast %cst_113 : f32 to vector<1x256xf32>
    %313 = arith.addf %311, %312 : vector<1x256xf32>
    %314 = arith.mulf %276, %313 : vector<1x256xf32>
    %c0_114 = arith.constant 0 : index
    %c0_115 = arith.constant 0 : index
    %315 = vector.load %arg4[%c0_114, %c0_115] : memref<34x256xf32, #tpu.memory_space<vmem>>, vector<32x256xf32>
    %c32 = arith.constant 32 : index
    %c0_116 = arith.constant 0 : index
    %316 = vector.load %arg4[%c32, %c0_116] : memref<34x256xf32, #tpu.memory_space<vmem>>, vector<1x256xf32>
    %c33 = arith.constant 33 : index
    %c0_117 = arith.constant 0 : index
    %317 = vector.load %arg4[%c33, %c0_117] : memref<34x256xf32, #tpu.memory_space<vmem>>, vector<1x256xf32>
    %318 = arith.mulf %314, %316 : vector<1x256xf32>
    %319 = vector.broadcast %318 : vector<1x256xf32> to vector<32x256xf32>
    %320 = arith.mulf %319, %315 : vector<32x256xf32>
    %321 = arith.addf %305, %320 : vector<32x256xf32>
    %322 = arith.mulf %318, %317 : vector<1x256xf32>
    %323 = arith.addf %309, %322 : vector<1x256xf32>
    %c0_118 = arith.constant 0 : index
    %c0_119 = arith.constant 0 : index
    %324 = vector.load %arg9[%c0_118, %c0_119] : memref<40x256xf32, #tpu.memory_space<vmem>>, vector<32x256xf32>
    tpu.vector_store %arg9[%c0_118, %c0_119], %321 {strides = array<i32>} : memref<40x256xf32, #tpu.memory_space<vmem>>, vector<32x256xf32>,
    %c32_120 = arith.constant 32 : index
    %c0_121 = arith.constant 0 : index
    %325 = vector.load %arg9[%c32_120, %c0_121] : memref<40x256xf32, #tpu.memory_space<vmem>>, vector<1x256xf32>
    tpu.vector_store %arg9[%c32_120, %c0_121], %323 {strides = array<i32>} : memref<40x256xf32, #tpu.memory_space<vmem>>, vector<1x256xf32>,
    %cst_122 = arith.constant 0.000000e+00 : f32
    %326 = vector.broadcast %cst_122 : f32 to vector<7x256xf32>
    %c33_123 = arith.constant 33 : index
    %c0_124 = arith.constant 0 : index
    %327 = vector.load %arg9[%c33_123, %c0_124] : memref<40x256xf32, #tpu.memory_space<vmem>>, vector<7x256xf32>
    tpu.vector_store %arg9[%c33_123, %c0_124], %326 {strides = array<i32>} : memref<40x256xf32, #tpu.memory_space<vmem>>, vector<7x256xf32>,
    return
  }
  func.func @transform_0(%arg0: i32) -> i32 {
    %c0_i32 = arith.constant 0 : i32
    %c0_i32_0 = arith.constant 0 : i32
    return %c0_i32 : i32
  }
  func.func @transform_1(%arg0: i32) -> i32 {
    %c0_i32 = arith.constant 0 : i32
    %c0_i32_0 = arith.constant 0 : i32
    return %c0_i32 : i32
  }
  func.func @transform_2(%arg0: i32) -> (i32, i32, i32) {
    %c0_i32 = arith.constant 0 : i32
    %c0_i32_0 = arith.constant 0 : i32
    %c0_i32_1 = arith.constant 0 : i32
    return %c0_i32, %c0_i32_0, %arg0 : i32, i32, i32
  }
  func.func @transform_3(%arg0: i32) -> (i32, i32) {
    %c0_i32 = arith.constant 0 : i32
    %c0_i32_0 = arith.constant 0 : i32
    return %c0_i32, %arg0 : i32, i32
  }
  func.func @transform_4(%arg0: i32) -> (i32, i32) {
    %c0_i32 = arith.constant 0 : i32
    %c0_i32_0 = arith.constant 0 : i32
    %c0_i32_1 = arith.constant 0 : i32
    return %c0_i32, %c0_i32_0 : i32, i32
  }
  func.func @transform_5(%arg0: i32) -> (i32, i32) {
    %c0_i32 = arith.constant 0 : i32
    %c0_i32_0 = arith.constant 0 : i32
    %c0_i32_1 = arith.constant 0 : i32
    return %c0_i32, %c0_i32_0 : i32, i32
  }
  func.func @transform_6(%arg0: i32) -> (i32, i32) {
    %c0_i32 = arith.constant 0 : i32
    %c0_i32_0 = arith.constant 0 : i32
    %c0_i32_1 = arith.constant 0 : i32
    return %c0_i32, %c0_i32_0 : i32, i32
  }
  func.func @transform_7(%arg0: i32) -> (i32, i32) {
    %c0_i32 = arith.constant 0 : i32
    %c0_i32_0 = arith.constant 0 : i32
    %c0_i32_1 = arith.constant 0 : i32
    return %c0_i32, %c0_i32_0 : i32, i32
  }
  func.func @transform_8(%arg0: i32) -> (i32, i32) {
    %c0_i32 = arith.constant 0 : i32
    %c0_i32_0 = arith.constant 0 : i32
    return %c0_i32, %arg0 : i32, i32
  }
}

</mosaic_0001>

<llo_original>
// kernel: squeeze.27
$region0: #{squeeze.27}
  %s0 = inlined_call_operand.vmem [shape: f32[512], index: 0, kind: input, shape index: {}]
  %s1 = inlined_call_operand.hbm [shape: f32[2,16,16,1], index: 1, kind: output, shape index: {}]
  $region1: #{squeeze.27} parent=0
    #allocation0 [shape = 'u8[16384]{0}', space=vmem, size = 0x4000, scoped, tag = 'operand span for operand 1']
    #allocation1 [shape = 's32[1]{0}', space=sflag, size = 0x4, scoped, tag = 'scoped memory for squeeze.27']
    #allocation2 [shape = 'u8[4096]{0}', space=vmem, size = 0x1000, scoped, tag = 'scoped mem for input reshape']
    %2 = vsyncpa [#allocation1], 0
    %s4 = sshllo.u32 0, 4
    %v5 = vld [vmem:[%s0] sm:%s4]
    %6 = vst [vmem:[#allocation2] sm:%s4] %v5
    %v7 = vld [vmem:[#allocation2] sm:$0xf]
    %vm8 = vcmask 130048
    %9 = vst.msk [vmem:[#allocation0] ss:$8 sm:$0xf] %vm8, %v7
    %v10 = vld [vmem:[#allocation2] sm:$0xf]
    %11 = vrot.lane.b32.xlu0 %v10, 112
    %v12 = vpop.permute.xlu0 %11
    %vm13 = vcmask 130048
    %s14 = scalar_lea.vmem [#allocation0], 1
    %15 = vst.msk [vmem:[%s14] ss:$8 sm:$0xf] %vm13, %v12
    %v16 = vld [vmem:[#allocation2] sm:$0xf]
    %17 = vrot.lane.b32.xlu0 %v16, 96
    %v18 = vpop.permute.xlu0 %17
    %vm19 = vcmask 130048
    %s20 = scalar_lea.vmem [#allocation0], 2
    %21 = vst.msk [vmem:[%s20] ss:$8 sm:$0xf] %vm19, %v18
    %v22 = vld [vmem:[#allocation2] sm:$0xf]
    %23 = vrot.lane.b32.xlu0 %v22, 80
    %v24 = vpop.permute.xlu0 %23
    %vm25 = vcmask 130048
    %s26 = scalar_lea.vmem [#allocation0], 3
    %27 = vst.msk [vmem:[%s26] ss:$8 sm:$0xf] %vm25, %v24
    %v28 = vld [vmem:[#allocation2] sm:$0xf]
    %29 = vrot.lane.b32.xlu0 %v28, 64
    %v30 = vpop.permute.xlu0 %29
    %vm31 = vcmask 130048
    %s32 = scalar_lea.vmem [#allocation0], 4
    %33 = vst.msk [vmem:[%s32] ss:$8 sm:$0xf] %vm31, %v30
    %v34 = vld [vmem:[#allocation2] sm:$0xf]
    %35 = vrot.lane.b32.xlu0 %v34, 48
    %v36 = vpop.permute.xlu0 %35
    %vm37 = vcmask 130048
    %s38 = scalar_lea.vmem [#allocation0], 5
    %39 = vst.msk [vmem:[%s38] ss:$8 sm:$0xf] %vm37, %v36
    %v40 = vld [vmem:[#allocation2] sm:$0xf]
    %41 = vrot.lane.b32.xlu0 %v40, 32
    %v42 = vpop.permute.xlu0 %41
    %vm43 = vcmask 130048
    %s44 = scalar_lea.vmem [#allocation0], 6
    %45 = vst.msk [vmem:[%s44] ss:$8 sm:$0xf] %vm43, %v42
    %v46 = vld [vmem:[#allocation2] sm:$0xf]
    %47 = vrot.lane.b32.xlu0 %v46, 16
    %v48 = vpop.permute.xlu0 %47
    %vm49 = vcmask 130048
    %s50 = scalar_lea.vmem [#allocation0], 7
    %51 = vst.msk [vmem:[%s50] ss:$8 sm:$0xf] %vm49, %v48
    %s53 = ssub.s32 512, 512
    %54 = vsyncadd [#allocation1], %s53
    %s56 = sshll.u32 [#allocation0], 4
    %s57 = int_to_ptr.vmem [resolvable:$true] %s56
    %59 = dma.vmem_to_hbm [thread:$0]  %s57, 512, %s1, [#allocation1]
    %60 = dma.done [#allocation1], 512
    %61 = vsyncpa [#allocation1], 1

// kernel: eg3d_decoder_forward.1
$region0: #{eg3d_decoder_forward.1}
  #allocation0 [shape = 'u32[]', space=smem, size = 0x4, offset = 0x4, fixed_abs, tag = 'smem constant byte address 0x4 - core index']
  #allocation1 [shape = 'u32[144,128]{1,0:T(1,128)}', space=vmem, size = 0x12000, scoped, tag = 'internal scratch']
  %s0 = inlined_call_operand.vmem [shape: f32[8], index: 0, kind: input, shape index: {}]
  %s1 = inlined_call_operand.vmem [shape: f32[8], index: 1, kind: input, shape index: {}]
  %s2 = inlined_call_operand.vmem [shape: bf16[8,32,512], index: 2, kind: input, shape index: {}]
  %s3 = inlined_call_operand.vmem [shape: f32[34,512], index: 3, kind: input, shape index: {}]
  %s4 = inlined_call_operand.vmem [shape: bf16[64,32], index: 4, kind: input, shape index: {}]
  %s5 = inlined_call_operand.vmem [shape: f32[64,1], index: 5, kind: input, shape index: {}]
  %s6 = inlined_call_operand.vmem [shape: f32[40,64], index: 6, kind: input, shape index: {}]
  %s7 = inlined_call_operand.vmem [shape: f32[40,1], index: 7, kind: input, shape index: {}]
  %s8 = inlined_call_operand.vmem [shape: f32[40,512], index: 8, kind: output, shape index: {}]
  %s9 = sld [smem:[#allocation0]]
  $region153: #{eg3d_decoder_forward.1} parent=0
    _
  %s11 = ssub.s32 1, %s9
  %s12 = scalar_select 0, %s11, %s9
  $region1: #{eg3d_decoder_forward.1} parent=0
    #allocation2 [shape = 'u8[512]{0}', space=smem, size = 0x200, scoped, tag = 'input window, operand 0, single buffered']
    #allocation3 [shape = 's32[2]{0}', space=sflag, size = 0x8, scoped, tag = 'scoped memory for eg3d_decoder_forward.1']
    #allocation4 [shape = 'u8[512]{0}', space=smem, size = 0x200, scoped, tag = 'input window, operand 1, single buffered']
    #allocation5 [shape = 's32[1]{0}', space=sflag, size = 0x4, scoped, tag = 'scoped memory for eg3d_decoder_forward.1']
    #allocation6 [shape = 'u8[262144]{0}', space=vmem, size = 0x40000, scoped, tag = 'input window, operand 2']
    #allocation7 [shape = 'u8[81920]{0}', space=vmem, size = 0x14000, scoped, tag = 'input window, operand 3']
    #allocation8 [shape = 'u8[81920]{0}', space=vmem, size = 0x14000, scoped, tag = 'output window, operand 0']
    %13 = vsyncpa [#allocation3], 0
    %14 = vsyncpa [#allocation5], 0
    loop: start=0, step=1, limit=4
    $region2: #{eg3d_decoder_forward.1} parent=1 // loop_pre_header
      _
    $region3: #{eg3d_decoder_forward.1} parent=1 // loop_header
      %s16 = sphi 0, %s20
      %p17 = scmp.ge.s32.totalorder %s16, 4
      %s24 = sphi 0, %s24
      %s26 = sphi 0, %s24
      %s27 = sphi 0, %s26
      %s41 = sphi 0, %s27
      %s45 = sphi 0, %s45
      %s47 = sphi 0, %s45
      %s48 = sphi 0, %s47
      %s62 = sphi 0, %s48
      %s68 = sphi 0, %s70
      %s71 = sphi 0, %s68
      %s72 = sphi 0, %s71
      %s88 = sphi 0, %s72
      %s94 = sphi 0, %s96
      %s97 = sphi 0, %s94
      %s98 = sphi 0, %s97
      %s114 = sphi 0, %s98
      %s118 = sphi 0, %s118
      %s120 = sphi 0, %s118
      %s121 = sphi 0, %s120
      %s135 = sphi 0, %s121
      %s139 = sphi 0, %s139
      %s141 = sphi 0, %s139
      %s142 = sphi 0, %s141
      %s156 = sphi 0, %s142
      %s160 = sphi 0, %s160
      %s162 = sphi 0, %s160
      %s163 = sphi 0, %s162
      %s177 = sphi 0, %s163
      %s181 = sphi 0, %s181
      %s183 = sphi 0, %s181
      %s184 = sphi 0, %s183
      %s198 = sphi 0, %s184
      %s204 = sphi 0, %s206
      %s207 = sphi 0, %s204
      %s208 = sphi 0, %s207
      %s224 = sphi 0, %s208
    $region4: #{eg3d_decoder_forward.1} parent=1 // loop_header_branch
      %19 = sbr.rel (%p17) target = $region8
    $region5: #{eg3d_decoder_forward.1} parent=1 // loop_body
      %s21 = ssub.s32 %s16, 1
      %s22 = ssub.s32 %s16, 2
      %s23 = sadd.s32 %s16, 1
      %s25 = sadd.s32 %s24, 1
      %p28 = scmp.eq.s32.totalorder %s16, 1
      %p29 = scmp.ne.s32.totalorder %s24, %s26
      %p30 = scmp.eq.s32.totalorder %s16, 0
      %p31 = por %p29, %p30
      %p32 = scmp.ne.s32.totalorder %s24, %s26
      %p33 = scmp.eq.s32.totalorder %s21, 1
      %p34 = por %p32, %p33
      %p35 = scmp.ne.s32.totalorder %s26, %s27
      %p36 = scmp.eq.s32.totalorder %s21, 0
      %p37 = por %p35, %p36
      %p38 = scmp.ne.s32.totalorder %s26, %s27
      %p39 = scmp.eq.s32.totalorder %s22, 1
      %p40 = por %p38, %p39
      %p42 = scmp.ne.s32.totalorder %s27, %s41
      %p43 = scmp.eq.s32.totalorder %s22, 0
      %p44 = por %p42, %p43
      %s46 = sadd.s32 %s45, 1
      %p49 = scmp.eq.s32.totalorder %s16, 1
      %p50 = scmp.ne.s32.totalorder %s45, %s47
      %p51 = scmp.eq.s32.totalorder %s16, 0
      %p52 = por %p50, %p51
      %p53 = scmp.ne.s32.totalorder %s45, %s47
      %p54 = scmp.eq.s32.totalorder %s21, 1
      %p55 = por %p53, %p54
      %p56 = scmp.ne.s32.totalorder %s47, %s48
      %p57 = scmp.eq.s32.totalorder %s21, 0
      %p58 = por %p56, %p57
      %p59 = scmp.ne.s32.totalorder %s47, %s48
      %p60 = scmp.eq.s32.totalorder %s22, 1
      %p61 = por %p59, %p60
      %p63 = scmp.ne.s32.totalorder %s48, %s62
      %p64 = scmp.eq.s32.totalorder %s22, 0
      %p65 = por %p63, %p64
      %s66 = ssub.s32 %s16, %s23
      %p67 = scmp.eq.s32.totalorder %s66, 0
      %s69 = sadd.s32 %s68, 1
      %s70 = scalar_select %p67, %s68, %s69
      %p73 = pneg %p67
      %p74 = scmp.eq.s32.totalorder %s16, 1
      %p75 = por %p73, %p74
      %p76 = scmp.ne.s32.totalorder %s68, %s71
      %p77 = scmp.eq.s32.totalorder %s16, 0
      %p78 = por %p76, %p77
      %p79 = scmp.ne.s32.totalorder %s68, %s71
      %p80 = scmp.eq.s32.totalorder %s21, 1
      %p81 = por %p79, %p80
      %p82 = scmp.ne.s32.totalorder %s71, %s72
      %p83 = scmp.eq.s32.totalorder %s21, 0
      %p84 = por %p82, %p83
      %p85 = scmp.ne.s32.totalorder %s71, %s72
      %p86 = scmp.eq.s32.totalorder %s22, 1
      %p87 = por %p85, %p86
      %p89 = scmp.ne.s32.totalorder %s72, %s88
      %p90 = scmp.eq.s32.totalorder %s22, 0
      %p91 = por %p89, %p90
      %s92 = ssub.s32 %s16, %s23
      %p93 = scmp.eq.s32.totalorder %s92, 0
      %s95 = sadd.s32 %s94, 1
      %s96 = scalar_select %p93, %s94, %s95
      %p99 = pneg %p93
      %p100 = scmp.eq.s32.totalorder %s16, 1
      %p101 = por %p99, %p100
      %p102 = scmp.ne.s32.totalorder %s94, %s97
      %p103 = scmp.eq.s32.totalorder %s16, 0
      %p104 = por %p102, %p103
      %p105 = scmp.ne.s32.totalorder %s94, %s97
      %p106 = scmp.eq.s32.totalorder %s21, 1
      %p107 = por %p105, %p106
      %p108 = scmp.ne.s32.totalorder %s97, %s98
      %p109 = scmp.eq.s32.totalorder %s21, 0
      %p110 = por %p108, %p109
      %p111 = scmp.ne.s32.totalorder %s97, %s98
      %p112 = scmp.eq.s32.totalorder %s22, 1
      %p113 = por %p111, %p112
      %p115 = scmp.ne.s32.totalorder %s98, %s114
      %p116 = scmp.eq.s32.totalorder %s22, 0
      %p117 = por %p115, %p116
      %s119 = sadd.s32 %s118, 1
      %p122 = scmp.eq.s32.totalorder %s16, 1
      %p123 = scmp.ne.s32.totalorder %s118, %s120
      %p124 = scmp.eq.s32.totalorder %s16, 0
      %p125 = por %p123, %p124
      %p126 = scmp.ne.s32.totalorder %s118, %s120
      %p127 = scmp.eq.s32.totalorder %s21, 1
      %p128 = por %p126, %p127
      %p129 = scmp.ne.s32.totalorder %s120, %s121
      %p130 = scmp.eq.s32.totalorder %s21, 0
      %p131 = por %p129, %p130
      %p132 = scmp.ne.s32.totalorder %s120, %s121
      %p133 = scmp.eq.s32.totalorder %s22, 1
      %p134 = por %p132, %p133
      %p136 = scmp.ne.s32.totalorder %s121, %s135
      %p137 = scmp.eq.s32.totalorder %s22, 0
      %p138 = por %p136, %p137
      %s140 = sadd.s32 %s139, 1
      %p143 = scmp.eq.s32.totalorder %s16, 1
      %p144 = scmp.ne.s32.totalorder %s139, %s141
      %p145 = scmp.eq.s32.totalorder %s16, 0
      %p146 = por %p144, %p145
      %p147 = scmp.ne.s32.totalorder %s139, %s141
      %p148 = scmp.eq.s32.totalorder %s21, 1
      %p149 = por %p147, %p148
      %p150 = scmp.ne.s32.totalorder %s141, %s142
      %p151 = scmp.eq.s32.totalorder %s21, 0
      %p152 = por %p150, %p151
      %p153 = scmp.ne.s32.totalorder %s141, %s142
      %p154 = scmp.eq.s32.totalorder %s22, 1
      %p155 = por %p153, %p154
      %p157 = scmp.ne.s32.totalorder %s142, %s156
      %p158 = scmp.eq.s32.totalorder %s22, 0
      %p159 = por %p157, %p158
      %s161 = sadd.s32 %s160, 1
      %p164 = scmp.eq.s32.totalorder %s16, 1
      %p165 = scmp.ne.s32.totalorder %s160, %s162
      %p166 = scmp.eq.s32.totalorder %s16, 0
      %p167 = por %p165, %p166
      %p168 = scmp.ne.s32.totalorder %s160, %s162
      %p169 = scmp.eq.s32.totalorder %s21, 1
      %p170 = por %p168, %p169
      %p171 = scmp.ne.s32.totalorder %s162, %s163
      %p172 = scmp.eq.s32.totalorder %s21, 0
      %p173 = por %p171, %p172
      %p174 = scmp.ne.s32.totalorder %s162, %s163
      %p175 = scmp.eq.s32.totalorder %s22, 1
      %p176 = por %p174, %p175
      %p178 = scmp.ne.s32.totalorder %s163, %s177
      %p179 = scmp.eq.s32.totalorder %s22, 0
      %p180 = por %p178, %p179
      %s182 = sadd.s32 %s181, 1
      %p185 = scmp.eq.s32.totalorder %s16, 1
      %p186 = scmp.ne.s32.totalorder %s181, %s183
      %p187 = scmp.eq.s32.totalorder %s16, 0
      %p188 = por %p186, %p187
      %p189 = scmp.ne.s32.totalorder %s181, %s183
      %p190 = scmp.eq.s32.totalorder %s21, 1
      %p191 = por %p189, %p190
      %p192 = scmp.ne.s32.totalorder %s183, %s184
      %p193 = scmp.eq.s32.totalorder %s21, 0
      %p194 = por %p192, %p193
      %p195 = scmp.ne.s32.totalorder %s183, %s184
      %p196 = scmp.eq.s32.totalorder %s22, 1
      %p197 = por %p195, %p196
      %p199 = scmp.ne.s32.totalorder %s184, %s198
      %p200 = scmp.eq.s32.totalorder %s22, 0
      %p201 = por %p199, %p200
      %s202 = ssub.s32 %s16, %s23
      %p203 = scmp.eq.s32.totalorder %s202, 0
      %s205 = sadd.s32 %s204, 1
      %s206 = scalar_select %p203, %s204, %s205
      %p209 = pneg %p203
      %p210 = scmp.eq.s32.totalorder %s16, 1
      %p211 = por %p209, %p210
      %p212 = scmp.ne.s32.totalorder %s204, %s207
      %p213 = scmp.eq.s32.totalorder %s16, 0
      %p214 = por %p212, %p213
      %p215 = scmp.ne.s32.totalorder %s204, %s207
      %p216 = scmp.eq.s32.totalorder %s21, 1
      %p217 = por %p215, %p216
      %p218 = scmp.ne.s32.totalorder %s207, %s208
      %p219 = scmp.eq.s32.totalorder %s21, 0
      %p220 = por %p218, %p219
      %p221 = scmp.ne.s32.totalorder %s207, %s208
      %p222 = scmp.eq.s32.totalorder %s22, 1
      %p223 = por %p221, %p222
      %p225 = scmp.ne.s32.totalorder %s208, %s224
      %p226 = scmp.eq.s32.totalorder %s22, 0
      %p227 = por %p225, %p226
      %p228 = scmp.le.s32.totalorder 1, %s16
      %p229 = scmp.lt.s32.totalorder %s16, 3
      %p230 = pnand %p228, %p229
      %p231 = pneg %p230
      // Predicated region
      $region9: #{eg3d_decoder_forward.1} parent=5 // pred_check
        _
      $region10: #{eg3d_decoder_forward.1} parent=5 // pred_check_branch
        %233 = sbr.rel (%p230) target = $region12
      $region11: #{eg3d_decoder_forward.1} parent=5 // pred_region
        %s234 = ssub.s32 %s16, 1
        // Predicated region
        $region13: #{eg3d_decoder_forward.1} parent=11 // pred_check
          %p235 = pneg %p37
        $region14: #{eg3d_decoder_forward.1} parent=11 // pred_check_branch
          %237 = sbr.rel (%p235) target = $region16
        $region15: #{eg3d_decoder_forward.1} parent=11 // pred_region
          %s239 = ssub.s32 16, 16
          %240 = vsyncadd [#allocation3], %s239
          %s242 = sshll.u32 %s0, 4
          %s243 = int_to_ptr.vmem [resolvable:$true] %s242
          %245 = dma.vmem_to_smem %s243, 16, [#allocation2], [#allocation3]
        $region16: #{eg3d_decoder_forward.1} parent=11 // pred_fallthru
          _
        // Predicated region
        $region17: #{eg3d_decoder_forward.1} parent=11 // pred_check
          %p246 = pneg %p58
        $region18: #{eg3d_decoder_forward.1} parent=11 // pred_check_branch
          %248 = sbr.rel (%p246) target = $region20
        $region19: #{eg3d_decoder_forward.1} parent=11 // pred_region
          %s250 = ssub.s32 16, 16
          %251 = vsyncadd [#allocation5], %s250
          %s253 = sshll.u32 %s1, 4
          %s254 = int_to_ptr.vmem [resolvable:$true] %s253
          %256 = dma.vmem_to_smem %s254, 16, [#allocation4], [#allocation5]
        $region20: #{eg3d_decoder_forward.1} parent=11 // pred_fallthru
          _
        // Predicated region
        $region21: #{eg3d_decoder_forward.1} parent=11 // pred_check
          %p257 = pneg %p131
        $region22: #{eg3d_decoder_forward.1} parent=11 // pred_check_branch
          %259 = sbr.rel (%p257) target = $region24
        $region23: #{eg3d_decoder_forward.1} parent=11 // pred_region
          _
        $region24: #{eg3d_decoder_forward.1} parent=11 // pred_fallthru
          _
        // Predicated region
        $region25: #{eg3d_decoder_forward.1} parent=11 // pred_check
          %p260 = pneg %p152
        $region26: #{eg3d_decoder_forward.1} parent=11 // pred_check_branch
          %262 = sbr.rel (%p260) target = $region28
        $region27: #{eg3d_decoder_forward.1} parent=11 // pred_region
          _
        $region28: #{eg3d_decoder_forward.1} parent=11 // pred_fallthru
          _
        // Predicated region
        $region29: #{eg3d_decoder_forward.1} parent=11 // pred_check
          %p263 = pneg %p173
        $region30: #{eg3d_decoder_forward.1} parent=11 // pred_check_branch
          %265 = sbr.rel (%p263) target = $region32
        $region31: #{eg3d_decoder_forward.1} parent=11 // pred_region
          _
        $region32: #{eg3d_decoder_forward.1} parent=11 // pred_fallthru
          _
        // Predicated region
        $region33: #{eg3d_decoder_forward.1} parent=11 // pred_check
          %p266 = pneg %p194
        $region34: #{eg3d_decoder_forward.1} parent=11 // pred_check_branch
          %268 = sbr.rel (%p266) target = $region36
        $region35: #{eg3d_decoder_forward.1} parent=11 // pred_region
          _
        $region36: #{eg3d_decoder_forward.1} parent=11 // pred_fallthru
          _
      $region12: #{eg3d_decoder_forward.1} parent=5 // pred_fallthru
        _
      %p269 = scmp.lt.s32.totalorder %s16, 2
      // Predicated region
      $region37: #{eg3d_decoder_forward.1} parent=5 // pred_check
        %p270 = pneg %p269
      $region38: #{eg3d_decoder_forward.1} parent=5 // pred_check_branch
        %272 = sbr.rel (%p270) target = $region40
      $region39: #{eg3d_decoder_forward.1} parent=5 // pred_region
        // Predicated region
        $region41: #{eg3d_decoder_forward.1} parent=39 // pred_check
          %p273 = pneg %p78
        $region42: #{eg3d_decoder_forward.1} parent=39 // pred_check_branch
          %275 = sbr.rel (%p273) target = $region44
        $region43: #{eg3d_decoder_forward.1} parent=39 // pred_region
          %s276 = sand.u32 %s68, 1
          %s277 = sand.u32 %s68, 1
          %s278 = smul.addr %s277, 256
          %s279 = scalar_lea.vmem [#allocation6], %s278
          %s280 = smul.u32 2, %s16
          %s281 = smul.addr %s280, 4
          %s282 = scalar_lea.vmem %s2, %s281
          // Predicated region
          $region45: #{eg3d_decoder_forward.1} parent=43 // pred_check
            _
          $region46: #{eg3d_decoder_forward.1} parent=43 // pred_check_branch
            %284 = sbr.rel (0) target = $region48
          $region47: #{eg3d_decoder_forward.1} parent=43 // pred_region
            // Predicated region
            $region49: #{eg3d_decoder_forward.1} parent=47 // pred_check
              _
            $region50: #{eg3d_decoder_forward.1} parent=47 // pred_check_branch
              %286 = sbr.rel (0) target = $region52
            $region51: #{eg3d_decoder_forward.1} parent=47 // pred_region
              // Predicated region
              $region64: #{eg3d_decoder_forward.1} parent=51 // pred_check
                _
              $region65: #{eg3d_decoder_forward.1} parent=51 // pred_check_branch
                %363 = sbr.rel (0) target = $region67
              $region66: #{eg3d_decoder_forward.1} parent=51 // pred_region
                loop: start=0, step=1, limit=1
                $region68: #{eg3d_decoder_forward.1} parent=66 // loop_pre_header
                  _
                $region69: #{eg3d_decoder_forward.1} parent=66 // loop_header
                  %s365 = sphi 0, %s369
                  %p366 = scmp.ge.s32.totalorder %s365, 1
                  %s370 = sphi %s282, %s282
                  %s371 = sphi %s279, %s279
                $region70: #{eg3d_decoder_forward.1} parent=66 // loop_header_branch
                  %368 = sbr.rel (%p366) target = $region74
                $region71: #{eg3d_decoder_forward.1} parent=66 // loop_body
                  %v372 = vld [vmem:[%s370] sm:$0xff]
                  %373 = vst [vmem:[%s371] sm:$0xff] %v372
                  %v374 = vld [vmem:[%s370 + $0x10] sm:$0xff]
                  %375 = vst [vmem:[%s371 + $0x8] sm:$0xff] %v374
                  %v376 = vld [vmem:[%s370 + $0x20] sm:$0xff]
                  %377 = vst [vmem:[%s371 + $0x10] sm:$0xff] %v376
                  %v378 = vld [vmem:[%s370 + $0x30] sm:$0xff]
                  %379 = vst [vmem:[%s371 + $0x18] sm:$0xff] %v378
                  %v380 = vld [vmem:[%s370 + $0x40] sm:$0xff]
                  %381 = vst [vmem:[%s371 + $0x20] sm:$0xff] %v380
                  %v382 = vld [vmem:[%s370 + $0x50] sm:$0xff]
                  %383 = vst [vmem:[%s371 + $0x28] sm:$0xff] %v382
                  %v384 = vld [vmem:[%s370 + $0x60] sm:$0xff]
                  %385 = vst [vmem:[%s371 + $0x30] sm:$0xff] %v384
                  %v386 = vld [vmem:[%s370 + $0x70] sm:$0xff]
                  %387 = vst [vmem:[%s371 + $0x38] sm:$0xff] %v386
                  %v388 = vld [vmem:[%s370 + $0x80] sm:$0xff]
                  %389 = vst [vmem:[%s371 + $0x40] sm:$0xff] %v388
                  %v390 = vld [vmem:[%s370 + $0x90] sm:$0xff]
                  %391 = vst [vmem:[%s371 + $0x48] sm:$0xff] %v390
                  %v392 = vld [vmem:[%s370 + $0xa0] sm:$0xff]
                  %393 = vst [vmem:[%s371 + $0x50] sm:$0xff] %v392
                  %v394 = vld [vmem:[%s370 + $0xb0] sm:$0xff]
                  %395 = vst [vmem:[%s371 + $0x58] sm:$0xff] %v394
                  %v396 = vld [vmem:[%s370 + $0xc0] sm:$0xff]
                  %397 = vst [vmem:[%s371 + $0x60] sm:$0xff] %v396
                  %v398 = vld [vmem:[%s370 + $0xd0] sm:$0xff]
                  %399 = vst [vmem:[%s371 + $0x68] sm:$0xff] %v398
                  %v400 = vld [vmem:[%s370 + $0xe0] sm:$0xff]
                  %401 = vst [vmem:[%s371 + $0x70] sm:$0xff] %v400
                  %v402 = vld [vmem:[%s370 + $0xf0] sm:$0xff]
                  %403 = vst [vmem:[%s371 + $0x78] sm:$0xff] %v402
                  %v404 = vld [vmem:[%s370 + $0x100] sm:$0xff]
                  %405 = vst [vmem:[%s371 + $0x80] sm:$0xff] %v404
                  %v406 = vld [vmem:[%s370 + $0x110] sm:$0xff]
                  %407 = vst [vmem:[%s371 + $0x88] sm:$0xff] %v406
                  %v408 = vld [vmem:[%s370 + $0x120] sm:$0xff]
                  %409 = vst [vmem:[%s371 + $0x90] sm:$0xff] %v408
                  %v410 = vld [vmem:[%s370 + $0x130] sm:$0xff]
                  %411 = vst [vmem:[%s371 + $0x98] sm:$0xff] %v410
                  %v412 = vld [vmem:[%s370 + $0x140] sm:$0xff]
                  %413 = vst [vmem:[%s371 + $0xa0] sm:$0xff] %v412
                  %v414 = vld [vmem:[%s370 + $0x150] sm:$0xff]
                  %415 = vst [vmem:[%s371 + $0xa8] sm:$0xff] %v414
                  %v416 = vld [vmem:[%s370 + $0x160] sm:$0xff]
                  %417 = vst [vmem:[%s371 + $0xb0] sm:$0xff] %v416
                  %v418 = vld [vmem:[%s370 + $0x170] sm:$0xff]
                  %419 = vst [vmem:[%s371 + $0xb8] sm:$0xff] %v418
                  %v420 = vld [vmem:[%s370 + $0x180] sm:$0xff]
                  %421 = vst [vmem:[%s371 + $0xc0] sm:$0xff] %v420
                  %v422 = vld [vmem:[%s370 + $0x190] sm:$0xff]
                  %423 = vst [vmem:[%s371 + $0xc8] sm:$0xff] %v422
                  %v424 = vld [vmem:[%s370 + $0x1a0] sm:$0xff]
                  %425 = vst [vmem:[%s371 + $0xd0] sm:$0xff] %v424
                  %v426 = vld [vmem:[%s370 + $0x1b0] sm:$0xff]
                  %427 = vst [vmem:[%s371 + $0xd8] sm:$0xff] %v426
                  %v428 = vld [vmem:[%s370 + $0x1c0] sm:$0xff]
                  %429 = vst [vmem:[%s371 + $0xe0] sm:$0xff] %v428
                  %v430 = vld [vmem:[%s370 + $0x1d0] sm:$0xff]
                  %431 = vst [vmem:[%s371 + $0xe8] sm:$0xff] %v430
                  %v432 = vld [vmem:[%s370 + $0x1e0] sm:$0xff]
                  %433 = vst [vmem:[%s371 + $0xf0] sm:$0xff] %v432
                  %v434 = vld [vmem:[%s370 + $0x1f0] sm:$0xff]
                  %435 = vst [vmem:[%s371 + $0xf8] sm:$0xff] %v434
                $region72: #{eg3d_decoder_forward.1} parent=66 // loop_footer
                  %s369 = sadd.s32 1, %s365
                $region73: #{eg3d_decoder_forward.1} parent=66 // loop_footer_branch
                  %364 = sbr.rel target = $region69
                $region74: #{eg3d_decoder_forward.1} parent=66 // loop_exit
                  _
              $region67: #{eg3d_decoder_forward.1} parent=51 // pred_fallthru
                _
              // Predicated region
              $region75: #{eg3d_decoder_forward.1} parent=51 // pred_check
                _
              $region76: #{eg3d_decoder_forward.1} parent=51 // pred_check_branch
                %437 = sbr.rel target = $region78
              $region77: #{eg3d_decoder_forward.1} parent=51 // pred_region
                _
              $region78: #{eg3d_decoder_forward.1} parent=51 // pred_fallthru
                _
            $region52: #{eg3d_decoder_forward.1} parent=47 // pred_fallthru
              _
            // Predicated region
            $region53: #{eg3d_decoder_forward.1} parent=47 // pred_check
              _
            $region54: #{eg3d_decoder_forward.1} parent=47 // pred_check_branch
              %288 = sbr.rel target = $region56
            $region55: #{eg3d_decoder_forward.1} parent=47 // pred_region
              loop: start=0, step=1, limit=1
              $region57: #{eg3d_decoder_forward.1} parent=55 // loop_pre_header
                _
              $region58: #{eg3d_decoder_forward.1} parent=55 // loop_header
                %s291 = sphi 0, %s295
                %p292 = scmp.ge.s32.totalorder %s291, 1
                %s296 = sphi %s282, %s282
                %s297 = sphi %s279, %s279
              $region59: #{eg3d_decoder_forward.1} parent=55 // loop_header_branch
                %294 = sbr.rel (%p292) target = $region63
              $region60: #{eg3d_decoder_forward.1} parent=55 // loop_body
                %v298 = vld [vmem:[%s296] sm:$0xff]
                %299 = vst [vmem:[%s297] sm:$0xff] %v298
                %v300 = vld [vmem:[%s296 + $0x10] sm:$0xff]
                %301 = vst [vmem:[%s297 + $0x8] sm:$0xff] %v300
                %v302 = vld [vmem:[%s296 + $0x20] sm:$0xff]
                %303 = vst [vmem:[%s297 + $0x10] sm:$0xff] %v302
                %v304 = vld [vmem:[%s296 + $0x30] sm:$0xff]
                %305 = vst [vmem:[%s297 + $0x18] sm:$0xff] %v304
                %v306 = vld [vmem:[%s296 + $0x40] sm:$0xff]
                %307 = vst [vmem:[%s297 + $0x20] sm:$0xff] %v306
                %v308 = vld [vmem:[%s296 + $0x50] sm:$0xff]
                %309 = vst [vmem:[%s297 + $0x28] sm:$0xff] %v308
                %v310 = vld [vmem:[%s296 + $0x60] sm:$0xff]
                %311 = vst [vmem:[%s297 + $0x30] sm:$0xff] %v310
                %v312 = vld [vmem:[%s296 + $0x70] sm:$0xff]
                %313 = vst [vmem:[%s297 + $0x38] sm:$0xff] %v312
                %v314 = vld [vmem:[%s296 + $0x80] sm:$0xff]
                %315 = vst [vmem:[%s297 + $0x40] sm:$0xff] %v314
                %v316 = vld [vmem:[%s296 + $0x90] sm:$0xff]
                %317 = vst [vmem:[%s297 + $0x48] sm:$0xff] %v316
                %v318 = vld [vmem:[%s296 + $0xa0] sm:$0xff]
                %319 = vst [vmem:[%s297 + $0x50] sm:$0xff] %v318
                %v320 = vld [vmem:[%s296 + $0xb0] sm:$0xff]
                %321 = vst [vmem:[%s297 + $0x58] sm:$0xff] %v320
                %v322 = vld [vmem:[%s296 + $0xc0] sm:$0xff]
                %323 = vst [vmem:[%s297 + $0x60] sm:$0xff] %v322
                %v324 = vld [vmem:[%s296 + $0xd0] sm:$0xff]
                %325 = vst [vmem:[%s297 + $0x68] sm:$0xff] %v324
                %v326 = vld [vmem:[%s296 + $0xe0] sm:$0xff]
                %327 = vst [vmem:[%s297 + $0x70] sm:$0xff] %v326
                %v328 = vld [vmem:[%s296 + $0xf0] sm:$0xff]
                %329 = vst [vmem:[%s297 + $0x78] sm:$0xff] %v328
                %v330 = vld [vmem:[%s296 + $0x100] sm:$0xff]
                %331 = vst [vmem:[%s297 + $0x80] sm:$0xff] %v330
                %v332 = vld [vmem:[%s296 + $0x110] sm:$0xff]
                %333 = vst [vmem:[%s297 + $0x88] sm:$0xff] %v332
                %v334 = vld [vmem:[%s296 + $0x120] sm:$0xff]
                %335 = vst [vmem:[%s297 + $0x90] sm:$0xff] %v334
                %v336 = vld [vmem:[%s296 + $0x130] sm:$0xff]
                %337 = vst [vmem:[%s297 + $0x98] sm:$0xff] %v336
                %v338 = vld [vmem:[%s296 + $0x140] sm:$0xff]
                %339 = vst [vmem:[%s297 + $0xa0] sm:$0xff] %v338
                %v340 = vld [vmem:[%s296 + $0x150] sm:$0xff]
                %341 = vst [vmem:[%s297 + $0xa8] sm:$0xff] %v340
                %v342 = vld [vmem:[%s296 + $0x160] sm:$0xff]
                %343 = vst [vmem:[%s297 + $0xb0] sm:$0xff] %v342
                %v344 = vld [vmem:[%s296 + $0x170] sm:$0xff]
                %345 = vst [vmem:[%s297 + $0xb8] sm:$0xff] %v344
                %v346 = vld [vmem:[%s296 + $0x180] sm:$0xff]
                %347 = vst [vmem:[%s297 + $0xc0] sm:$0xff] %v346
                %v348 = vld [vmem:[%s296 + $0x190] sm:$0xff]
                %349 = vst [vmem:[%s297 + $0xc8] sm:$0xff] %v348
                %v350 = vld [vmem:[%s296 + $0x1a0] sm:$0xff]
                %351 = vst [vmem:[%s297 + $0xd0] sm:$0xff] %v350
                %v352 = vld [vmem:[%s296 + $0x1b0] sm:$0xff]
                %353 = vst [vmem:[%s297 + $0xd8] sm:$0xff] %v352
                %v354 = vld [vmem:[%s296 + $0x1c0] sm:$0xff]
                %355 = vst [vmem:[%s297 + $0xe0] sm:$0xff] %v354
                %v356 = vld [vmem:[%s296 + $0x1d0] sm:$0xff]
                %357 = vst [vmem:[%s297 + $0xe8] sm:$0xff] %v356
                %v358 = vld [vmem:[%s296 + $0x1e0] sm:$0xff]
                %359 = vst [vmem:[%s297 + $0xf0] sm:$0xff] %v358
                %v360 = vld [vmem:[%s296 + $0x1f0] sm:$0xff]
                %361 = vst [vmem:[%s297 + $0xf8] sm:$0xff] %v360
              $region61: #{eg3d_decoder_forward.1} parent=55 // loop_footer
                %s295 = sadd.s32 1, %s291
              $region62: #{eg3d_decoder_forward.1} parent=55 // loop_footer_branch
                %290 = sbr.rel target = $region58
              $region63: #{eg3d_decoder_forward.1} parent=55 // loop_exit
                _
            $region56: #{eg3d_decoder_forward.1} parent=47 // pred_fallthru
              _
          $region48: #{eg3d_decoder_forward.1} parent=43 // pred_fallthru
            _
          %438 = vnop
        $region44: #{eg3d_decoder_forward.1} parent=39 // pred_fallthru
          _
        // Predicated region
        $region79: #{eg3d_decoder_forward.1} parent=39 // pred_check
          %p439 = pneg %p104
        $region80: #{eg3d_decoder_forward.1} parent=39 // pred_check_branch
          %441 = sbr.rel (%p439) target = $region82
        $region81: #{eg3d_decoder_forward.1} parent=39 // pred_region
          %s442 = sand.u32 %s94, 1
          %s443 = sand.u32 %s94, 1
          %s444 = smul.addr %s443, 80
          %s445 = scalar_lea.vmem [#allocation7], %s444
          %s446 = smul.u32 2, %s16
          %s447 = smul.addr %s446, 8
          %s448 = scalar_lea.vmem %s3, %s447
          // Predicated region
          $region83: #{eg3d_decoder_forward.1} parent=81 // pred_check
            _
          $region84: #{eg3d_decoder_forward.1} parent=81 // pred_check_branch
            %450 = sbr.rel (0) target = $region86
          $region85: #{eg3d_decoder_forward.1} parent=81 // pred_region
            // Predicated region
            $region87: #{eg3d_decoder_forward.1} parent=85 // pred_check
              _
            $region88: #{eg3d_decoder_forward.1} parent=85 // pred_check_branch
              %452 = sbr.rel (0) target = $region90
            $region89: #{eg3d_decoder_forward.1} parent=85 // pred_region
              loop: start=0, step=1, limit=1
              $region91: #{eg3d_decoder_forward.1} parent=89 // loop_pre_header
                _
              $region92: #{eg3d_decoder_forward.1} parent=89 // loop_header
                %s454 = sphi 0, %s458
                %p455 = scmp.ge.s32.totalorder %s454, 1
                %s459 = sphi %s448, %s448
                %s460 = sphi %s445, %s445
              $region93: #{eg3d_decoder_forward.1} parent=89 // loop_header_branch
                %457 = sbr.rel (%p455) target = $region97
              $region94: #{eg3d_decoder_forward.1} parent=89 // loop_body
                %v461 = vld [vmem:[%s459] sm:$0xff]
                %462 = vst [vmem:[%s460] sm:$0xff] %v461
                %v463 = vld [vmem:[%s459 + $0x8] sm:$0xff]
                %464 = vst [vmem:[%s460 + $0x8] sm:$0xff] %v463
                %v465 = vld [vmem:[%s459 + $0x20] sm:$0xff]
                %466 = vst [vmem:[%s460 + $0x10] sm:$0xff] %v465
                %v467 = vld [vmem:[%s459 + $0x28] sm:$0xff]
                %468 = vst [vmem:[%s460 + $0x18] sm:$0xff] %v467
                %v469 = vld [vmem:[%s459 + $0x40] sm:$0xff]
                %470 = vst [vmem:[%s460 + $0x20] sm:$0xff] %v469
                %v471 = vld [vmem:[%s459 + $0x48] sm:$0xff]
                %472 = vst [vmem:[%s460 + $0x28] sm:$0xff] %v471
                %v473 = vld [vmem:[%s459 + $0x60] sm:$0xff]
                %474 = vst [vmem:[%s460 + $0x30] sm:$0xff] %v473
                %v475 = vld [vmem:[%s459 + $0x68] sm:$0xff]
                %476 = vst [vmem:[%s460 + $0x38] sm:$0xff] %v475
                %v477 = vld [vmem:[%s459 + $0x80] sm:$0xff]
                %478 = vst [vmem:[%s460 + $0x40] sm:$0xff] %v477
                %v479 = vld [vmem:[%s459 + $0x88] sm:$0xff]
                %480 = vst [vmem:[%s460 + $0x48] sm:$0xff] %v479
              $region95: #{eg3d_decoder_forward.1} parent=89 // loop_footer
                %s458 = sadd.s32 1, %s454
              $region96: #{eg3d_decoder_forward.1} parent=89 // loop_footer_branch
                %453 = sbr.rel target = $region92
              $region97: #{eg3d_decoder_forward.1} parent=89 // loop_exit
                _
            $region90: #{eg3d_decoder_forward.1} parent=85 // pred_fallthru
              _
            // Predicated region
            $region98: #{eg3d_decoder_forward.1} parent=85 // pred_check
              _
            $region99: #{eg3d_decoder_forward.1} parent=85 // pred_check_branch
              %482 = sbr.rel target = $region101
            $region100: #{eg3d_decoder_forward.1} parent=85 // pred_region
              _
            $region101: #{eg3d_decoder_forward.1} parent=85 // pred_fallthru
              _
          $region86: #{eg3d_decoder_forward.1} parent=81 // pred_fallthru
            _
          %483 = vnop
        $region82: #{eg3d_decoder_forward.1} parent=39 // pred_fallthru
          _
      $region40: #{eg3d_decoder_forward.1} parent=5 // pred_fallthru
        _
      %p484 = scmp.le.s32.totalorder 1, %s16
      %p485 = scmp.lt.s32.totalorder %s16, 3
      %p486 = pnand %p484, %p485
      %p487 = pneg %p486
      // Predicated region
      $region102: #{eg3d_decoder_forward.1} parent=5 // pred_check
        _
      $region103: #{eg3d_decoder_forward.1} parent=5 // pred_check_branch
        %489 = sbr.rel (%p486) target = $region105
      $region104: #{eg3d_decoder_forward.1} parent=5 // pred_region
        %s490 = ssub.s32 %s16, 1
        // Predicated region
        $region106: #{eg3d_decoder_forward.1} parent=104 // pred_check
          %p491 = pneg %p37
        $region107: #{eg3d_decoder_forward.1} parent=104 // pred_check_branch
          %493 = sbr.rel (%p491) target = $region109
        $region108: #{eg3d_decoder_forward.1} parent=104 // pred_region
          %494 = dma.done [#allocation3], 16
        $region109: #{eg3d_decoder_forward.1} parent=104 // pred_fallthru
          _
        // Predicated region
        $region110: #{eg3d_decoder_forward.1} parent=104 // pred_check
          %p495 = pneg %p58
        $region111: #{eg3d_decoder_forward.1} parent=104 // pred_check_branch
          %497 = sbr.rel (%p495) target = $region113
        $region112: #{eg3d_decoder_forward.1} parent=104 // pred_region
          %498 = dma.done [#allocation5], 16
        $region113: #{eg3d_decoder_forward.1} parent=104 // pred_fallthru
          _
        %s499 = sand.u32 %s71, 1
        %s500 = sand.u32 %s71, 1
        %s501 = smul.addr %s500, 256
        %s502 = scalar_lea.vmem [#allocation6], %s501
        // Predicated region
        $region114: #{eg3d_decoder_forward.1} parent=104 // pred_check
          %p503 = pneg %p84
        $region115: #{eg3d_decoder_forward.1} parent=104 // pred_check_branch
          %505 = sbr.rel (%p503) target = $region117
        $region116: #{eg3d_decoder_forward.1} parent=104 // pred_region
          _
        $region117: #{eg3d_decoder_forward.1} parent=104 // pred_fallthru
          _
        %s506 = sand.u32 %s97, 1
        %s507 = sand.u32 %s97, 1
        %s508 = smul.addr %s507, 80
        %s509 = scalar_lea.vmem [#allocation7], %s508
        // Predicated region
        $region118: #{eg3d_decoder_forward.1} parent=104 // pred_check
          %p510 = pneg %p110
        $region119: #{eg3d_decoder_forward.1} parent=104 // pred_check_branch
          %512 = sbr.rel (%p510) target = $region121
        $region120: #{eg3d_decoder_forward.1} parent=104 // pred_region
          _
        $region121: #{eg3d_decoder_forward.1} parent=104 // pred_fallthru
          _
        %513 = sfence
        %p514 = pneg %p37
        %p515 = pneg %p34
        %p516 = pneg %p58
        %p517 = pneg %p55
        %s518 = sand.u32 %s71, 1
        %s519 = sand.u32 %s71, 1
        %s520 = smul.addr %s519, 256
        %s521 = scalar_lea.vmem [#allocation6], %s520
        %p522 = pneg %p84
        %p523 = pneg %p81
        %s524 = sand.u32 %s97, 1
        %s525 = sand.u32 %s97, 1
        %s526 = smul.addr %s525, 80
        %s527 = scalar_lea.vmem [#allocation7], %s526
        %p528 = pneg %p110
        %p529 = pneg %p107
        %p530 = pneg %p131
        %p531 = pneg %p128
        %p532 = pneg %p152
        %p533 = pneg %p149
        %p534 = pneg %p173
        %p535 = pneg %p170
        %p536 = pneg %p194
        %p537 = pneg %p191
        %p538 = pneg %p220
        %p539 = pneg %p217
        %s540 = sand.u32 %s207, 1
        %s541 = sand.u32 %s207, 1
        %s542 = smul.addr %s541, 80
        %s543 = scalar_lea.vmem [#allocation8], %s542
        %s544 = smul.u32 2, %s21
        %s545 = smul.u32 2, %s21
        %s546 = smul.u32 2, %s21
        %v548 = vld [vmem:[%s4] sm:$0xf]
        %v549 = vld [vmem:[%s4 + $0x4] sm:$0xf]
        %v550 = vld [vmem:[%s4 + $0x8] sm:$0xf]
        %v551 = vld [vmem:[%s4 + $0xc] sm:$0xf]
        %v552 = vld [vmem:[%s4 + $0x10] sm:$0xf]
        %v553 = vld [vmem:[%s4 + $0x14] sm:$0xf]
        %v554 = vld [vmem:[%s4 + $0x18] sm:$0xf]
        %v555 = vld [vmem:[%s4 + $0x1c] sm:$0xf]
        %v556 = vld [vmem:[%s6] sm:$0xff]
        %v557 = vld [vmem:[%s6 + $0x8] sm:$0xff]
        %v558 = vld [vmem:[%s6 + $0x10] sm:$0xff]
        %v559 = vld [vmem:[%s6 + $0x18] sm:$0xff]
        %v560 = vld [vmem:[%s6 + $0x20] sm:$0xff]
        %v561 = vld [vmem:[%s5] sm:$0xff]
        %v562 = vld [vmem:[%s5 + $0x8] sm:$0xff]
        %v563 = vld [vmem:[%s5 + $0x10] sm:$0xff]
        %v564 = vld [vmem:[%s5 + $0x18] sm:$0xff]
        %v565 = vld [vmem:[%s5 + $0x20] sm:$0xff]
        %v566 = vld [vmem:[%s5 + $0x28] sm:$0xff]
        %v567 = vld [vmem:[%s5 + $0x30] sm:$0xff]
        %v568 = vld [vmem:[%s5 + $0x38] sm:$0xff]
        %570 = vset.pattern.permute.xlu0 0
        %571 = vperm.xlu0 %570, %v561
        %v572 = vpop.permute.xlu0 %571
        %575 = vset.pattern.permute.xlu0 0
        %576 = vperm.xlu0 %575, %v562
        %v577 = vpop.permute.xlu0 %576
        %580 = vset.pattern.permute.xlu0 0
        %581 = vperm.xlu0 %580, %v563
        %v582 = vpop.permute.xlu0 %581
        %585 = vset.pattern.permute.xlu0 0
        %586 = vperm.xlu0 %585, %v564
        %v587 = vpop.permute.xlu0 %586
        %590 = vset.pattern.permute.xlu0 0
        %591 = vperm.xlu0 %590, %v565
        %v592 = vpop.permute.xlu0 %591
        %595 = vset.pattern.permute.xlu0 0
        %596 = vperm.xlu0 %595, %v566
        %v597 = vpop.permute.xlu0 %596
        %600 = vset.pattern.permute.xlu0 0
        %601 = vperm.xlu0 %600, %v567
        %v602 = vpop.permute.xlu0 %601
        %605 = vset.pattern.permute.xlu0 0
        %606 = vperm.xlu0 %605, %v568
        %v607 = vpop.permute.xlu0 %606
        %v609 = vld [vmem:[%s7] sm:$0xff]
        %v610 = vld [vmem:[%s7 + $0x8] sm:$0xff]
        %v611 = vld [vmem:[%s7 + $0x10] sm:$0xff]
        %v612 = vld [vmem:[%s7 + $0x18] sm:$0xff]
        %v613 = vld [vmem:[%s7 + $0x20] sm:$0xff]
        %615 = vset.pattern.permute.xlu0 0
        %616 = vperm.xlu0 %615, %v609
        %v617 = vpop.permute.xlu0 %616
        %620 = vset.pattern.permute.xlu0 0
        %621 = vperm.xlu0 %620, %v610
        %v622 = vpop.permute.xlu0 %621
        %625 = vset.pattern.permute.xlu0 0
        %626 = vperm.xlu0 %625, %v611
        %v627 = vpop.permute.xlu0 %626
        %630 = vset.pattern.permute.xlu0 0
        %631 = vperm.xlu0 %630, %v612
        %v632 = vpop.permute.xlu0 %631
        %635 = vset.pattern.permute.xlu0 0
        %636 = vperm.xlu0 %635, %v613
        %v637 = vpop.permute.xlu0 %636
        %v639 = vld [vmem:[%s502] sm:$0xff]
        %v640 = vld [vmem:[%s502 + $0x8] sm:$0xff]
        %v641 = vld [vmem:[%s502 + $0x10] sm:$0xff]
        %v642 = vld [vmem:[%s502 + $0x18] sm:$0xff]
        %v651 = vunpack.c.l.b16 %v548
        %v652 = vunpack.c.l.b16 %v549
        %v653 = vunpack.c.l.b16 %v550
        %v654 = vunpack.c.l.b16 %v551
        %v655 = vunpack.c.l.b16 %v552
        %v656 = vunpack.c.l.b16 %v553
        %v657 = vunpack.c.l.b16 %v554
        %v658 = vunpack.c.l.b16 %v555
        %v659 = vpack.c.b16 %v652, %v651
        %v660 = vpack.c.b16 %v654, %v653
        %v661 = vpack.c.b16 %v656, %v655
        %v662 = vpack.c.b16 %v658, %v657
        %v667 = vunpack.c.l.b16 %v639
        %v668 = vunpack.c.h.b16 %v639
        %v669 = vunpack.c.l.b16 %v640
        %v670 = vunpack.c.h.b16 %v640
        %v671 = vunpack.c.l.b16 %v641
        %v672 = vunpack.c.h.b16 %v641
        %v673 = vunpack.c.l.b16 %v642
        %v674 = vunpack.c.h.b16 %v642
        %v675 = vpack.c.b16 %v669, %v667
        %v676 = vpack.c.b16 %v670, %v668
        %v677 = vpack.c.b16 %v673, %v671
        %v678 = vpack.c.b16 %v674, %v672
        %vm683 = vcmask 261120
        %v685 = vsel %vm683, %v659, 0
        %v688 = vsel %vm683, %v660, 0
        %v691 = vsel %vm683, %v661, 0
        %v694 = vsel %vm683, %v662, 0
        %696 = vmatprep.subr.bf16.mxu0 %v676
        %697 = vmatpush1.bf16.msra.mxu0 %v675
        %698 = vmatprep.subr.bf16.mxu0 %v678
        %699 = vmatpush1.bf16.msra.mxu0 %v677
        %700 = vmatprep.subr.bf16.mxu0 0
        %701 = vmatpush1.bf16.msra.mxu0 0
        %702 = vmatprep.subr.bf16.mxu0 0
        %703 = vmatpush1.bf16.msra.mxu0 0
        %704 = vmatprep.subr.bf16.mxu0 0
        %705 = vmatpush1.bf16.msra.mxu0 0
        %706 = vmatprep.subr.bf16.mxu0 0
        %707 = vmatpush1.bf16.msra.mxu0 0
        %708 = vmatprep.subr.bf16.mxu0 0
        %709 = vmatpush1.bf16.msra.mxu0 0
        %710 = vmatprep.subr.bf16.mxu0 0
        %711 = vmatpush1.bf16.msra.mxu0 0
        %712 = vmatprep.subr.bf16.mxu0 0
        %713 = vmatpush1.bf16.msra.mxu0 0
        %714 = vmatprep.subr.bf16.mxu0 0
        %715 = vmatpush1.bf16.msra.mxu0 0
        %716 = vmatprep.subr.bf16.mxu0 0
        %717 = vmatpush1.bf16.msra.mxu0 0
        %718 = vmatprep.subr.bf16.mxu0 0
        %719 = vmatpush1.bf16.msra.mxu0 0
        %720 = vmatprep.subr.bf16.mxu0 0
        %721 = vmatpush1.bf16.msra.mxu0 0
        %722 = vmatprep.subr.bf16.mxu0 0
        %723 = vmatpush1.bf16.msra.mxu0 0
        %724 = vmatprep.subr.bf16.mxu0 0
        %725 = vmatpush1.bf16.msra.mxu0 0
        %726 = vmatprep.subr.bf16.mxu0 0
        %727 = vmatpush1.bf16.msra.mxu0 0
        %728 = vmatprep.mubr.bf16.mxu0 0
        %729 = vmatmul.mubr.bf16.gmra.mrb[0].mxu0 %v685
        %v730 = vpop.f32.mrb[0].mxu0
        %v731 = vadd.f32 %v572, %v730
        %v732 = vpop.f32.mrb[0].mxu0
        %v733 = vadd.f32 %v572, %v732
        %v734 = vpop.f32.mrb[0].mxu0
        %v735 = vadd.f32 %v577, %v734
        %v736 = vpop.f32.mrb[0].mxu0
        %v737 = vadd.f32 %v577, %v736
        %738 = vmatprep.mubr.bf16.mxu0 0
        %739 = vmatmul.mubr.bf16.gmra.mrb[0].mxu0 %v688
        %v740 = vpop.f32.mrb[0].mxu0
        %v741 = vadd.f32 %v582, %v740
        %v742 = vpop.f32.mrb[0].mxu0
        %v743 = vadd.f32 %v582, %v742
        %v744 = vpop.f32.mrb[0].mxu0
        %v745 = vadd.f32 %v587, %v744
        %v746 = vpop.f32.mrb[0].mxu0
        %v747 = vadd.f32 %v587, %v746
        %748 = vmatprep.mubr.bf16.mxu0 0
        %749 = vmatmul.mubr.bf16.gmra.mrb[0].mxu0 %v691
        %v750 = vpop.f32.mrb[0].mxu0
        %v751 = vadd.f32 %v592, %v750
        %v752 = vpop.f32.mrb[0].mxu0
        %v753 = vadd.f32 %v592, %v752
        %v754 = vpop.f32.mrb[0].mxu0
        %v755 = vadd.f32 %v597, %v754
        %v756 = vpop.f32.mrb[0].mxu0
        %v757 = vadd.f32 %v597, %v756
        %758 = vmatprep.mubr.bf16.mxu0 0
        %759 = vmatmul.mubr.bf16.gmra.mrb[0].mxu0 %v694
        %v760 = vpop.f32.mrb[0].mxu0
        %v761 = vadd.f32 %v602, %v760
        %v762 = vpop.f32.mrb[0].mxu0
        %v763 = vadd.f32 %v602, %v762
        %v764 = vpop.f32.mrb[0].mxu0
        %v765 = vadd.f32 %v607, %v764
        %v766 = vpop.f32.mrb[0].mxu0
        %v767 = vadd.f32 %v607, %v766
        %768 = vdwg.mxu0
        %v769 = vmax.f32 %v731, 0.0
        %v770 = vmax.f32 %v733, 0.0
        %v771 = vmax.f32 %v735, 0.0
        %v772 = vmax.f32 %v737, 0.0
        %v773 = vmax.f32 %v741, 0.0
        %v774 = vmax.f32 %v743, 0.0
        %v775 = vmax.f32 %v745, 0.0
        %v776 = vmax.f32 %v747, 0.0
        %v777 = vmax.f32 %v751, 0.0
        %v778 = vmax.f32 %v753, 0.0
        %v779 = vmax.f32 %v755, 0.0
        %v780 = vmax.f32 %v757, 0.0
        %v781 = vmax.f32 %v761, 0.0
        %v782 = vmax.f32 %v763, 0.0
        %v783 = vmax.f32 %v765, 0.0
        %v784 = vmax.f32 %v767, 0.0
        %v785 = vand.u32 2147483647, %v731
        %v786 = vand.u32 2147483647, %v733
        %v787 = vand.u32 2147483647, %v735
        %v788 = vand.u32 2147483647, %v737
        %v789 = vand.u32 2147483647, %v741
        %v790 = vand.u32 2147483647, %v743
        %v791 = vand.u32 2147483647, %v745
        %v792 = vand.u32 2147483647, %v747
        %v793 = vand.u32 2147483647, %v751
        %v794 = vand.u32 2147483647, %v753
        %v795 = vand.u32 2147483647, %v755
        %v796 = vand.u32 2147483647, %v757
        %v797 = vand.u32 2147483647, %v761
        %v798 = vand.u32 2147483647, %v763
        %v799 = vand.u32 2147483647, %v765
        %v800 = vand.u32 2147483647, %v767
        %v801 = vsub.f32 0.0, %v785
        %v802 = vsub.f32 0.0, %v786
        %v803 = vsub.f32 0.0, %v787
        %v804 = vsub.f32 0.0, %v788
        %v805 = vsub.f32 0.0, %v789
        %v806 = vsub.f32 0.0, %v790
        %v807 = vsub.f32 0.0, %v791
        %v808 = vsub.f32 0.0, %v792
        %v809 = vsub.f32 0.0, %v793
        %v810 = vsub.f32 0.0, %v794
        %v811 = vsub.f32 0.0, %v795
        %v812 = vsub.f32 0.0, %v796
        %v813 = vsub.f32 0.0, %v797
        %v814 = vsub.f32 0.0, %v798
        %v815 = vsub.f32 0.0, %v799
        %v816 = vsub.f32 0.0, %v800
        %v817 = vmul.f32 %v801, 1.442695
        %v818 = vpow.pop %v817
        %v819 = vmul.f32 %v802, 1.442695
        %v820 = vpow.pop %v819
        %v821 = vmul.f32 %v803, 1.442695
        %v822 = vpow.pop %v821
        %v823 = vmul.f32 %v804, 1.442695
        %v824 = vpow.pop %v823
        %v825 = vmul.f32 %v805, 1.442695
        %v826 = vpow.pop %v825
        %v827 = vmul.f32 %v806, 1.442695
        %v828 = vpow.pop %v827
        %v829 = vmul.f32 %v807, 1.442695
        %v830 = vpow.pop %v829
        %v831 = vmul.f32 %v808, 1.442695
        %v832 = vpow.pop %v831
        %v833 = vmul.f32 %v809, 1.442695
        %v834 = vpow.pop %v833
        %v835 = vmul.f32 %v810, 1.442695
        %v836 = vpow.pop %v835
        %v837 = vmul.f32 %v811, 1.442695
        %v838 = vpow.pop %v837
        %v839 = vmul.f32 %v812, 1.442695
        %v840 = vpow.pop %v839
        %v841 = vmul.f32 %v813, 1.442695
        %v842 = vpow.pop %v841
        %v843 = vmul.f32 %v814, 1.442695
        %v844 = vpow.pop %v843
        %v845 = vmul.f32 %v815, 1.442695
        %v846 = vpow.pop %v845
        %v847 = vmul.f32 %v816, 1.442695
        %v848 = vpow.pop %v847
        %v849 = vadd.f32 %v818, 1.0
        %v850 = vlog2.pop %v849
        %v851 = vmul.f32 %v850, 0.6931472
        %v852 = vmul.f32 -0.5, %v818
        %v853 = vadd.f32 %v852, 1.0
        %v854 = vmul.f32 %v853, %v818
        %v855 = vand.u32 2147483647, %v818
        %vm856 = vcmp.lt.f32.partialorder %v855, 0.0004427343
        %v857 = vsel %vm856, %v854, %v851
        %v858 = vadd.f32 %v820, 1.0
        %v859 = vlog2.pop %v858
        %v860 = vmul.f32 %v859, 0.6931472
        %v861 = vmul.f32 -0.5, %v820
        %v862 = vadd.f32 %v861, 1.0
        %v863 = vmul.f32 %v862, %v820
        %v864 = vand.u32 2147483647, %v820
        %vm865 = vcmp.lt.f32.partialorder %v864, 0.0004427343
        %v866 = vsel %vm865, %v863, %v860
        %v867 = vadd.f32 %v822, 1.0
        %v868 = vlog2.pop %v867
        %v869 = vmul.f32 %v868, 0.6931472
        %v870 = vmul.f32 -0.5, %v822
        %v871 = vadd.f32 %v870, 1.0
        %v872 = vmul.f32 %v871, %v822
        %v873 = vand.u32 2147483647, %v822
        %vm874 = vcmp.lt.f32.partialorder %v873, 0.0004427343
        %v875 = vsel %vm874, %v872, %v869
        %v876 = vadd.f32 %v824, 1.0
        %v877 = vlog2.pop %v876
        %v878 = vmul.f32 %v877, 0.6931472
        %v879 = vmul.f32 -0.5, %v824
        %v880 = vadd.f32 %v879, 1.0
        %v881 = vmul.f32 %v880, %v824
        %v882 = vand.u32 2147483647, %v824
        %vm883 = vcmp.lt.f32.partialorder %v882, 0.0004427343
        %v884 = vsel %vm883, %v881, %v878
        %v885 = vadd.f32 %v826, 1.0
        %v886 = vlog2.pop %v885
        %v887 = vmul.f32 %v886, 0.6931472
        %v888 = vmul.f32 -0.5, %v826
        %v889 = vadd.f32 %v888, 1.0
        %v890 = vmul.f32 %v889, %v826
        %v891 = vand.u32 2147483647, %v826
        %vm892 = vcmp.lt.f32.partialorder %v891, 0.0004427343
        %v893 = vsel %vm892, %v890, %v887
        %v894 = vadd.f32 %v828, 1.0
        %v895 = vlog2.pop %v894
        %v896 = vmul.f32 %v895, 0.6931472
        %v897 = vmul.f32 -0.5, %v828
        %v898 = vadd.f32 %v897, 1.0
        %v899 = vmul.f32 %v898, %v828
        %v900 = vand.u32 2147483647, %v828
        %vm901 = vcmp.lt.f32.partialorder %v900, 0.0004427343
        %v902 = vsel %vm901, %v899, %v896
        %v903 = vadd.f32 %v830, 1.0
        %v904 = vlog2.pop %v903
        %v905 = vmul.f32 %v904, 0.6931472
        %v906 = vmul.f32 -0.5, %v830
        %v907 = vadd.f32 %v906, 1.0
        %v908 = vmul.f32 %v907, %v830
        %v909 = vand.u32 2147483647, %v830
        %vm910 = vcmp.lt.f32.partialorder %v909, 0.0004427343
        %v911 = vsel %vm910, %v908, %v905
        %v912 = vadd.f32 %v832, 1.0
        %v913 = vlog2.pop %v912
        %v914 = vmul.f32 %v913, 0.6931472
        %v915 = vmul.f32 -0.5, %v832
        %v916 = vadd.f32 %v915, 1.0
        %v917 = vmul.f32 %v916, %v832
        %v918 = vand.u32 2147483647, %v832
        %vm919 = vcmp.lt.f32.partialorder %v918, 0.0004427343
        %v920 = vsel %vm919, %v917, %v914
        %v921 = vadd.f32 %v834, 1.0
        %v922 = vlog2.pop %v921
        %v923 = vmul.f32 %v922, 0.6931472
        %v924 = vmul.f32 -0.5, %v834
        %v925 = vadd.f32 %v924, 1.0
        %v926 = vmul.f32 %v925, %v834
        %v927 = vand.u32 2147483647, %v834
        %vm928 = vcmp.lt.f32.partialorder %v927, 0.0004427343
        %v929 = vsel %vm928, %v926, %v923
        %v930 = vadd.f32 %v836, 1.0
        %v931 = vlog2.pop %v930
        %v932 = vmul.f32 %v931, 0.6931472
        %v933 = vmul.f32 -0.5, %v836
        %v934 = vadd.f32 %v933, 1.0
        %v935 = vmul.f32 %v934, %v836
        %v936 = vand.u32 2147483647, %v836
        %vm937 = vcmp.lt.f32.partialorder %v936, 0.0004427343
        %v938 = vsel %vm937, %v935, %v932
        %v939 = vadd.f32 %v838, 1.0
        %v940 = vlog2.pop %v939
        %v941 = vmul.f32 %v940, 0.6931472
        %v942 = vmul.f32 -0.5, %v838
        %v943 = vadd.f32 %v942, 1.0
        %v944 = vmul.f32 %v943, %v838
        %v945 = vand.u32 2147483647, %v838
        %vm946 = vcmp.lt.f32.partialorder %v945, 0.0004427343
        %v947 = vsel %vm946, %v944, %v941
        %v948 = vadd.f32 %v840, 1.0
        %v949 = vlog2.pop %v948
        %v950 = vmul.f32 %v949, 0.6931472
        %v951 = vmul.f32 -0.5, %v840
        %v952 = vadd.f32 %v951, 1.0
        %v953 = vmul.f32 %v952, %v840
        %v954 = vand.u32 2147483647, %v840
        %vm955 = vcmp.lt.f32.partialorder %v954, 0.0004427343
        %v956 = vsel %vm955, %v953, %v950
        %v957 = vadd.f32 %v842, 1.0
        %v958 = vlog2.pop %v957
        %v959 = vmul.f32 %v958, 0.6931472
        %v960 = vmul.f32 -0.5, %v842
        %v961 = vadd.f32 %v960, 1.0
        %v962 = vmul.f32 %v961, %v842
        %v963 = vand.u32 2147483647, %v842
        %vm964 = vcmp.lt.f32.partialorder %v963, 0.0004427343
        %v965 = vsel %vm964, %v962, %v959
        %v966 = vadd.f32 %v844, 1.0
        %v967 = vlog2.pop %v966
        %v968 = vmul.f32 %v967, 0.6931472
        %v969 = vmul.f32 -0.5, %v844
        %v970 = vadd.f32 %v969, 1.0
        %v971 = vmul.f32 %v970, %v844
        %v972 = vand.u32 2147483647, %v844
        %vm973 = vcmp.lt.f32.partialorder %v972, 0.0004427343
        %v974 = vsel %vm973, %v971, %v968
        %v975 = vadd.f32 %v846, 1.0
        %v976 = vlog2.pop %v975
        %v977 = vmul.f32 %v976, 0.6931472
        %v978 = vmul.f32 -0.5, %v846
        %v979 = vadd.f32 %v978, 1.0
        %v980 = vmul.f32 %v979, %v846
        %v981 = vand.u32 2147483647, %v846
        %vm982 = vcmp.lt.f32.partialorder %v981, 0.0004427343
        %v983 = vsel %vm982, %v980, %v977
        %v984 = vadd.f32 %v848, 1.0
        %v985 = vlog2.pop %v984
        %v986 = vmul.f32 %v985, 0.6931472
        %v987 = vmul.f32 -0.5, %v848
        %v988 = vadd.f32 %v987, 1.0
        %v989 = vmul.f32 %v988, %v848
        %v990 = vand.u32 2147483647, %v848
        %vm991 = vcmp.lt.f32.partialorder %v990, 0.0004427343
        %v992 = vsel %vm991, %v989, %v986
        %v993 = vadd.f32 %v769, %v857
        %v994 = vadd.f32 %v770, %v866
        %v995 = vadd.f32 %v771, %v875
        %v996 = vadd.f32 %v772, %v884
        %v997 = vadd.f32 %v773, %v893
        %v998 = vadd.f32 %v774, %v902
        %v999 = vadd.f32 %v775, %v911
        %v1000 = vadd.f32 %v776, %v920
        %v1001 = vadd.f32 %v777, %v929
        %v1002 = vadd.f32 %v778, %v938
        %v1003 = vadd.f32 %v779, %v947
        %v1004 = vadd.f32 %v780, %v956
        %v1005 = vadd.f32 %v781, %v965
        %v1006 = vadd.f32 %v782, %v974
        %v1007 = vadd.f32 %v783, %v983
        %v1008 = vadd.f32 %v784, %v992
        %vm1009 = vcmask 523264
        %v1011 = vsel %vm1009, %v556, 0
        %v1014 = vsel %vm1009, %v557, 0
        %v1017 = vsel %vm1009, %v558, 0
        %v1020 = vsel %vm1009, %v559, 0
        %v1023 = vsel %vm1009, %v560, 0
        %1025 = vmatprep.subr.mxu0 %v994
        %1026 = vmatpush1.msra.mxu0 %v993
        %1027 = vmatprep.subr.mxu0 %v996
        %1028 = vmatpush1.msra.mxu0 %v995
        %1029 = vmatprep.subr.mxu0 %v998
        %1030 = vmatpush1.msra.mxu0 %v997
        %1031 = vmatprep.subr.mxu0 %v1000
        %1032 = vmatpush1.msra.mxu0 %v999
        %1033 = vmatprep.subr.mxu0 %v1002
        %1034 = vmatpush1.msra.mxu0 %v1001
        %1035 = vmatprep.subr.mxu0 %v1004
        %1036 = vmatpush1.msra.mxu0 %v1003
        %1037 = vmatprep.subr.mxu0 %v1006
        %1038 = vmatpush1.msra.mxu0 %v1005
        %1039 = vmatprep.subr.mxu0 %v1008
        %1040 = vmatpush1.msra.mxu0 %v1007
        %1041 = vmatprep.subr.mxu0 0.0
        %1042 = vmatpush1.msra.mxu0 0.0
        %1043 = vmatprep.subr.mxu0 0.0
        %1044 = vmatpush1.msra.mxu0 0.0
        %1045 = vmatprep.subr.mxu0 0.0
        %1046 = vmatpush1.msra.mxu0 0.0
        %1047 = vmatprep.subr.mxu0 0.0
        %1048 = vmatpush1.msra.mxu0 0.0
        %1049 = vmatprep.subr.mxu0 0.0
        %1050 = vmatpush1.msra.mxu0 0.0
        %1051 = vmatprep.subr.mxu0 0.0
        %1052 = vmatpush1.msra.mxu0 0.0
        %1053 = vmatprep.subr.mxu0 0.0
        %1054 = vmatpush1.msra.mxu0 0.0
        %1055 = vmatprep.subr.mxu0 0.0
        %1056 = vmatpush1.msra.mxu0 0.0
        %1057 = vmatprep.subr.mxu0 0.0
        %1058 = vmatpush1.msra.mxu0 0.0
        %1059 = vmatprep.subr.mxu0 0.0
        %1060 = vmatpush1.msra.mxu0 0.0
        %1061 = vmatprep.subr.mxu0 0.0
        %1062 = vmatpush1.msra.mxu0 0.0
        %1063 = vmatprep.subr.mxu0 0.0
        %1064 = vmatpush1.msra.mxu0 0.0
        %1065 = vmatprep.subr.mxu0 0.0
        %1066 = vmatpush1.msra.mxu0 0.0
        %1067 = vmatprep.subr.mxu0 0.0
        %1068 = vmatpush1.msra.mxu0 0.0
        %1069 = vmatprep.subr.mxu0 0.0
        %1070 = vmatpush1.msra.mxu0 0.0
        %1071 = vmatprep.subr.mxu0 0.0
        %1072 = vmatpush1.msra.mxu0 0.0
        %1073 = vmatprep.subr.mxu0 0.0
        %1074 = vmatpush1.msra.mxu0 0.0
        %1075 = vmatprep.subr.mxu0 0.0
        %1076 = vmatpush1.msra.mxu0 0.0
        %1077 = vmatprep.subr.mxu0 0.0
        %1078 = vmatpush1.msra.mxu0 0.0
        %1079 = vmatprep.subr.mxu0 0.0
        %1080 = vmatpush1.msra.mxu0 0.0
        %1081 = vmatprep.subr.mxu0 0.0
        %1082 = vmatpush1.msra.mxu0 0.0
        %1083 = vmatprep.subr.mxu0 0.0
        %1084 = vmatpush1.msra.mxu0 0.0
        %1085 = vmatprep.subr.mxu0 0.0
        %1086 = vmatpush1.msra.mxu0 0.0
        %1087 = vmatprep.subr.mxu0 0.0
        %1088 = vmatpush1.msra.mxu0 0.0
        %1089 = vmatprep.mubr.f32.mxu0 0.0
        %1090 = vmatmul.mubr.f32.gmra.mrb[0].mxu0 %v1011
        %v1091 = vpop.f32.mrb[0].mxu0
        %v1092 = vadd.f32 %v617, %v1091
        %v1093 = vpop.f32.mrb[0].mxu0
        %v1094 = vadd.f32 %v617, %v1093
        %1095 = vmatprep.mubr.f32.mxu0 0.0
        %1096 = vmatmul.mubr.f32.gmra.mrb[0].mxu0 %v1014
        %v1097 = vpop.f32.mrb[0].mxu0
        %v1098 = vadd.f32 %v622, %v1097
        %v1099 = vpop.f32.mrb[0].mxu0
        %v1100 = vadd.f32 %v622, %v1099
        %1101 = vmatprep.mubr.f32.mxu0 0.0
        %1102 = vmatmul.mubr.f32.gmra.mrb[0].mxu0 %v1017
        %v1103 = vpop.f32.mrb[0].mxu0
        %v1104 = vadd.f32 %v627, %v1103
        %v1105 = vpop.f32.mrb[0].mxu0
        %v1106 = vadd.f32 %v627, %v1105
        %1107 = vmatprep.mubr.f32.mxu0 0.0
        %1108 = vmatmul.mubr.f32.gmra.mrb[0].mxu0 %v1020
        %v1109 = vpop.f32.mrb[0].mxu0
        %v1110 = vadd.f32 %v632, %v1109
        %v1111 = vpop.f32.mrb[0].mxu0
        %v1112 = vadd.f32 %v632, %v1111
        %1113 = vmatprep.mubr.f32.mxu0 0.0
        %1114 = vmatmul.mubr.f32.gmra.mrb[0].mxu0 %v1023
        %v1115 = vpop.f32.mrb[0].mxu0
        %v1116 = vadd.f32 %v637, %v1115
        %v1117 = vpop.f32.mrb[0].mxu0
        %v1118 = vadd.f32 %v637, %v1117
        %1119 = vdwg.mxu0
        %s1120 = sld [smem:[#allocation4]]
        %s1121 = ssub.f32 0.0, %s1120
        %v1122 = vmax.f32 %v1116, 0.0
        %v1123 = vmax.f32 %v1118, 0.0
        %v1124 = vstv %s1121
        %v1125 = vmul.f32 %v1124, %v1122
        %v1126 = vmul.f32 %v1124, %v1123
        %v1127 = vmul.f32 %v1125, 1.442695
        %v1128 = vpow.pop %v1127
        %v1129 = vmul.f32 %v1126, 1.442695
        %v1130 = vpow.pop %v1129
        %v1131 = vsub.f32 1.0, %v1128
        %v1132 = vsub.f32 1.0, %v1130
        %v1133 = vlaneseq
        %v1134 = vshrl.u32 %v1133, 7
        %v1135 = vsub.s32 0, %v1134
        %v1136 = vrot.slane %v1131, %v1135
        %v1137 = vlaneseq
        %v1138 = vshrl.u32 %v1137, 7
        %v1139 = vsub.s32 0, %v1138
        %v1140 = vrot.slane %v1132, %v1139
        %v1141 = vmul.f32 %v1136, %v1092
        %v1142 = vmul.f32 %v1140, %v1094
        %v1143 = vmul.f32 %v1136, %v1098
        %v1144 = vmul.f32 %v1140, %v1100
        %v1145 = vmul.f32 %v1136, %v1104
        %v1146 = vmul.f32 %v1140, %v1106
        %v1147 = vmul.f32 %v1136, %v1110
        %v1148 = vmul.f32 %v1140, %v1112
        %v1149 = vadd.f32 %v1141, 0.0
        %v1150 = vadd.f32 %v1142, 0.0
        %v1151 = vadd.f32 %v1143, 0.0
        %v1152 = vadd.f32 %v1144, 0.0
        %v1153 = vadd.f32 %v1145, 0.0
        %v1154 = vadd.f32 %v1146, 0.0
        %v1155 = vadd.f32 %v1147, 0.0
        %v1156 = vadd.f32 %v1148, 0.0
        %s1157 = sld [smem:[#allocation2]]
        %v1158 = vstv %s1157
        %v1159 = vmul.f32 %v1131, %v1158
        %v1160 = vmul.f32 %v1132, %v1158
        %v1161 = vadd.f32 %v1159, 0.0
        %v1162 = vadd.f32 %v1160, 0.0
        %v1163 = vsub.f32 1.0, %v1131
        %v1164 = vsub.f32 1.0, %v1132
        %v1165 = vadd.f32 %v1163, 1e-10
        %v1166 = vadd.f32 %v1164, 1e-10
        %s1167 = scalar_lea.vmem %s502, 32 [#allocation6]
        %v1168 = vld [vmem:[%s1167] sm:$0xff]
        %v1169 = vld [vmem:[%s1167 + $0x8] sm:$0xff]
        %v1170 = vld [vmem:[%s1167 + $0x10] sm:$0xff]
        %v1171 = vld [vmem:[%s1167 + $0x18] sm:$0xff]
        %v1176 = vunpack.c.l.b16 %v1168
        %v1177 = vunpack.c.h.b16 %v1168
        %v1178 = vunpack.c.l.b16 %v1169
        %v1179 = vunpack.c.h.b16 %v1169
        %v1180 = vunpack.c.l.b16 %v1170
        %v1181 = vunpack.c.h.b16 %v1170
        %v1182 = vunpack.c.l.b16 %v1171
        %v1183 = vunpack.c.h.b16 %v1171
        %v1184 = vpack.c.b16 %v1178, %v1176
        %v1185 = vpack.c.b16 %v1179, %v1177
        %v1186 = vpack.c.b16 %v1182, %v1180
        %v1187 = vpack.c.b16 %v1183, %v1181
        %1192 = vmatprep.subr.bf16.mxu0 %v1185
        %1193 = vmatpush1.bf16.msra.mxu0 %v1184
        %1194 = vmatprep.subr.bf16.mxu0 %v1187
        %1195 = vmatpush1.bf16.msra.mxu0 %v1186
        %1196 = vmatprep.subr.bf16.mxu0 0
        %1197 = vmatpush1.bf16.msra.mxu0 0
        %1198 = vmatprep.subr.bf16.mxu0 0
        %1199 = vmatpush1.bf16.msra.mxu0 0
        %1200 = vmatprep.subr.bf16.mxu0 0
        %1201 = vmatpush1.bf16.msra.mxu0 0
        %1202 = vmatprep.subr.bf16.mxu0 0
        %1203 = vmatpush1.bf16.msra.mxu0 0
        %1204 = vmatprep.subr.bf16.mxu0 0
        %1205 = vmatpush1.bf16.msra.mxu0 0
        %1206 = vmatprep.subr.bf16.mxu0 0
        %1207 = vmatpush1.bf16.msra.mxu0 0
        %1208 = vmatprep.subr.bf16.mxu0 0
        %1209 = vmatpush1.bf16.msra.mxu0 0
        %1210 = vmatprep.subr.bf16.mxu0 0
        %1211 = vmatpush1.bf16.msra.mxu0 0
        %1212 = vmatprep.subr.bf16.mxu0 0
        %1213 = vmatpush1.bf16.msra.mxu0 0
        %1214 = vmatprep.subr.bf16.mxu0 0
        %1215 = vmatpush1.bf16.msra.mxu0 0
        %1216 = vmatprep.subr.bf16.mxu0 0
        %1217 = vmatpush1.bf16.msra.mxu0 0
        %1218 = vmatprep.subr.bf16.mxu0 0
        %1219 = vmatpush1.bf16.msra.mxu0 0
        %1220 = vmatprep.subr.bf16.mxu0 0
        %1221 = vmatpush1.bf16.msra.mxu0 0
        %1222 = vmatprep.subr.bf16.mxu0 0
        %1223 = vmatpush1.bf16.msra.mxu0 0
        %1224 = vmatprep.mubr.bf16.mxu0 0
        %1225 = vmatmul.mubr.bf16.gmra.mrb[0].mxu0 %v685
        %v1226 = vpop.f32.mrb[0].mxu0
        %v1227 = vadd.f32 %v572, %v1226
        %v1228 = vpop.f32.mrb[0].mxu0
        %v1229 = vadd.f32 %v572, %v1228
        %v1230 = vpop.f32.mrb[0].mxu0
        %v1231 = vadd.f32 %v577, %v1230
        %v1232 = vpop.f32.mrb[0].mxu0
        %v1233 = vadd.f32 %v577, %v1232
        %1234 = vmatprep.mubr.bf16.mxu0 0
        %1235 = vmatmul.mubr.bf16.gmra.mrb[0].mxu0 %v688
        %v1236 = vpop.f32.mrb[0].mxu0
        %v1237 = vadd.f32 %v582, %v1236
        %v1238 = vpop.f32.mrb[0].mxu0
        %v1239 = vadd.f32 %v582, %v1238
        %v1240 = vpop.f32.mrb[0].mxu0
        %v1241 = vadd.f32 %v587, %v1240
        %v1242 = vpop.f32.mrb[0].mxu0
        %v1243 = vadd.f32 %v587, %v1242
        %1244 = vmatprep.mubr.bf16.mxu0 0
        %1245 = vmatmul.mubr.bf16.gmra.mrb[0].mxu0 %v691
        %v1246 = vpop.f32.mrb[0].mxu0
        %v1247 = vadd.f32 %v592, %v1246
        %v1248 = vpop.f32.mrb[0].mxu0
        %v1249 = vadd.f32 %v592, %v1248
        %v1250 = vpop.f32.mrb[0].mxu0
        %v1251 = vadd.f32 %v597, %v1250
        %v1252 = vpop.f32.mrb[0].mxu0
        %v1253 = vadd.f32 %v597, %v1252
        %1254 = vmatprep.mubr.bf16.mxu0 0
        %1255 = vmatmul.mubr.bf16.gmra.mrb[0].mxu0 %v694
        %v1256 = vpop.f32.mrb[0].mxu0
        %v1257 = vadd.f32 %v602, %v1256
        %v1258 = vpop.f32.mrb[0].mxu0
        %v1259 = vadd.f32 %v602, %v1258
        %v1260 = vpop.f32.mrb[0].mxu0
        %v1261 = vadd.f32 %v607, %v1260
        %v1262 = vpop.f32.mrb[0].mxu0
        %v1263 = vadd.f32 %v607, %v1262
        %1264 = vdwg.mxu0
        %v1265 = vmax.f32 %v1227, 0.0
        %v1266 = vmax.f32 %v1229, 0.0
        %v1267 = vmax.f32 %v1231, 0.0
        %v1268 = vmax.f32 %v1233, 0.0
        %v1269 = vmax.f32 %v1237, 0.0
        %v1270 = vmax.f32 %v1239, 0.0
        %v1271 = vmax.f32 %v1241, 0.0
        %v1272 = vmax.f32 %v1243, 0.0
        %v1273 = vmax.f32 %v1247, 0.0
        %v1274 = vmax.f32 %v1249, 0.0
        %v1275 = vmax.f32 %v1251, 0.0
        %v1276 = vmax.f32 %v1253, 0.0
        %v1277 = vmax.f32 %v1257, 0.0
        %v1278 = vmax.f32 %v1259, 0.0
        %v1279 = vmax.f32 %v1261, 0.0
        %v1280 = vmax.f32 %v1263, 0.0
        %v1281 = vand.u32 2147483647, %v1227
        %v1282 = vand.u32 2147483647, %v1229
        %v1283 = vand.u32 2147483647, %v1231
        %v1284 = vand.u32 2147483647, %v1233
        %v1285 = vand.u32 2147483647, %v1237
        %v1286 = vand.u32 2147483647, %v1239
        %v1287 = vand.u32 2147483647, %v1241
        %v1288 = vand.u32 2147483647, %v1243
        %v1289 = vand.u32 2147483647, %v1247
        %v1290 = vand.u32 2147483647, %v1249
        %v1291 = vand.u32 2147483647, %v1251
        %v1292 = vand.u32 2147483647, %v1253
        %v1293 = vand.u32 2147483647, %v1257
        %v1294 = vand.u32 2147483647, %v1259
        %v1295 = vand.u32 2147483647, %v1261
        %v1296 = vand.u32 2147483647, %v1263
        %v1297 = vsub.f32 0.0, %v1281
        %v1298 = vsub.f32 0.0, %v1282
        %v1299 = vsub.f32 0.0, %v1283
        %v1300 = vsub.f32 0.0, %v1284
        %v1301 = vsub.f32 0.0, %v1285
        %v1302 = vsub.f32 0.0, %v1286
        %v1303 = vsub.f32 0.0, %v1287
        %v1304 = vsub.f32 0.0, %v1288
        %v1305 = vsub.f32 0.0, %v1289
        %v1306 = vsub.f32 0.0, %v1290
        %v1307 = vsub.f32 0.0, %v1291
        %v1308 = vsub.f32 0.0, %v1292
        %v1309 = vsub.f32 0.0, %v1293
        %v1310 = vsub.f32 0.0, %v1294
        %v1311 = vsub.f32 0.0, %v1295
        %v1312 = vsub.f32 0.0, %v1296
        %v1313 = vmul.f32 %v1297, 1.442695
        %v1314 = vpow.pop %v1313
        %v1315 = vmul.f32 %v1298, 1.442695
        %v1316 = vpow.pop %v1315
        %v1317 = vmul.f32 %v1299, 1.442695
        %v1318 = vpow.pop %v1317
        %v1319 = vmul.f32 %v1300, 1.442695
        %v1320 = vpow.pop %v1319
        %v1321 = vmul.f32 %v1301, 1.442695
        %v1322 = vpow.pop %v1321
        %v1323 = vmul.f32 %v1302, 1.442695
        %v1324 = vpow.pop %v1323
        %v1325 = vmul.f32 %v1303, 1.442695
        %v1326 = vpow.pop %v1325
        %v1327 = vmul.f32 %v1304, 1.442695
        %v1328 = vpow.pop %v1327
        %v1329 = vmul.f32 %v1305, 1.442695
        %v1330 = vpow.pop %v1329
        %v1331 = vmul.f32 %v1306, 1.442695
        %v1332 = vpow.pop %v1331
        %v1333 = vmul.f32 %v1307, 1.442695
        %v1334 = vpow.pop %v1333
        %v1335 = vmul.f32 %v1308, 1.442695
        %v1336 = vpow.pop %v1335
        %v1337 = vmul.f32 %v1309, 1.442695
        %v1338 = vpow.pop %v1337
        %v1339 = vmul.f32 %v1310, 1.442695
        %v1340 = vpow.pop %v1339
        %v1341 = vmul.f32 %v1311, 1.442695
        %v1342 = vpow.pop %v1341
        %v1343 = vmul.f32 %v1312, 1.442695
        %v1344 = vpow.pop %v1343
        %v1345 = vadd.f32 %v1314, 1.0
        %v1346 = vlog2.pop %v1345
        %v1347 = vmul.f32 %v1346, 0.6931472
        %v1348 = vmul.f32 -0.5, %v1314
        %v1349 = vadd.f32 %v1348, 1.0
        %v1350 = vmul.f32 %v1349, %v1314
        %v1351 = vand.u32 2147483647, %v1314
        %vm1352 = vcmp.lt.f32.partialorder %v1351, 0.0004427343
        %v1353 = vsel %vm1352, %v1350, %v1347
        %v1354 = vadd.f32 %v1316, 1.0
        %v1355 = vlog2.pop %v1354
        %v1356 = vmul.f32 %v1355, 0.6931472
        %v1357 = vmul.f32 -0.5, %v1316
        %v1358 = vadd.f32 %v1357, 1.0
        %v1359 = vmul.f32 %v1358, %v1316
        %v1360 = vand.u32 2147483647, %v1316
        %vm1361 = vcmp.lt.f32.partialorder %v1360, 0.0004427343
        %v1362 = vsel %vm1361, %v1359, %v1356
        %v1363 = vadd.f32 %v1318, 1.0
        %v1364 = vlog2.pop %v1363
        %v1365 = vmul.f32 %v1364, 0.6931472
        %v1366 = vmul.f32 -0.5, %v1318
        %v1367 = vadd.f32 %v1366, 1.0
        %v1368 = vmul.f32 %v1367, %v1318
        %v1369 = vand.u32 2147483647, %v1318
        %vm1370 = vcmp.lt.f32.partialorder %v1369, 0.0004427343
        %v1371 = vsel %vm1370, %v1368, %v1365
        %v1372 = vadd.f32 %v1320, 1.0
        %v1373 = vlog2.pop %v1372
        %v1374 = vmul.f32 %v1373, 0.6931472
        %v1375 = vmul.f32 -0.5, %v1320
        %v1376 = vadd.f32 %v1375, 1.0
        %v1377 = vmul.f32 %v1376, %v1320
        %v1378 = vand.u32 2147483647, %v1320
        %vm1379 = vcmp.lt.f32.partialorder %v1378, 0.0004427343
        %v1380 = vsel %vm1379, %v1377, %v1374
        %v1381 = vadd.f32 %v1322, 1.0
        %v1382 = vlog2.pop %v1381
        %v1383 = vmul.f32 %v1382, 0.6931472
        %v1384 = vmul.f32 -0.5, %v1322
        %v1385 = vadd.f32 %v1384, 1.0
        %v1386 = vmul.f32 %v1385, %v1322
        %v1387 = vand.u32 2147483647, %v1322
        %vm1388 = vcmp.lt.f32.partialorder %v1387, 0.0004427343
        %v1389 = vsel %vm1388, %v1386, %v1383
        %v1390 = vadd.f32 %v1324, 1.0
        %v1391 = vlog2.pop %v1390
        %v1392 = vmul.f32 %v1391, 0.6931472
        %v1393 = vmul.f32 -0.5, %v1324
        %v1394 = vadd.f32 %v1393, 1.0
        %v1395 = vmul.f32 %v1394, %v1324
        %v1396 = vand.u32 2147483647, %v1324
        %vm1397 = vcmp.lt.f32.partialorder %v1396, 0.0004427343
        %v1398 = vsel %vm1397, %v1395, %v1392
        %v1399 = vadd.f32 %v1326, 1.0
        %v1400 = vlog2.pop %v1399
        %v1401 = vmul.f32 %v1400, 0.6931472
        %v1402 = vmul.f32 -0.5, %v1326
        %v1403 = vadd.f32 %v1402, 1.0
        %v1404 = vmul.f32 %v1403, %v1326
        %v1405 = vand.u32 2147483647, %v1326
        %vm1406 = vcmp.lt.f32.partialorder %v1405, 0.0004427343
        %v1407 = vsel %vm1406, %v1404, %v1401
        %v1408 = vadd.f32 %v1328, 1.0
        %v1409 = vlog2.pop %v1408
        %v1410 = vmul.f32 %v1409, 0.6931472
        %v1411 = vmul.f32 -0.5, %v1328
        %v1412 = vadd.f32 %v1411, 1.0
        %v1413 = vmul.f32 %v1412, %v1328
        %v1414 = vand.u32 2147483647, %v1328
        %vm1415 = vcmp.lt.f32.partialorder %v1414, 0.0004427343
        %v1416 = vsel %vm1415, %v1413, %v1410
        %v1417 = vadd.f32 %v1330, 1.0
        %v1418 = vlog2.pop %v1417
        %v1419 = vmul.f32 %v1418, 0.6931472
        %v1420 = vmul.f32 -0.5, %v1330
        %v1421 = vadd.f32 %v1420, 1.0
        %v1422 = vmul.f32 %v1421, %v1330
        %v1423 = vand.u32 2147483647, %v1330
        %vm1424 = vcmp.lt.f32.partialorder %v1423, 0.0004427343
        %v1425 = vsel %vm1424, %v1422, %v1419
        %v1426 = vadd.f32 %v1332, 1.0
        %v1427 = vlog2.pop %v1426
        %v1428 = vmul.f32 %v1427, 0.6931472
        %v1429 = vmul.f32 -0.5, %v1332
        %v1430 = vadd.f32 %v1429, 1.0
        %v1431 = vmul.f32 %v1430, %v1332
        %v1432 = vand.u32 2147483647, %v1332
        %vm1433 = vcmp.lt.f32.partialorder %v1432, 0.0004427343
        %v1434 = vsel %vm1433, %v1431, %v1428
        %v1435 = vadd.f32 %v1334, 1.0
        %v1436 = vlog2.pop %v1435
        %v1437 = vmul.f32 %v1436, 0.6931472
        %v1438 = vmul.f32 -0.5, %v1334
        %v1439 = vadd.f32 %v1438, 1.0
        %v1440 = vmul.f32 %v1439, %v1334
        %v1441 = vand.u32 2147483647, %v1334
        %vm1442 = vcmp.lt.f32.partialorder %v1441, 0.0004427343
        %v1443 = vsel %vm1442, %v1440, %v1437
        %v1444 = vadd.f32 %v1336, 1.0
        %v1445 = vlog2.pop %v1444
        %v1446 = vmul.f32 %v1445, 0.6931472
        %v1447 = vmul.f32 -0.5, %v1336
        %v1448 = vadd.f32 %v1447, 1.0
        %v1449 = vmul.f32 %v1448, %v1336
        %v1450 = vand.u32 2147483647, %v1336
        %vm1451 = vcmp.lt.f32.partialorder %v1450, 0.0004427343
        %v1452 = vsel %vm1451, %v1449, %v1446
        %v1453 = vadd.f32 %v1338, 1.0
        %v1454 = vlog2.pop %v1453
        %v1455 = vmul.f32 %v1454, 0.6931472
        %v1456 = vmul.f32 -0.5, %v1338
        %v1457 = vadd.f32 %v1456, 1.0
        %v1458 = vmul.f32 %v1457, %v1338
        %v1459 = vand.u32 2147483647, %v1338
        %vm1460 = vcmp.lt.f32.partialorder %v1459, 0.0004427343
        %v1461 = vsel %vm1460, %v1458, %v1455
        %v1462 = vadd.f32 %v1340, 1.0
        %v1463 = vlog2.pop %v1462
        %v1464 = vmul.f32 %v1463, 0.6931472
        %v1465 = vmul.f32 -0.5, %v1340
        %v1466 = vadd.f32 %v1465, 1.0
        %v1467 = vmul.f32 %v1466, %v1340
        %v1468 = vand.u32 2147483647, %v1340
        %vm1469 = vcmp.lt.f32.partialorder %v1468, 0.0004427343
        %v1470 = vsel %vm1469, %v1467, %v1464
        %v1471 = vadd.f32 %v1342, 1.0
        %v1472 = vlog2.pop %v1471
        %v1473 = vmul.f32 %v1472, 0.6931472
        %v1474 = vmul.f32 -0.5, %v1342
        %v1475 = vadd.f32 %v1474, 1.0
        %v1476 = vmul.f32 %v1475, %v1342
        %v1477 = vand.u32 2147483647, %v1342
        %vm1478 = vcmp.lt.f32.partialorder %v1477, 0.0004427343
        %v1479 = vsel %vm1478, %v1476, %v1473
        %v1480 = vadd.f32 %v1344, 1.0
        %v1481 = vlog2.pop %v1480
        %v1482 = vmul.f32 %v1481, 0.6931472
        %v1483 = vmul.f32 -0.5, %v1344
        %v1484 = vadd.f32 %v1483, 1.0
        %v1485 = vmul.f32 %v1484, %v1344
        %v1486 = vand.u32 2147483647, %v1344
        %vm1487 = vcmp.lt.f32.partialorder %v1486, 0.0004427343
        %v1488 = vsel %vm1487, %v1485, %v1482
        %v1489 = vadd.f32 %v1265, %v1353
        %v1490 = vadd.f32 %v1266, %v1362
        %v1491 = vadd.f32 %v1267, %v1371
        %v1492 = vadd.f32 %v1268, %v1380
        %v1493 = vadd.f32 %v1269, %v1389
        %v1494 = vadd.f32 %v1270, %v1398
        %v1495 = vadd.f32 %v1271, %v1407
        %v1496 = vadd.f32 %v1272, %v1416
        %v1497 = vadd.f32 %v1273, %v1425
        %v1498 = vadd.f32 %v1274, %v1434
        %v1499 = vadd.f32 %v1275, %v1443
        %v1500 = vadd.f32 %v1276, %v1452
        %v1501 = vadd.f32 %v1277, %v1461
        %v1502 = vadd.f32 %v1278, %v1470
        %v1503 = vadd.f32 %v1279, %v1479
        %v1504 = vadd.f32 %v1280, %v1488
        %1505 = vmatprep.subr.mxu0 %v1490
        %1506 = vmatpush1.msra.mxu0 %v1489
        %1507 = vmatprep.subr.mxu0 %v1492
        %1508 = vmatpush1.msra.mxu0 %v1491
        %1509 = vmatprep.subr.mxu0 %v1494
        %1510 = vmatpush1.msra.mxu0 %v1493
        %1511 = vmatprep.subr.mxu0 %v1496
        %1512 = vmatpush1.msra.mxu0 %v1495
        %1513 = vmatprep.subr.mxu0 %v1498
        %1514 = vmatpush1.msra.mxu0 %v1497
        %1515 = vmatprep.subr.mxu0 %v1500
        %1516 = vmatpush1.msra.mxu0 %v1499
        %1517 = vmatprep.subr.mxu0 %v1502
        %1518 = vmatpush1.msra.mxu0 %v1501
        %1519 = vmatprep.subr.mxu0 %v1504
        %1520 = vmatpush1.msra.mxu0 %v1503
        %1521 = vmatprep.subr.mxu0 0.0
        %1522 = vmatpush1.msra.mxu0 0.0
        %1523 = vmatprep.subr.mxu0 0.0
        %1524 = vmatpush1.msra.mxu0 0.0
        %1525 = vmatprep.subr.mxu0 0.0
        %1526 = vmatpush1.msra.mxu0 0.0
        %1527 = vmatprep.subr.mxu0 0.0
        %1528 = vmatpush1.msra.mxu0 0.0
        %1529 = vmatprep.subr.mxu0 0.0
        %1530 = vmatpush1.msra.mxu0 0.0
        %1531 = vmatprep.subr.mxu0 0.0
        %1532 = vmatpush1.msra.mxu0 0.0
        %1533 = vmatprep.subr.mxu0 0.0
        %1534 = vmatpush1.msra.mxu0 0.0
        %1535 = vmatprep.subr.mxu0 0.0
        %1536 = vmatpush1.msra.mxu0 0.0
        %1537 = vmatprep.subr.mxu0 0.0
        %1538 = vmatpush1.msra.mxu0 0.0
        %1539 = vmatprep.subr.mxu0 0.0
        %1540 = vmatpush1.msra.mxu0 0.0
        %1541 = vmatprep.subr.mxu0 0.0
        %1542 = vmatpush1.msra.mxu0 0.0
        %1543 = vmatprep.subr.mxu0 0.0
        %1544 = vmatpush1.msra.mxu0 0.0
        %1545 = vmatprep.subr.mxu0 0.0
        %1546 = vmatpush1.msra.mxu0 0.0
        %1547 = vmatprep.subr.mxu0 0.0
        %1548 = vmatpush1.msra.mxu0 0.0
        %1549 = vmatprep.subr.mxu0 0.0
        %1550 = vmatpush1.msra.mxu0 0.0
        %1551 = vmatprep.subr.mxu0 0.0
        %1552 = vmatpush1.msra.mxu0 0.0
        %1553 = vmatprep.subr.mxu0 0.0
        %1554 = vmatpush1.msra.mxu0 0.0
        %1555 = vmatprep.subr.mxu0 0.0
        %1556 = vmatpush1.msra.mxu0 0.0
        %1557 = vmatprep.subr.mxu0 0.0
        %1558 = vmatpush1.msra.mxu0 0.0
        %1559 = vmatprep.subr.mxu0 0.0
        %1560 = vmatpush1.msra.mxu0 0.0
        %1561 = vmatprep.subr.mxu0 0.0
        %1562 = vmatpush1.msra.mxu0 0.0
        %1563 = vmatprep.subr.mxu0 0.0
        %1564 = vmatpush1.msra.mxu0 0.0
        %1565 = vmatprep.subr.mxu0 0.0
        %1566 = vmatpush1.msra.mxu0 0.0
        %1567 = vmatprep.subr.mxu0 0.0
        %1568 = vmatpush1.msra.mxu0 0.0
        %1569 = vmatprep.mubr.f32.mxu0 0.0
        %1570 = vmatmul.mubr.f32.gmra.mrb[0].mxu0 %v1011
        %v1571 = vpop.f32.mrb[0].mxu0
        %v1572 = vadd.f32 %v617, %v1571
        %v1573 = vpop.f32.mrb[0].mxu0
        %v1574 = vadd.f32 %v617, %v1573
        %1575 = vmatprep.mubr.f32.mxu0 0.0
        %1576 = vmatmul.mubr.f32.gmra.mrb[0].mxu0 %v1014
        %v1577 = vpop.f32.mrb[0].mxu0
        %v1578 = vadd.f32 %v622, %v1577
        %v1579 = vpop.f32.mrb[0].mxu0
        %v1580 = vadd.f32 %v622, %v1579
        %1581 = vmatprep.mubr.f32.mxu0 0.0
        %1582 = vmatmul.mubr.f32.gmra.mrb[0].mxu0 %v1017
        %v1583 = vpop.f32.mrb[0].mxu0
        %v1584 = vadd.f32 %v627, %v1583
        %v1585 = vpop.f32.mrb[0].mxu0
        %v1586 = vadd.f32 %v627, %v1585
        %1587 = vmatprep.mubr.f32.mxu0 0.0
        %1588 = vmatmul.mubr.f32.gmra.mrb[0].mxu0 %v1020
        %v1589 = vpop.f32.mrb[0].mxu0
        %v1590 = vadd.f32 %v632, %v1589
        %v1591 = vpop.f32.mrb[0].mxu0
        %v1592 = vadd.f32 %v632, %v1591
        %1593 = vmatprep.mubr.f32.mxu0 0.0
        %1594 = vmatmul.mubr.f32.gmra.mrb[0].mxu0 %v1023
        %v1595 = vpop.f32.mrb[0].mxu0
        %v1596 = vadd.f32 %v637, %v1595
        %v1597 = vpop.f32.mrb[0].mxu0
        %v1598 = vadd.f32 %v637, %v1597
        %1599 = vdwg.mxu0
        %s1600 = sld [smem:[#allocation4 + $0x1]]
        %s1601 = ssub.f32 0.0, %s1600
        %v1602 = vmax.f32 %v1596, 0.0
        %v1603 = vmax.f32 %v1598, 0.0
        %v1604 = vstv %s1601
        %v1605 = vmul.f32 %v1604, %v1602
        %v1606 = vmul.f32 %v1604, %v1603
        %v1607 = vmul.f32 %v1605, 1.442695
        %v1608 = vpow.pop %v1607
        %v1609 = vmul.f32 %v1606, 1.442695
        %v1610 = vpow.pop %v1609
        %v1611 = vsub.f32 1.0, %v1608
        %v1612 = vsub.f32 1.0, %v1610
        %v1613 = vmul.f32 %v1611, %v1165
        %v1614 = vmul.f32 %v1612, %v1166
        %v1615 = vlaneseq
        %v1616 = vshrl.u32 %v1615, 7
        %v1617 = vsub.s32 0, %v1616
        %v1618 = vrot.slane %v1613, %v1617
        %v1619 = vlaneseq
        %v1620 = vshrl.u32 %v1619, 7
        %v1621 = vsub.s32 0, %v1620
        %v1622 = vrot.slane %v1614, %v1621
        %v1623 = vmul.f32 %v1618, %v1572
        %v1624 = vmul.f32 %v1622, %v1574
        %v1625 = vmul.f32 %v1618, %v1578
        %v1626 = vmul.f32 %v1622, %v1580
        %v1627 = vmul.f32 %v1618, %v1584
        %v1628 = vmul.f32 %v1622, %v1586
        %v1629 = vmul.f32 %v1618, %v1590
        %v1630 = vmul.f32 %v1622, %v1592
        %v1631 = vadd.f32 %v1149, %v1623
        %v1632 = vadd.f32 %v1150, %v1624
        %v1633 = vadd.f32 %v1151, %v1625
        %v1634 = vadd.f32 %v1152, %v1626
        %v1635 = vadd.f32 %v1153, %v1627
        %v1636 = vadd.f32 %v1154, %v1628
        %v1637 = vadd.f32 %v1155, %v1629
        %v1638 = vadd.f32 %v1156, %v1630
        %s1639 = sld [smem:[#allocation2 + $0x1]]
        %v1640 = vstv %s1639
        %v1641 = vmul.f32 %v1613, %v1640
        %v1642 = vmul.f32 %v1614, %v1640
        %v1643 = vadd.f32 %v1161, %v1641
        %v1644 = vadd.f32 %v1162, %v1642
        %v1645 = vsub.f32 1.0, %v1611
        %v1646 = vsub.f32 1.0, %v1612
        %v1647 = vadd.f32 %v1645, 1e-10
        %v1648 = vadd.f32 %v1646, 1e-10
        %v1649 = vmul.f32 %v1165, %v1647
        %v1650 = vmul.f32 %v1166, %v1648
        %s1651 = scalar_lea.vmem %s502, 64 [#allocation6]
        %v1652 = vld [vmem:[%s1651] sm:$0xff]
        %v1653 = vld [vmem:[%s1651 + $0x8] sm:$0xff]
        %v1654 = vld [vmem:[%s1651 + $0x10] sm:$0xff]
        %v1655 = vld [vmem:[%s1651 + $0x18] sm:$0xff]
        %v1660 = vunpack.c.l.b16 %v1652
        %v1661 = vunpack.c.h.b16 %v1652
        %v1662 = vunpack.c.l.b16 %v1653
        %v1663 = vunpack.c.h.b16 %v1653
        %v1664 = vunpack.c.l.b16 %v1654
        %v1665 = vunpack.c.h.b16 %v1654
        %v1666 = vunpack.c.l.b16 %v1655
        %v1667 = vunpack.c.h.b16 %v1655
        %v1668 = vpack.c.b16 %v1662, %v1660
        %v1669 = vpack.c.b16 %v1663, %v1661
        %v1670 = vpack.c.b16 %v1666, %v1664
        %v1671 = vpack.c.b16 %v1667, %v1665
        %1676 = vmatprep.subr.bf16.mxu0 %v1669
        %1677 = vmatpush1.bf16.msra.mxu0 %v1668
        %1678 = vmatprep.subr.bf16.mxu0 %v1671
        %1679 = vmatpush1.bf16.msra.mxu0 %v1670
        %1680 = vmatprep.subr.bf16.mxu0 0
        %1681 = vmatpush1.bf16.msra.mxu0 0
        %1682 = vmatprep.subr.bf16.mxu0 0
        %1683 = vmatpush1.bf16.msra.mxu0 0
        %1684 = vmatprep.subr.bf16.mxu0 0
        %1685 = vmatpush1.bf16.msra.mxu0 0
        %1686 = vmatprep.subr.bf16.mxu0 0
        %1687 = vmatpush1.bf16.msra.mxu0 0
        %1688 = vmatprep.subr.bf16.mxu0 0
        %1689 = vmatpush1.bf16.msra.mxu0 0
        %1690 = vmatprep.subr.bf16.mxu0 0
        %1691 = vmatpush1.bf16.msra.mxu0 0
        %1692 = vmatprep.subr.bf16.mxu0 0
        %1693 = vmatpush1.bf16.msra.mxu0 0
        %1694 = vmatprep.subr.bf16.mxu0 0
        %1695 = vmatpush1.bf16.msra.mxu0 0
        %1696 = vmatprep.subr.bf16.mxu0 0
        %1697 = vmatpush1.bf16.msra.mxu0 0
        %1698 = vmatprep.subr.bf16.mxu0 0
        %1699 = vmatpush1.bf16.msra.mxu0 0
        %1700 = vmatprep.subr.bf16.mxu0 0
        %1701 = vmatpush1.bf16.msra.mxu0 0
        %1702 = vmatprep.subr.bf16.mxu0 0
        %1703 = vmatpush1.bf16.msra.mxu0 0
        %1704 = vmatprep.subr.bf16.mxu0 0
        %1705 = vmatpush1.bf16.msra.mxu0 0
        %1706 = vmatprep.subr.bf16.mxu0 0
        %1707 = vmatpush1.bf16.msra.mxu0 0
        %1708 = vmatprep.mubr.bf16.mxu0 0
        %1709 = vmatmul.mubr.bf16.gmra.mrb[0].mxu0 %v685
        %v1710 = vpop.f32.mrb[0].mxu0
        %v1711 = vadd.f32 %v572, %v1710
        %v1712 = vpop.f32.mrb[0].mxu0
        %v1713 = vadd.f32 %v572, %v1712
        %v1714 = vpop.f32.mrb[0].mxu0
        %v1715 = vadd.f32 %v577, %v1714
        %v1716 = vpop.f32.mrb[0].mxu0
        %v1717 = vadd.f32 %v577, %v1716
        %1718 = vmatprep.mubr.bf16.mxu0 0
        %1719 = vmatmul.mubr.bf16.gmra.mrb[0].mxu0 %v688
        %v1720 = vpop.f32.mrb[0].mxu0
        %v1721 = vadd.f32 %v582, %v1720
        %v1722 = vpop.f32.mrb[0].mxu0
        %v1723 = vadd.f32 %v582, %v1722
        %v1724 = vpop.f32.mrb[0].mxu0
        %v1725 = vadd.f32 %v587, %v1724
        %v1726 = vpop.f32.mrb[0].mxu0
        %v1727 = vadd.f32 %v587, %v1726
        %1728 = vmatprep.mubr.bf16.mxu0 0
        %1729 = vmatmul.mubr.bf16.gmra.mrb[0].mxu0 %v691
        %v1730 = vpop.f32.mrb[0].mxu0
        %v1731 = vadd.f32 %v592, %v1730
        %v1732 = vpop.f32.mrb[0].mxu0
        %v1733 = vadd.f32 %v592, %v1732
        %v1734 = vpop.f32.mrb[0].mxu0
        %v1735 = vadd.f32 %v597, %v1734
        %v1736 = vpop.f32.mrb[0].mxu0
        %v1737 = vadd.f32 %v597, %v1736
        %1738 = vmatprep.mubr.bf16.mxu0 0
        %1739 = vmatmul.mubr.bf16.gmra.mrb[0].mxu0 %v694
        %v1740 = vpop.f32.mrb[0].mxu0
        %v1741 = vadd.f32 %v602, %v1740
        %v1742 = vpop.f32.mrb[0].mxu0
        %v1743 = vadd.f32 %v602, %v1742
        %v1744 = vpop.f32.mrb[0].mxu0
        %v1745 = vadd.f32 %v607, %v1744
        %v1746 = vpop.f32.mrb[0].mxu0
        %v1747 = vadd.f32 %v607, %v1746
        %1748 = vdwg.mxu0
        %v1749 = vmax.f32 %v1711, 0.0
        %v1750 = vmax.f32 %v1713, 0.0
        %v1751 = vmax.f32 %v1715, 0.0
        %v1752 = vmax.f32 %v1717, 0.0
        %v1753 = vmax.f32 %v1721, 0.0
        %v1754 = vmax.f32 %v1723, 0.0
        %v1755 = vmax.f32 %v1725, 0.0
        %v1756 = vmax.f32 %v1727, 0.0
        %v1757 = vmax.f32 %v1731, 0.0
        %v1758 = vmax.f32 %v1733, 0.0
        %v1759 = vmax.f32 %v1735, 0.0
        %v1760 = vmax.f32 %v1737, 0.0
        %v1761 = vmax.f32 %v1741, 0.0
        %v1762 = vmax.f32 %v1743, 0.0
        %v1763 = vmax.f32 %v1745, 0.0
        %v1764 = vmax.f32 %v1747, 0.0
        %v1765 = vand.u32 2147483647, %v1711
        %v1766 = vand.u32 2147483647, %v1713
        %v1767 = vand.u32 2147483647, %v1715
        %v1768 = vand.u32 2147483647, %v1717
        %v1769 = vand.u32 2147483647, %v1721
        %v1770 = vand.u32 2147483647, %v1723
        %v1771 = vand.u32 2147483647, %v1725
        %v1772 = vand.u32 2147483647, %v1727
        %v1773 = vand.u32 2147483647, %v1731
        %v1774 = vand.u32 2147483647, %v1733
        %v1775 = vand.u32 2147483647, %v1735
        %v1776 = vand.u32 2147483647, %v1737
        %v1777 = vand.u32 2147483647, %v1741
        %v1778 = vand.u32 2147483647, %v1743
        %v1779 = vand.u32 2147483647, %v1745
        %v1780 = vand.u32 2147483647, %v1747
        %v1781 = vsub.f32 0.0, %v1765
        %v1782 = vsub.f32 0.0, %v1766
        %v1783 = vsub.f32 0.0, %v1767
        %v1784 = vsub.f32 0.0, %v1768
        %v1785 = vsub.f32 0.0, %v1769
        %v1786 = vsub.f32 0.0, %v1770
        %v1787 = vsub.f32 0.0, %v1771
        %v1788 = vsub.f32 0.0, %v1772
        %v1789 = vsub.f32 0.0, %v1773
        %v1790 = vsub.f32 0.0, %v1774
        %v1791 = vsub.f32 0.0, %v1775
        %v1792 = vsub.f32 0.0, %v1776
        %v1793 = vsub.f32 0.0, %v1777
        %v1794 = vsub.f32 0.0, %v1778
        %v1795 = vsub.f32 0.0, %v1779
        %v1796 = vsub.f32 0.0, %v1780
        %v1797 = vmul.f32 %v1781, 1.442695
        %v1798 = vpow.pop %v1797
        %v1799 = vmul.f32 %v1782, 1.442695
        %v1800 = vpow.pop %v1799
        %v1801 = vmul.f32 %v1783, 1.442695
        %v1802 = vpow.pop %v1801
        %v1803 = vmul.f32 %v1784, 1.442695
        %v1804 = vpow.pop %v1803
        %v1805 = vmul.f32 %v1785, 1.442695
        %v1806 = vpow.pop %v1805
        %v1807 = vmul.f32 %v1786, 1.442695
        %v1808 = vpow.pop %v1807
        %v1809 = vmul.f32 %v1787, 1.442695
        %v1810 = vpow.pop %v1809
        %v1811 = vmul.f32 %v1788, 1.442695
        %v1812 = vpow.pop %v1811
        %v1813 = vmul.f32 %v1789, 1.442695
        %v1814 = vpow.pop %v1813
        %v1815 = vmul.f32 %v1790, 1.442695
        %v1816 = vpow.pop %v1815
        %v1817 = vmul.f32 %v1791, 1.442695
        %v1818 = vpow.pop %v1817
        %v1819 = vmul.f32 %v1792, 1.442695
        %v1820 = vpow.pop %v1819
        %v1821 = vmul.f32 %v1793, 1.442695
        %v1822 = vpow.pop %v1821
        %v1823 = vmul.f32 %v1794, 1.442695
        %v1824 = vpow.pop %v1823
        %v1825 = vmul.f32 %v1795, 1.442695
        %v1826 = vpow.pop %v1825
        %v1827 = vmul.f32 %v1796, 1.442695
        %v1828 = vpow.pop %v1827
        %v1829 = vadd.f32 %v1798, 1.0
        %v1830 = vlog2.pop %v1829
        %v1831 = vmul.f32 %v1830, 0.6931472
        %v1832 = vmul.f32 -0.5, %v1798
        %v1833 = vadd.f32 %v1832, 1.0
        %v1834 = vmul.f32 %v1833, %v1798
        %v1835 = vand.u32 2147483647, %v1798
        %vm1836 = vcmp.lt.f32.partialorder %v1835, 0.0004427343
        %v1837 = vsel %vm1836, %v1834, %v1831
        %v1838 = vadd.f32 %v1800, 1.0
        %v1839 = vlog2.pop %v1838
        %v1840 = vmul.f32 %v1839, 0.6931472
        %v1841 = vmul.f32 -0.5, %v1800
        %v1842 = vadd.f32 %v1841, 1.0
        %v1843 = vmul.f32 %v1842, %v1800
        %v1844 = vand.u32 2147483647, %v1800
        %vm1845 = vcmp.lt.f32.partialorder %v1844, 0.0004427343
        %v1846 = vsel %vm1845, %v1843, %v1840
        %v1847 = vadd.f32 %v1802, 1.0
        %v1848 = vlog2.pop %v1847
        %v1849 = vmul.f32 %v1848, 0.6931472
        %v1850 = vmul.f32 -0.5, %v1802
        %v1851 = vadd.f32 %v1850, 1.0
        %v1852 = vmul.f32 %v1851, %v1802
        %v1853 = vand.u32 2147483647, %v1802
        %vm1854 = vcmp.lt.f32.partialorder %v1853, 0.0004427343
        %v1855 = vsel %vm1854, %v1852, %v1849
        %v1856 = vadd.f32 %v1804, 1.0
        %v1857 = vlog2.pop %v1856
        %v1858 = vmul.f32 %v1857, 0.6931472
        %v1859 = vmul.f32 -0.5, %v1804
        %v1860 = vadd.f32 %v1859, 1.0
        %v1861 = vmul.f32 %v1860, %v1804
        %v1862 = vand.u32 2147483647, %v1804
        %vm1863 = vcmp.lt.f32.partialorder %v1862, 0.0004427343
        %v1864 = vsel %vm1863, %v1861, %v1858
        %v1865 = vadd.f32 %v1806, 1.0
        %v1866 = vlog2.pop %v1865
        %v1867 = vmul.f32 %v1866, 0.6931472
        %v1868 = vmul.f32 -0.5, %v1806
        %v1869 = vadd.f32 %v1868, 1.0
        %v1870 = vmul.f32 %v1869, %v1806
        %v1871 = vand.u32 2147483647, %v1806
        %vm1872 = vcmp.lt.f32.partialorder %v1871, 0.0004427343
        %v1873 = vsel %vm1872, %v1870, %v1867
        %v1874 = vadd.f32 %v1808, 1.0
        %v1875 = vlog2.pop %v1874
        %v1876 = vmul.f32 %v1875, 0.6931472
        %v1877 = vmul.f32 -0.5, %v1808
        %v1878 = vadd.f32 %v1877, 1.0
        %v1879 = vmul.f32 %v1878, %v1808
        %v1880 = vand.u32 2147483647, %v1808
        %vm1881 = vcmp.lt.f32.partialorder %v1880, 0.0004427343
        %v1882 = vsel %vm1881, %v1879, %v1876
        %v1883 = vadd.f32 %v1810, 1.0
        %v1884 = vlog2.pop %v1883
        %v1885 = vmul.f32 %v1884, 0.6931472
        %v1886 = vmul.f32 -0.5, %v1810
        %v1887 = vadd.f32 %v1886, 1.0
        %v1888 = vmul.f32 %v1887, %v1810
        %v1889 = vand.u32 2147483647, %v1810
        %vm1890 = vcmp.lt.f32.partialorder %v1889, 0.0004427343
        %v1891 = vsel %vm1890, %v1888, %v1885
        %v1892 = vadd.f32 %v1812, 1.0
        %v1893 = vlog2.pop %v1892
        %v1894 = vmul.f32 %v1893, 0.6931472
        %v1895 = vmul.f32 -0.5, %v1812
        %v1896 = vadd.f32 %v1895, 1.0
        %v1897 = vmul.f32 %v1896, %v1812
        %v1898 = vand.u32 2147483647, %v1812
        %vm1899 = vcmp.lt.f32.partialorder %v1898, 0.0004427343
        %v1900 = vsel %vm1899, %v1897, %v1894
        %v1901 = vadd.f32 %v1814, 1.0
        %v1902 = vlog2.pop %v1901
        %v1903 = vmul.f32 %v1902, 0.6931472
        %v1904 = vmul.f32 -0.5, %v1814
        %v1905 = vadd.f32 %v1904, 1.0
        %v1906 = vmul.f32 %v1905, %v1814
        %v1907 = vand.u32 2147483647, %v1814
        %vm1908 = vcmp.lt.f32.partialorder %v1907, 0.0004427343
        %v1909 = vsel %vm1908, %v1906, %v1903
        %v1910 = vadd.f32 %v1816, 1.0
        %v1911 = vlog2.pop %v1910
        %v1912 = vmul.f32 %v1911, 0.6931472
        %v1913 = vmul.f32 -0.5, %v1816
        %v1914 = vadd.f32 %v1913, 1.0
        %v1915 = vmul.f32 %v1914, %v1816
        %v1916 = vand.u32 2147483647, %v1816
        %vm1917 = vcmp.lt.f32.partialorder %v1916, 0.0004427343
        %v1918 = vsel %vm1917, %v1915, %v1912
        %v1919 = vadd.f32 %v1818, 1.0
        %v1920 = vlog2.pop %v1919
        %v1921 = vmul.f32 %v1920, 0.6931472
        %v1922 = vmul.f32 -0.5, %v1818
        %v1923 = vadd.f32 %v1922, 1.0
        %v1924 = vmul.f32 %v1923, %v1818
        %v1925 = vand.u32 2147483647, %v1818
        %vm1926 = vcmp.lt.f32.partialorder %v1925, 0.0004427343
        %v1927 = vsel %vm1926, %v1924, %v1921
        %v1928 = vadd.f32 %v1820, 1.0
        %v1929 = vlog2.pop %v1928
        %v1930 = vmul.f32 %v1929, 0.6931472
        %v1931 = vmul.f32 -0.5, %v1820
        %v1932 = vadd.f32 %v1931, 1.0
        %v1933 = vmul.f32 %v1932, %v1820
        %v1934 = vand.u32 2147483647, %v1820
        %vm1935 = vcmp.lt.f32.partialorder %v1934, 0.0004427343
        %v1936 = vsel %vm1935, %v1933, %v1930
        %v1937 = vadd.f32 %v1822, 1.0
        %v1938 = vlog2.pop %v1937
        %v1939 = vmul.f32 %v1938, 0.6931472
        %v1940 = vmul.f32 -0.5, %v1822
        %v1941 = vadd.f32 %v1940, 1.0
        %v1942 = vmul.f32 %v1941, %v1822
        %v1943 = vand.u32 2147483647, %v1822
        %vm1944 = vcmp.lt.f32.partialorder %v1943, 0.0004427343
        %v1945 = vsel %vm1944, %v1942, %v1939
        %v1946 = vadd.f32 %v1824, 1.0
        %v1947 = vlog2.pop %v1946
        %v1948 = vmul.f32 %v1947, 0.6931472
        %v1949 = vmul.f32 -0.5, %v1824
        %v1950 = vadd.f32 %v1949, 1.0
        %v1951 = vmul.f32 %v1950, %v1824
        %v1952 = vand.u32 2147483647, %v1824
        %vm1953 = vcmp.lt.f32.partialorder %v1952, 0.0004427343
        %v1954 = vsel %vm1953, %v1951, %v1948
        %v1955 = vadd.f32 %v1826, 1.0
        %v1956 = vlog2.pop %v1955
        %v1957 = vmul.f32 %v1956, 0.6931472
        %v1958 = vmul.f32 -0.5, %v1826
        %v1959 = vadd.f32 %v1958, 1.0
        %v1960 = vmul.f32 %v1959, %v1826
        %v1961 = vand.u32 2147483647, %v1826
        %vm1962 = vcmp.lt.f32.partialorder %v1961, 0.0004427343
        %v1963 = vsel %vm1962, %v1960, %v1957
        %v1964 = vadd.f32 %v1828, 1.0
        %v1965 = vlog2.pop %v1964
        %v1966 = vmul.f32 %v1965, 0.6931472
        %v1967 = vmul.f32 -0.5, %v1828
        %v1968 = vadd.f32 %v1967, 1.0
        %v1969 = vmul.f32 %v1968, %v1828
        %v1970 = vand.u32 2147483647, %v1828
        %vm1971 = vcmp.lt.f32.partialorder %v1970, 0.0004427343
        %v1972 = vsel %vm1971, %v1969, %v1966
        %v1973 = vadd.f32 %v1749, %v1837
        %v1974 = vadd.f32 %v1750, %v1846
        %v1975 = vadd.f32 %v1751, %v1855
        %v1976 = vadd.f32 %v1752, %v1864
        %v1977 = vadd.f32 %v1753, %v1873
        %v1978 = vadd.f32 %v1754, %v1882
        %v1979 = vadd.f32 %v1755, %v1891
        %v1980 = vadd.f32 %v1756, %v1900
        %v1981 = vadd.f32 %v1757, %v1909
        %v1982 = vadd.f32 %v1758, %v1918
        %v1983 = vadd.f32 %v1759, %v1927
        %v1984 = vadd.f32 %v1760, %v1936
        %v1985 = vadd.f32 %v1761, %v1945
        %v1986 = vadd.f32 %v1762, %v1954
        %v1987 = vadd.f32 %v1763, %v1963
        %v1988 = vadd.f32 %v1764, %v1972
        %1989 = vmatprep.subr.mxu0 %v1974
        %1990 = vmatpush1.msra.mxu0 %v1973
        %1991 = vmatprep.subr.mxu0 %v1976
        %1992 = vmatpush1.msra.mxu0 %v1975
        %1993 = vmatprep.subr.mxu0 %v1978
        %1994 = vmatpush1.msra.mxu0 %v1977
        %1995 = vmatprep.subr.mxu0 %v1980
        %1996 = vmatpush1.msra.mxu0 %v1979
        %1997 = vmatprep.subr.mxu0 %v1982
        %1998 = vmatpush1.msra.mxu0 %v1981
        %1999 = vmatprep.subr.mxu0 %v1984
        %2000 = vmatpush1.msra.mxu0 %v1983
        %2001 = vmatprep.subr.mxu0 %v1986
        %2002 = vmatpush1.msra.mxu0 %v1985
        %2003 = vmatprep.subr.mxu0 %v1988
        %2004 = vmatpush1.msra.mxu0 %v1987
        %2005 = vmatprep.subr.mxu0 0.0
        %2006 = vmatpush1.msra.mxu0 0.0
        %2007 = vmatprep.subr.mxu0 0.0
        %2008 = vmatpush1.msra.mxu0 0.0
        %2009 = vmatprep.subr.mxu0 0.0
        %2010 = vmatpush1.msra.mxu0 0.0
        %2011 = vmatprep.subr.mxu0 0.0
        %2012 = vmatpush1.msra.mxu0 0.0
        %2013 = vmatprep.subr.mxu0 0.0
        %2014 = vmatpush1.msra.mxu0 0.0
        %2015 = vmatprep.subr.mxu0 0.0
        %2016 = vmatpush1.msra.mxu0 0.0
        %2017 = vmatprep.subr.mxu0 0.0
        %2018 = vmatpush1.msra.mxu0 0.0
        %2019 = vmatprep.subr.mxu0 0.0
        %2020 = vmatpush1.msra.mxu0 0.0
        %2021 = vmatprep.subr.mxu0 0.0
        %2022 = vmatpush1.msra.mxu0 0.0
        %2023 = vmatprep.subr.mxu0 0.0
        %2024 = vmatpush1.msra.mxu0 0.0
        %2025 = vmatprep.subr.mxu0 0.0
        %2026 = vmatpush1.msra.mxu0 0.0
        %2027 = vmatprep.subr.mxu0 0.0
        %2028 = vmatpush1.msra.mxu0 0.0
        %2029 = vmatprep.subr.mxu0 0.0
        %2030 = vmatpush1.msra.mxu0 0.0
        %2031 = vmatprep.subr.mxu0 0.0
        %2032 = vmatpush1.msra.mxu0 0.0
        %2033 = vmatprep.subr.mxu0 0.0
        %2034 = vmatpush1.msra.mxu0 0.0
        %2035 = vmatprep.subr.mxu0 0.0
        %2036 = vmatpush1.msra.mxu0 0.0
        %2037 = vmatprep.subr.mxu0 0.0
        %2038 = vmatpush1.msra.mxu0 0.0
        %2039 = vmatprep.subr.mxu0 0.0
        %2040 = vmatpush1.msra.mxu0 0.0
        %2041 = vmatprep.subr.mxu0 0.0
        %2042 = vmatpush1.msra.mxu0 0.0
        %2043 = vmatprep.subr.mxu0 0.0
        %2044 = vmatpush1.msra.mxu0 0.0
        %2045 = vmatprep.subr.mxu0 0.0
        %2046 = vmatpush1.msra.mxu0 0.0
        %2047 = vmatprep.subr.mxu0 0.0
        %2048 = vmatpush1.msra.mxu0 0.0
        %2049 = vmatprep.subr.mxu0 0.0
        %2050 = vmatpush1.msra.mxu0 0.0
        %2051 = vmatprep.subr.mxu0 0.0
        %2052 = vmatpush1.msra.mxu0 0.0
        %2053 = vmatprep.mubr.f32.mxu0 0.0
        %2054 = vmatmul.mubr.f32.gmra.mrb[0].mxu0 %v1011
        %v2055 = vpop.f32.mrb[0].mxu0
        %v2056 = vadd.f32 %v617, %v2055
        %v2057 = vpop.f32.mrb[0].mxu0
        %v2058 = vadd.f32 %v617, %v2057
        %2059 = vmatprep.mubr.f32.mxu0 0.0
        %2060 = vmatmul.mubr.f32.gmra.mrb[0].mxu0 %v1014
        %v2061 = vpop.f32.mrb[0].mxu0
        %v2062 = vadd.f32 %v622, %v2061
        %v2063 = vpop.f32.mrb[0].mxu0
        %v2064 = vadd.f32 %v622, %v2063
        %2065 = vmatprep.mubr.f32.mxu0 0.0
        %2066 = vmatmul.mubr.f32.gmra.mrb[0].mxu0 %v1017
        %v2067 = vpop.f32.mrb[0].mxu0
        %v2068 = vadd.f32 %v627, %v2067
        %v2069 = vpop.f32.mrb[0].mxu0
        %v2070 = vadd.f32 %v627, %v2069
        %2071 = vmatprep.mubr.f32.mxu0 0.0
        %2072 = vmatmul.mubr.f32.gmra.mrb[0].mxu0 %v1020
        %v2073 = vpop.f32.mrb[0].mxu0
        %v2074 = vadd.f32 %v632, %v2073
        %v2075 = vpop.f32.mrb[0].mxu0
        %v2076 = vadd.f32 %v632, %v2075
        %2077 = vmatprep.mubr.f32.mxu0 0.0
        %2078 = vmatmul.mubr.f32.gmra.mrb[0].mxu0 %v1023
        %v2079 = vpop.f32.mrb[0].mxu0
        %v2080 = vadd.f32 %v637, %v2079
        %v2081 = vpop.f32.mrb[0].mxu0
        %v2082 = vadd.f32 %v637, %v2081
        %2083 = vdwg.mxu0
        %s2084 = sld [smem:[#allocation4 + $0x2]]
        %s2085 = ssub.f32 0.0, %s2084
        %v2086 = vmax.f32 %v2080, 0.0
        %v2087 = vmax.f32 %v2082, 0.0
        %v2088 = vstv %s2085
        %v2089 = vmul.f32 %v2088, %v2086
        %v2090 = vmul.f32 %v2088, %v2087
        %v2091 = vmul.f32 %v2089, 1.442695
        %v2092 = vpow.pop %v2091
        %v2093 = vmul.f32 %v2090, 1.442695
        %v2094 = vpow.pop %v2093
        %v2095 = vsub.f32 1.0, %v2092
        %v2096 = vsub.f32 1.0, %v2094
        %v2097 = vmul.f32 %v2095, %v1649
        %v2098 = vmul.f32 %v2096, %v1650
        %v2099 = vlaneseq
        %v2100 = vshrl.u32 %v2099, 7
        %v2101 = vsub.s32 0, %v2100
        %v2102 = vrot.slane %v2097, %v2101
        %v2103 = vlaneseq
        %v2104 = vshrl.u32 %v2103, 7
        %v2105 = vsub.s32 0, %v2104
        %v2106 = vrot.slane %v2098, %v2105
        %v2107 = vmul.f32 %v2102, %v2056
        %v2108 = vmul.f32 %v2106, %v2058
        %v2109 = vmul.f32 %v2102, %v2062
        %v2110 = vmul.f32 %v2106, %v2064
        %v2111 = vmul.f32 %v2102, %v2068
        %v2112 = vmul.f32 %v2106, %v2070
        %v2113 = vmul.f32 %v2102, %v2074
        %v2114 = vmul.f32 %v2106, %v2076
        %v2115 = vadd.f32 %v1631, %v2107
        %v2116 = vadd.f32 %v1632, %v2108
        %v2117 = vadd.f32 %v1633, %v2109
        %v2118 = vadd.f32 %v1634, %v2110
        %v2119 = vadd.f32 %v1635, %v2111
        %v2120 = vadd.f32 %v1636, %v2112
        %v2121 = vadd.f32 %v1637, %v2113
        %v2122 = vadd.f32 %v1638, %v2114
        %s2123 = sld [smem:[#allocation2 + $0x2]]
        %v2124 = vstv %s2123
        %v2125 = vmul.f32 %v2097, %v2124
        %v2126 = vmul.f32 %v2098, %v2124
        %v2127 = vadd.f32 %v1643, %v2125
        %v2128 = vadd.f32 %v1644, %v2126
        %v2129 = vsub.f32 1.0, %v2095
        %v2130 = vsub.f32 1.0, %v2096
        %v2131 = vadd.f32 %v2129, 1e-10
        %v2132 = vadd.f32 %v2130, 1e-10
        %v2133 = vmul.f32 %v1649, %v2131
        %v2134 = vmul.f32 %v1650, %v2132
        %s2135 = scalar_lea.vmem %s502, 96 [#allocation6]
        %v2136 = vld [vmem:[%s2135] sm:$0xff]
        %v2137 = vld [vmem:[%s2135 + $0x8] sm:$0xff]
        %v2138 = vld [vmem:[%s2135 + $0x10] sm:$0xff]
        %v2139 = vld [vmem:[%s2135 + $0x18] sm:$0xff]
        %v2144 = vunpack.c.l.b16 %v2136
        %v2145 = vunpack.c.h.b16 %v2136
        %v2146 = vunpack.c.l.b16 %v2137
        %v2147 = vunpack.c.h.b16 %v2137
        %v2148 = vunpack.c.l.b16 %v2138
        %v2149 = vunpack.c.h.b16 %v2138
        %v2150 = vunpack.c.l.b16 %v2139
        %v2151 = vunpack.c.h.b16 %v2139
        %v2152 = vpack.c.b16 %v2146, %v2144
        %v2153 = vpack.c.b16 %v2147, %v2145
        %v2154 = vpack.c.b16 %v2150, %v2148
        %v2155 = vpack.c.b16 %v2151, %v2149
        %2160 = vmatprep.subr.bf16.mxu0 %v2153
        %2161 = vmatpush1.bf16.msra.mxu0 %v2152
        %2162 = vmatprep.subr.bf16.mxu0 %v2155
        %2163 = vmatpush1.bf16.msra.mxu0 %v2154
        %2164 = vmatprep.subr.bf16.mxu0 0
        %2165 = vmatpush1.bf16.msra.mxu0 0
        %2166 = vmatprep.subr.bf16.mxu0 0
        %2167 = vmatpush1.bf16.msra.mxu0 0
        %2168 = vmatprep.subr.bf16.mxu0 0
        %2169 = vmatpush1.bf16.msra.mxu0 0
        %2170 = vmatprep.subr.bf16.mxu0 0
        %2171 = vmatpush1.bf16.msra.mxu0 0
        %2172 = vmatprep.subr.bf16.mxu0 0
        %2173 = vmatpush1.bf16.msra.mxu0 0
        %2174 = vmatprep.subr.bf16.mxu0 0
        %2175 = vmatpush1.bf16.msra.mxu0 0
        %2176 = vmatprep.subr.bf16.mxu0 0
        %2177 = vmatpush1.bf16.msra.mxu0 0
        %2178 = vmatprep.subr.bf16.mxu0 0
        %2179 = vmatpush1.bf16.msra.mxu0 0
        %2180 = vmatprep.subr.bf16.mxu0 0
        %2181 = vmatpush1.bf16.msra.mxu0 0
        %2182 = vmatprep.subr.bf16.mxu0 0
        %2183 = vmatpush1.bf16.msra.mxu0 0
        %2184 = vmatprep.subr.bf16.mxu0 0
        %2185 = vmatpush1.bf16.msra.mxu0 0
        %2186 = vmatprep.subr.bf16.mxu0 0
        %2187 = vmatpush1.bf16.msra.mxu0 0
        %2188 = vmatprep.subr.bf16.mxu0 0
        %2189 = vmatpush1.bf16.msra.mxu0 0
        %2190 = vmatprep.subr.bf16.mxu0 0
        %2191 = vmatpush1.bf16.msra.mxu0 0
        %2192 = vmatprep.mubr.bf16.mxu0 0
        %2193 = vmatmul.mubr.bf16.gmra.mrb[0].mxu0 %v685
        %v2194 = vpop.f32.mrb[0].mxu0
        %v2195 = vadd.f32 %v572, %v2194
        %v2196 = vpop.f32.mrb[0].mxu0
        %v2197 = vadd.f32 %v572, %v2196
        %v2198 = vpop.f32.mrb[0].mxu0
        %v2199 = vadd.f32 %v577, %v2198
        %v2200 = vpop.f32.mrb[0].mxu0
        %v2201 = vadd.f32 %v577, %v2200
        %2202 = vmatprep.mubr.bf16.mxu0 0
        %2203 = vmatmul.mubr.bf16.gmra.mrb[0].mxu0 %v688
        %v2204 = vpop.f32.mrb[0].mxu0
        %v2205 = vadd.f32 %v582, %v2204
        %v2206 = vpop.f32.mrb[0].mxu0
        %v2207 = vadd.f32 %v582, %v2206
        %v2208 = vpop.f32.mrb[0].mxu0
        %v2209 = vadd.f32 %v587, %v2208
        %v2210 = vpop.f32.mrb[0].mxu0
        %v2211 = vadd.f32 %v587, %v2210
        %2212 = vmatprep.mubr.bf16.mxu0 0
        %2213 = vmatmul.mubr.bf16.gmra.mrb[0].mxu0 %v691
        %v2214 = vpop.f32.mrb[0].mxu0
        %v2215 = vadd.f32 %v592, %v2214
        %v2216 = vpop.f32.mrb[0].mxu0
        %v2217 = vadd.f32 %v592, %v2216
        %v2218 = vpop.f32.mrb[0].mxu0
        %v2219 = vadd.f32 %v597, %v2218
        %v2220 = vpop.f32.mrb[0].mxu0
        %v2221 = vadd.f32 %v597, %v2220
        %2222 = vmatprep.mubr.bf16.mxu0 0
        %2223 = vmatmul.mubr.bf16.gmra.mrb[0].mxu0 %v694
        %v2224 = vpop.f32.mrb[0].mxu0
        %v2225 = vadd.f32 %v602, %v2224
        %v2226 = vpop.f32.mrb[0].mxu0
        %v2227 = vadd.f32 %v602, %v2226
        %v2228 = vpop.f32.mrb[0].mxu0
        %v2229 = vadd.f32 %v607, %v2228
        %v2230 = vpop.f32.mrb[0].mxu0
        %v2231 = vadd.f32 %v607, %v2230
        %2232 = vdwg.mxu0
        %v2233 = vmax.f32 %v2195, 0.0
        %v2234 = vmax.f32 %v2197, 0.0
        %v2235 = vmax.f32 %v2199, 0.0
        %v2236 = vmax.f32 %v2201, 0.0
        %v2237 = vmax.f32 %v2205, 0.0
        %v2238 = vmax.f32 %v2207, 0.0
        %v2239 = vmax.f32 %v2209, 0.0
        %v2240 = vmax.f32 %v2211, 0.0
        %v2241 = vmax.f32 %v2215, 0.0
        %v2242 = vmax.f32 %v2217, 0.0
        %v2243 = vmax.f32 %v2219, 0.0
        %v2244 = vmax.f32 %v2221, 0.0
        %v2245 = vmax.f32 %v2225, 0.0
        %v2246 = vmax.f32 %v2227, 0.0
        %v2247 = vmax.f32 %v2229, 0.0
        %v2248 = vmax.f32 %v2231, 0.0
        %v2249 = vand.u32 2147483647, %v2195
        %v2250 = vand.u32 2147483647, %v2197
        %v2251 = vand.u32 2147483647, %v2199
        %v2252 = vand.u32 2147483647, %v2201
        %v2253 = vand.u32 2147483647, %v2205
        %v2254 = vand.u32 2147483647, %v2207
        %v2255 = vand.u32 2147483647, %v2209
        %v2256 = vand.u32 2147483647, %v2211
        %v2257 = vand.u32 2147483647, %v2215
        %v2258 = vand.u32 2147483647, %v2217
        %v2259 = vand.u32 2147483647, %v2219
        %v2260 = vand.u32 2147483647, %v2221
        %v2261 = vand.u32 2147483647, %v2225
        %v2262 = vand.u32 2147483647, %v2227
        %v2263 = vand.u32 2147483647, %v2229
        %v2264 = vand.u32 2147483647, %v2231
        %v2265 = vsub.f32 0.0, %v2249
        %v2266 = vsub.f32 0.0, %v2250
        %v2267 = vsub.f32 0.0, %v2251
        %v2268 = vsub.f32 0.0, %v2252
        %v2269 = vsub.f32 0.0, %v2253
        %v2270 = vsub.f32 0.0, %v2254
        %v2271 = vsub.f32 0.0, %v2255
        %v2272 = vsub.f32 0.0, %v2256
        %v2273 = vsub.f32 0.0, %v2257
        %v2274 = vsub.f32 0.0, %v2258
        %v2275 = vsub.f32 0.0, %v2259
        %v2276 = vsub.f32 0.0, %v2260
        %v2277 = vsub.f32 0.0, %v2261
        %v2278 = vsub.f32 0.0, %v2262
        %v2279 = vsub.f32 0.0, %v2263
        %v2280 = vsub.f32 0.0, %v2264
        %v2281 = vmul.f32 %v2265, 1.442695
        %v2282 = vpow.pop %v2281
        %v2283 = vmul.f32 %v2266, 1.442695
        %v2284 = vpow.pop %v2283
        %v2285 = vmul.f32 %v2267, 1.442695
        %v2286 = vpow.pop %v2285
        %v2287 = vmul.f32 %v2268, 1.442695
        %v2288 = vpow.pop %v2287
        %v2289 = vmul.f32 %v2269, 1.442695
        %v2290 = vpow.pop %v2289
        %v2291 = vmul.f32 %v2270, 1.442695
        %v2292 = vpow.pop %v2291
        %v2293 = vmul.f32 %v2271, 1.442695
        %v2294 = vpow.pop %v2293
        %v2295 = vmul.f32 %v2272, 1.442695
        %v2296 = vpow.pop %v2295
        %v2297 = vmul.f32 %v2273, 1.442695
        %v2298 = vpow.pop %v2297
        %v2299 = vmul.f32 %v2274, 1.442695
        %v2300 = vpow.pop %v2299
        %v2301 = vmul.f32 %v2275, 1.442695
        %v2302 = vpow.pop %v2301
        %v2303 = vmul.f32 %v2276, 1.442695
        %v2304 = vpow.pop %v2303
        %v2305 = vmul.f32 %v2277, 1.442695
        %v2306 = vpow.pop %v2305
        %v2307 = vmul.f32 %v2278, 1.442695
        %v2308 = vpow.pop %v2307
        %v2309 = vmul.f32 %v2279, 1.442695
        %v2310 = vpow.pop %v2309
        %v2311 = vmul.f32 %v2280, 1.442695
        %v2312 = vpow.pop %v2311
        %v2313 = vadd.f32 %v2282, 1.0
        %v2314 = vlog2.pop %v2313
        %v2315 = vmul.f32 %v2314, 0.6931472
        %v2316 = vmul.f32 -0.5, %v2282
        %v2317 = vadd.f32 %v2316, 1.0
        %v2318 = vmul.f32 %v2317, %v2282
        %v2319 = vand.u32 2147483647, %v2282
        %vm2320 = vcmp.lt.f32.partialorder %v2319, 0.0004427343
        %v2321 = vsel %vm2320, %v2318, %v2315
        %v2322 = vadd.f32 %v2284, 1.0
        %v2323 = vlog2.pop %v2322
        %v2324 = vmul.f32 %v2323, 0.6931472
        %v2325 = vmul.f32 -0.5, %v2284
        %v2326 = vadd.f32 %v2325, 1.0
        %v2327 = vmul.f32 %v2326, %v2284
        %v2328 = vand.u32 2147483647, %v2284
        %vm2329 = vcmp.lt.f32.partialorder %v2328, 0.0004427343
        %v2330 = vsel %vm2329, %v2327, %v2324
        %v2331 = vadd.f32 %v2286, 1.0
        %v2332 = vlog2.pop %v2331
        %v2333 = vmul.f32 %v2332, 0.6931472
        %v2334 = vmul.f32 -0.5, %v2286
        %v2335 = vadd.f32 %v2334, 1.0
        %v2336 = vmul.f32 %v2335, %v2286
        %v2337 = vand.u32 2147483647, %v2286
        %vm2338 = vcmp.lt.f32.partialorder %v2337, 0.0004427343
        %v2339 = vsel %vm2338, %v2336, %v2333
        %v2340 = vadd.f32 %v2288, 1.0
        %v2341 = vlog2.pop %v2340
        %v2342 = vmul.f32 %v2341, 0.6931472
        %v2343 = vmul.f32 -0.5, %v2288
        %v2344 = vadd.f32 %v2343, 1.0
        %v2345 = vmul.f32 %v2344, %v2288
        %v2346 = vand.u32 2147483647, %v2288
        %vm2347 = vcmp.lt.f32.partialorder %v2346, 0.0004427343
        %v2348 = vsel %vm2347, %v2345, %v2342
        %v2349 = vadd.f32 %v2290, 1.0
        %v2350 = vlog2.pop %v2349
        %v2351 = vmul.f32 %v2350, 0.6931472
        %v2352 = vmul.f32 -0.5, %v2290
        %v2353 = vadd.f32 %v2352, 1.0
        %v2354 = vmul.f32 %v2353, %v2290
        %v2355 = vand.u32 2147483647, %v2290
        %vm2356 = vcmp.lt.f32.partialorder %v2355, 0.0004427343
        %v2357 = vsel %vm2356, %v2354, %v2351
        %v2358 = vadd.f32 %v2292, 1.0
        %v2359 = vlog2.pop %v2358
        %v2360 = vmul.f32 %v2359, 0.6931472
        %v2361 = vmul.f32 -0.5, %v2292
        %v2362 = vadd.f32 %v2361, 1.0
        %v2363 = vmul.f32 %v2362, %v2292
        %v2364 = vand.u32 2147483647, %v2292
        %vm2365 = vcmp.lt.f32.partialorder %v2364, 0.0004427343
        %v2366 = vsel %vm2365, %v2363, %v2360
        %v2367 = vadd.f32 %v2294, 1.0
        %v2368 = vlog2.pop %v2367
        %v2369 = vmul.f32 %v2368, 0.6931472
        %v2370 = vmul.f32 -0.5, %v2294
        %v2371 = vadd.f32 %v2370, 1.0
        %v2372 = vmul.f32 %v2371, %v2294
        %v2373 = vand.u32 2147483647, %v2294
        %vm2374 = vcmp.lt.f32.partialorder %v2373, 0.0004427343
        %v2375 = vsel %vm2374, %v2372, %v2369
        %v2376 = vadd.f32 %v2296, 1.0
        %v2377 = vlog2.pop %v2376
        %v2378 = vmul.f32 %v2377, 0.6931472
        %v2379 = vmul.f32 -0.5, %v2296
        %v2380 = vadd.f32 %v2379, 1.0
        %v2381 = vmul.f32 %v2380, %v2296
        %v2382 = vand.u32 2147483647, %v2296
        %vm2383 = vcmp.lt.f32.partialorder %v2382, 0.0004427343
        %v2384 = vsel %vm2383, %v2381, %v2378
        %v2385 = vadd.f32 %v2298, 1.0
        %v2386 = vlog2.pop %v2385
        %v2387 = vmul.f32 %v2386, 0.6931472
        %v2388 = vmul.f32 -0.5, %v2298
        %v2389 = vadd.f32 %v2388, 1.0
        %v2390 = vmul.f32 %v2389, %v2298
        %v2391 = vand.u32 2147483647, %v2298
        %vm2392 = vcmp.lt.f32.partialorder %v2391, 0.0004427343
        %v2393 = vsel %vm2392, %v2390, %v2387
        %v2394 = vadd.f32 %v2300, 1.0
        %v2395 = vlog2.pop %v2394
        %v2396 = vmul.f32 %v2395, 0.6931472
        %v2397 = vmul.f32 -0.5, %v2300
        %v2398 = vadd.f32 %v2397, 1.0
        %v2399 = vmul.f32 %v2398, %v2300
        %v2400 = vand.u32 2147483647, %v2300
        %vm2401 = vcmp.lt.f32.partialorder %v2400, 0.0004427343
        %v2402 = vsel %vm2401, %v2399, %v2396
        %v2403 = vadd.f32 %v2302, 1.0
        %v2404 = vlog2.pop %v2403
        %v2405 = vmul.f32 %v2404, 0.6931472
        %v2406 = vmul.f32 -0.5, %v2302
        %v2407 = vadd.f32 %v2406, 1.0
        %v2408 = vmul.f32 %v2407, %v2302
        %v2409 = vand.u32 2147483647, %v2302
        %vm2410 = vcmp.lt.f32.partialorder %v2409, 0.0004427343
        %v2411 = vsel %vm2410, %v2408, %v2405
        %v2412 = vadd.f32 %v2304, 1.0
        %v2413 = vlog2.pop %v2412
        %v2414 = vmul.f32 %v2413, 0.6931472
        %v2415 = vmul.f32 -0.5, %v2304
        %v2416 = vadd.f32 %v2415, 1.0
        %v2417 = vmul.f32 %v2416, %v2304
        %v2418 = vand.u32 2147483647, %v2304
        %vm2419 = vcmp.lt.f32.partialorder %v2418, 0.0004427343
        %v2420 = vsel %vm2419, %v2417, %v2414
        %v2421 = vadd.f32 %v2306, 1.0
        %v2422 = vlog2.pop %v2421
        %v2423 = vmul.f32 %v2422, 0.6931472
        %v2424 = vmul.f32 -0.5, %v2306
        %v2425 = vadd.f32 %v2424, 1.0
        %v2426 = vmul.f32 %v2425, %v2306
        %v2427 = vand.u32 2147483647, %v2306
        %vm2428 = vcmp.lt.f32.partialorder %v2427, 0.0004427343
        %v2429 = vsel %vm2428, %v2426, %v2423
        %v2430 = vadd.f32 %v2308, 1.0
        %v2431 = vlog2.pop %v2430
        %v2432 = vmul.f32 %v2431, 0.6931472
        %v2433 = vmul.f32 -0.5, %v2308
        %v2434 = vadd.f32 %v2433, 1.0
        %v2435 = vmul.f32 %v2434, %v2308
        %v2436 = vand.u32 2147483647, %v2308
        %vm2437 = vcmp.lt.f32.partialorder %v2436, 0.0004427343
        %v2438 = vsel %vm2437, %v2435, %v2432
        %v2439 = vadd.f32 %v2310, 1.0
        %v2440 = vlog2.pop %v2439
        %v2441 = vmul.f32 %v2440, 0.6931472
        %v2442 = vmul.f32 -0.5, %v2310
        %v2443 = vadd.f32 %v2442, 1.0
        %v2444 = vmul.f32 %v2443, %v2310
        %v2445 = vand.u32 2147483647, %v2310
        %vm2446 = vcmp.lt.f32.partialorder %v2445, 0.0004427343
        %v2447 = vsel %vm2446, %v2444, %v2441
        %v2448 = vadd.f32 %v2312, 1.0
        %v2449 = vlog2.pop %v2448
        %v2450 = vmul.f32 %v2449, 0.6931472
        %v2451 = vmul.f32 -0.5, %v2312
        %v2452 = vadd.f32 %v2451, 1.0
        %v2453 = vmul.f32 %v2452, %v2312
        %v2454 = vand.u32 2147483647, %v2312
        %vm2455 = vcmp.lt.f32.partialorder %v2454, 0.0004427343
        %v2456 = vsel %vm2455, %v2453, %v2450
        %v2457 = vadd.f32 %v2233, %v2321
        %v2458 = vadd.f32 %v2234, %v2330
        %v2459 = vadd.f32 %v2235, %v2339
        %v2460 = vadd.f32 %v2236, %v2348
        %v2461 = vadd.f32 %v2237, %v2357
        %v2462 = vadd.f32 %v2238, %v2366
        %v2463 = vadd.f32 %v2239, %v2375
        %v2464 = vadd.f32 %v2240, %v2384
        %v2465 = vadd.f32 %v2241, %v2393
        %v2466 = vadd.f32 %v2242, %v2402
        %v2467 = vadd.f32 %v2243, %v2411
        %v2468 = vadd.f32 %v2244, %v2420
        %v2469 = vadd.f32 %v2245, %v2429
        %v2470 = vadd.f32 %v2246, %v2438
        %v2471 = vadd.f32 %v2247, %v2447
        %v2472 = vadd.f32 %v2248, %v2456
        %2473 = vmatprep.subr.mxu0 %v2458
        %2474 = vmatpush1.msra.mxu0 %v2457
        %2475 = vmatprep.subr.mxu0 %v2460
        %2476 = vmatpush1.msra.mxu0 %v2459
        %2477 = vmatprep.subr.mxu0 %v2462
        %2478 = vmatpush1.msra.mxu0 %v2461
        %2479 = vmatprep.subr.mxu0 %v2464
        %2480 = vmatpush1.msra.mxu0 %v2463
        %2481 = vmatprep.subr.mxu0 %v2466
        %2482 = vmatpush1.msra.mxu0 %v2465
        %2483 = vmatprep.subr.mxu0 %v2468
        %2484 = vmatpush1.msra.mxu0 %v2467
        %2485 = vmatprep.subr.mxu0 %v2470
        %2486 = vmatpush1.msra.mxu0 %v2469
        %2487 = vmatprep.subr.mxu0 %v2472
        %2488 = vmatpush1.msra.mxu0 %v2471
        %2489 = vmatprep.subr.mxu0 0.0
        %2490 = vmatpush1.msra.mxu0 0.0
        %2491 = vmatprep.subr.mxu0 0.0
        %2492 = vmatpush1.msra.mxu0 0.0
        %2493 = vmatprep.subr.mxu0 0.0
        %2494 = vmatpush1.msra.mxu0 0.0
        %2495 = vmatprep.subr.mxu0 0.0
        %2496 = vmatpush1.msra.mxu0 0.0
        %2497 = vmatprep.subr.mxu0 0.0
        %2498 = vmatpush1.msra.mxu0 0.0
        %2499 = vmatprep.subr.mxu0 0.0
        %2500 = vmatpush1.msra.mxu0 0.0
        %2501 = vmatprep.subr.mxu0 0.0
        %2502 = vmatpush1.msra.mxu0 0.0
        %2503 = vmatprep.subr.mxu0 0.0
        %2504 = vmatpush1.msra.mxu0 0.0
        %2505 = vmatprep.subr.mxu0 0.0
        %2506 = vmatpush1.msra.mxu0 0.0
        %2507 = vmatprep.subr.mxu0 0.0
        %2508 = vmatpush1.msra.mxu0 0.0
        %2509 = vmatprep.subr.mxu0 0.0
        %2510 = vmatpush1.msra.mxu0 0.0
        %2511 = vmatprep.subr.mxu0 0.0
        %2512 = vmatpush1.msra.mxu0 0.0
        %2513 = vmatprep.subr.mxu0 0.0
        %2514 = vmatpush1.msra.mxu0 0.0
        %2515 = vmatprep.subr.mxu0 0.0
        %2516 = vmatpush1.msra.mxu0 0.0
        %2517 = vmatprep.subr.mxu0 0.0
        %2518 = vmatpush1.msra.mxu0 0.0
        %2519 = vmatprep.subr.mxu0 0.0
        %2520 = vmatpush1.msra.mxu0 0.0
        %2521 = vmatprep.subr.mxu0 0.0
        %2522 = vmatpush1.msra.mxu0 0.0
        %2523 = vmatprep.subr.mxu0 0.0
        %2524 = vmatpush1.msra.mxu0 0.0
        %2525 = vmatprep.subr.mxu0 0.0
        %2526 = vmatpush1.msra.mxu0 0.0
        %2527 = vmatprep.subr.mxu0 0.0
        %2528 = vmatpush1.msra.mxu0 0.0
        %2529 = vmatprep.subr.mxu0 0.0
        %2530 = vmatpush1.msra.mxu0 0.0
        %2531 = vmatprep.subr.mxu0 0.0
        %2532 = vmatpush1.msra.mxu0 0.0
        %2533 = vmatprep.subr.mxu0 0.0
        %2534 = vmatpush1.msra.mxu0 0.0
        %2535 = vmatprep.subr.mxu0 0.0
        %2536 = vmatpush1.msra.mxu0 0.0
        %2537 = vmatprep.mubr.f32.mxu0 0.0
        %2538 = vmatmul.mubr.f32.gmra.mrb[0].mxu0 %v1011
        %v2539 = vpop.f32.mrb[0].mxu0
        %v2540 = vadd.f32 %v617, %v2539
        %v2541 = vpop.f32.mrb[0].mxu0
        %v2542 = vadd.f32 %v617, %v2541
        %2543 = vmatprep.mubr.f32.mxu0 0.0
        %2544 = vmatmul.mubr.f32.gmra.mrb[0].mxu0 %v1014
        %v2545 = vpop.f32.mrb[0].mxu0
        %v2546 = vadd.f32 %v622, %v2545
        %v2547 = vpop.f32.mrb[0].mxu0
        %v2548 = vadd.f32 %v622, %v2547
        %2549 = vmatprep.mubr.f32.mxu0 0.0
        %2550 = vmatmul.mubr.f32.gmra.mrb[0].mxu0 %v1017
        %v2551 = vpop.f32.mrb[0].mxu0
        %v2552 = vadd.f32 %v627, %v2551
        %v2553 = vpop.f32.mrb[0].mxu0
        %v2554 = vadd.f32 %v627, %v2553
        %2555 = vmatprep.mubr.f32.mxu0 0.0
        %2556 = vmatmul.mubr.f32.gmra.mrb[0].mxu0 %v1020
        %v2557 = vpop.f32.mrb[0].mxu0
        %v2558 = vadd.f32 %v632, %v2557
        %v2559 = vpop.f32.mrb[0].mxu0
        %v2560 = vadd.f32 %v632, %v2559
        %2561 = vmatprep.mubr.f32.mxu0 0.0
        %2562 = vmatmul.mubr.f32.gmra.mrb[0].mxu0 %v1023
        %v2563 = vpop.f32.mrb[0].mxu0
        %v2564 = vadd.f32 %v637, %v2563
        %v2565 = vpop.f32.mrb[0].mxu0
        %v2566 = vadd.f32 %v637, %v2565
        %2567 = vdwg.mxu0
        %s2568 = sld [smem:[#allocation4 + $0x3]]
        %s2569 = ssub.f32 0.0, %s2568
        %v2570 = vmax.f32 %v2564, 0.0
        %v2571 = vmax.f32 %v2566, 0.0
        %v2572 = vstv %s2569
        %v2573 = vmul.f32 %v2572, %v2570
        %v2574 = vmul.f32 %v2572, %v2571
        %v2575 = vmul.f32 %v2573, 1.442695
        %v2576 = vpow.pop %v2575
        %v2577 = vmul.f32 %v2574, 1.442695
        %v2578 = vpow.pop %v2577
        %v2579 = vsub.f32 1.0, %v2576
        %v2580 = vsub.f32 1.0, %v2578
        %v2581 = vmul.f32 %v2579, %v2133
        %v2582 = vmul.f32 %v2580, %v2134
        %v2583 = vlaneseq
        %v2584 = vshrl.u32 %v2583, 7
        %v2585 = vsub.s32 0, %v2584
        %v2586 = vrot.slane %v2581, %v2585
        %v2587 = vlaneseq
        %v2588 = vshrl.u32 %v2587, 7
        %v2589 = vsub.s32 0, %v2588
        %v2590 = vrot.slane %v2582, %v2589
        %v2591 = vmul.f32 %v2586, %v2540
        %v2592 = vmul.f32 %v2590, %v2542
        %v2593 = vmul.f32 %v2586, %v2546
        %v2594 = vmul.f32 %v2590, %v2548
        %v2595 = vmul.f32 %v2586, %v2552
        %v2596 = vmul.f32 %v2590, %v2554
        %v2597 = vmul.f32 %v2586, %v2558
        %v2598 = vmul.f32 %v2590, %v2560
        %v2599 = vadd.f32 %v2115, %v2591
        %v2600 = vadd.f32 %v2116, %v2592
        %v2601 = vadd.f32 %v2117, %v2593
        %v2602 = vadd.f32 %v2118, %v2594
        %v2603 = vadd.f32 %v2119, %v2595
        %v2604 = vadd.f32 %v2120, %v2596
        %v2605 = vadd.f32 %v2121, %v2597
        %v2606 = vadd.f32 %v2122, %v2598
        %s2607 = sld [smem:[#allocation2 + $0x3]]
        %v2608 = vstv %s2607
        %v2609 = vmul.f32 %v2581, %v2608
        %v2610 = vmul.f32 %v2582, %v2608
        %v2611 = vadd.f32 %v2127, %v2609
        %v2612 = vadd.f32 %v2128, %v2610
        %v2613 = vsub.f32 1.0, %v2579
        %v2614 = vsub.f32 1.0, %v2580
        %v2615 = vadd.f32 %v2613, 1e-10
        %v2616 = vadd.f32 %v2614, 1e-10
        %v2617 = vmul.f32 %v2133, %v2615
        %v2618 = vmul.f32 %v2134, %v2616
        %s2619 = scalar_lea.vmem %s502, 128 [#allocation6]
        %v2620 = vld [vmem:[%s2619] sm:$0xff]
        %v2621 = vld [vmem:[%s2619 + $0x8] sm:$0xff]
        %v2622 = vld [vmem:[%s2619 + $0x10] sm:$0xff]
        %v2623 = vld [vmem:[%s2619 + $0x18] sm:$0xff]
        %v2628 = vunpack.c.l.b16 %v2620
        %v2629 = vunpack.c.h.b16 %v2620
        %v2630 = vunpack.c.l.b16 %v2621
        %v2631 = vunpack.c.h.b16 %v2621
        %v2632 = vunpack.c.l.b16 %v2622
        %v2633 = vunpack.c.h.b16 %v2622
        %v2634 = vunpack.c.l.b16 %v2623
        %v2635 = vunpack.c.h.b16 %v2623
        %v2636 = vpack.c.b16 %v2630, %v2628
        %v2637 = vpack.c.b16 %v2631, %v2629
        %v2638 = vpack.c.b16 %v2634, %v2632
        %v2639 = vpack.c.b16 %v2635, %v2633
        %2644 = vmatprep.subr.bf16.mxu0 %v2637
        %2645 = vmatpush1.bf16.msra.mxu0 %v2636
        %2646 = vmatprep.subr.bf16.mxu0 %v2639
        %2647 = vmatpush1.bf16.msra.mxu0 %v2638
        %2648 = vmatprep.subr.bf16.mxu0 0
        %2649 = vmatpush1.bf16.msra.mxu0 0
        %2650 = vmatprep.subr.bf16.mxu0 0
        %2651 = vmatpush1.bf16.msra.mxu0 0
        %2652 = vmatprep.subr.bf16.mxu0 0
        %2653 = vmatpush1.bf16.msra.mxu0 0
        %2654 = vmatprep.subr.bf16.mxu0 0
        %2655 = vmatpush1.bf16.msra.mxu0 0
        %2656 = vmatprep.subr.bf16.mxu0 0
        %2657 = vmatpush1.bf16.msra.mxu0 0
        %2658 = vmatprep.subr.bf16.mxu0 0
        %2659 = vmatpush1.bf16.msra.mxu0 0
        %2660 = vmatprep.subr.bf16.mxu0 0
        %2661 = vmatpush1.bf16.msra.mxu0 0
        %2662 = vmatprep.subr.bf16.mxu0 0
        %2663 = vmatpush1.bf16.msra.mxu0 0
        %2664 = vmatprep.subr.bf16.mxu0 0
        %2665 = vmatpush1.bf16.msra.mxu0 0
        %2666 = vmatprep.subr.bf16.mxu0 0
        %2667 = vmatpush1.bf16.msra.mxu0 0
        %2668 = vmatprep.subr.bf16.mxu0 0
        %2669 = vmatpush1.bf16.msra.mxu0 0
        %2670 = vmatprep.subr.bf16.mxu0 0
        %2671 = vmatpush1.bf16.msra.mxu0 0
        %2672 = vmatprep.subr.bf16.mxu0 0
        %2673 = vmatpush1.bf16.msra.mxu0 0
        %2674 = vmatprep.subr.bf16.mxu0 0
        %2675 = vmatpush1.bf16.msra.mxu0 0
        %2676 = vmatprep.mubr.bf16.mxu0 0
        %2677 = vmatmul.mubr.bf16.gmra.mrb[0].mxu0 %v685
        %v2678 = vpop.f32.mrb[0].mxu0
        %v2679 = vadd.f32 %v572, %v2678
        %v2680 = vpop.f32.mrb[0].mxu0
        %v2681 = vadd.f32 %v572, %v2680
        %v2682 = vpop.f32.mrb[0].mxu0
        %v2683 = vadd.f32 %v577, %v2682
        %v2684 = vpop.f32.mrb[0].mxu0
        %v2685 = vadd.f32 %v577, %v2684
        %2686 = vmatprep.mubr.bf16.mxu0 0
        %2687 = vmatmul.mubr.bf16.gmra.mrb[0].mxu0 %v688
        %v2688 = vpop.f32.mrb[0].mxu0
        %v2689 = vadd.f32 %v582, %v2688
        %v2690 = vpop.f32.mrb[0].mxu0
        %v2691 = vadd.f32 %v582, %v2690
        %v2692 = vpop.f32.mrb[0].mxu0
        %v2693 = vadd.f32 %v587, %v2692
        %v2694 = vpop.f32.mrb[0].mxu0
        %v2695 = vadd.f32 %v587, %v2694
        %2696 = vmatprep.mubr.bf16.mxu0 0
        %2697 = vmatmul.mubr.bf16.gmra.mrb[0].mxu0 %v691
        %v2698 = vpop.f32.mrb[0].mxu0
        %v2699 = vadd.f32 %v592, %v2698
        %v2700 = vpop.f32.mrb[0].mxu0
        %v2701 = vadd.f32 %v592, %v2700
        %v2702 = vpop.f32.mrb[0].mxu0
        %v2703 = vadd.f32 %v597, %v2702
        %v2704 = vpop.f32.mrb[0].mxu0
        %v2705 = vadd.f32 %v597, %v2704
        %2706 = vmatprep.mubr.bf16.mxu0 0
        %2707 = vmatmul.mubr.bf16.gmra.mrb[0].mxu0 %v694
        %v2708 = vpop.f32.mrb[0].mxu0
        %v2709 = vadd.f32 %v602, %v2708
        %v2710 = vpop.f32.mrb[0].mxu0
        %v2711 = vadd.f32 %v602, %v2710
        %v2712 = vpop.f32.mrb[0].mxu0
        %v2713 = vadd.f32 %v607, %v2712
        %v2714 = vpop.f32.mrb[0].mxu0
        %v2715 = vadd.f32 %v607, %v2714
        %2716 = vdwg.mxu0
        %v2717 = vmax.f32 %v2679, 0.0
        %v2718 = vmax.f32 %v2681, 0.0
        %v2719 = vmax.f32 %v2683, 0.0
        %v2720 = vmax.f32 %v2685, 0.0
        %v2721 = vmax.f32 %v2689, 0.0
        %v2722 = vmax.f32 %v2691, 0.0
        %v2723 = vmax.f32 %v2693, 0.0
        %v2724 = vmax.f32 %v2695, 0.0
        %v2725 = vmax.f32 %v2699, 0.0
        %v2726 = vmax.f32 %v2701, 0.0
        %v2727 = vmax.f32 %v2703, 0.0
        %v2728 = vmax.f32 %v2705, 0.0
        %v2729 = vmax.f32 %v2709, 0.0
        %v2730 = vmax.f32 %v2711, 0.0
        %v2731 = vmax.f32 %v2713, 0.0
        %v2732 = vmax.f32 %v2715, 0.0
        %v2733 = vand.u32 2147483647, %v2679
        %v2734 = vand.u32 2147483647, %v2681
        %v2735 = vand.u32 2147483647, %v2683
        %v2736 = vand.u32 2147483647, %v2685
        %v2737 = vand.u32 2147483647, %v2689
        %v2738 = vand.u32 2147483647, %v2691
        %v2739 = vand.u32 2147483647, %v2693
        %v2740 = vand.u32 2147483647, %v2695
        %v2741 = vand.u32 2147483647, %v2699
        %v2742 = vand.u32 2147483647, %v2701
        %v2743 = vand.u32 2147483647, %v2703
        %v2744 = vand.u32 2147483647, %v2705
        %v2745 = vand.u32 2147483647, %v2709
        %v2746 = vand.u32 2147483647, %v2711
        %v2747 = vand.u32 2147483647, %v2713
        %v2748 = vand.u32 2147483647, %v2715
        %v2749 = vsub.f32 0.0, %v2733
        %v2750 = vsub.f32 0.0, %v2734
        %v2751 = vsub.f32 0.0, %v2735
        %v2752 = vsub.f32 0.0, %v2736
        %v2753 = vsub.f32 0.0, %v2737
        %v2754 = vsub.f32 0.0, %v2738
        %v2755 = vsub.f32 0.0, %v2739
        %v2756 = vsub.f32 0.0, %v2740
        %v2757 = vsub.f32 0.0, %v2741
        %v2758 = vsub.f32 0.0, %v2742
        %v2759 = vsub.f32 0.0, %v2743
        %v2760 = vsub.f32 0.0, %v2744
        %v2761 = vsub.f32 0.0, %v2745
        %v2762 = vsub.f32 0.0, %v2746
        %v2763 = vsub.f32 0.0, %v2747
        %v2764 = vsub.f32 0.0, %v2748
        %v2765 = vmul.f32 %v2749, 1.442695
        %v2766 = vpow.pop %v2765
        %v2767 = vmul.f32 %v2750, 1.442695
        %v2768 = vpow.pop %v2767
        %v2769 = vmul.f32 %v2751, 1.442695
        %v2770 = vpow.pop %v2769
        %v2771 = vmul.f32 %v2752, 1.442695
        %v2772 = vpow.pop %v2771
        %v2773 = vmul.f32 %v2753, 1.442695
        %v2774 = vpow.pop %v2773
        %v2775 = vmul.f32 %v2754, 1.442695
        %v2776 = vpow.pop %v2775
        %v2777 = vmul.f32 %v2755, 1.442695
        %v2778 = vpow.pop %v2777
        %v2779 = vmul.f32 %v2756, 1.442695
        %v2780 = vpow.pop %v2779
        %v2781 = vmul.f32 %v2757, 1.442695
        %v2782 = vpow.pop %v2781
        %v2783 = vmul.f32 %v2758, 1.442695
        %v2784 = vpow.pop %v2783
        %v2785 = vmul.f32 %v2759, 1.442695
        %v2786 = vpow.pop %v2785
        %v2787 = vmul.f32 %v2760, 1.442695
        %v2788 = vpow.pop %v2787
        %v2789 = vmul.f32 %v2761, 1.442695
        %v2790 = vpow.pop %v2789
        %v2791 = vmul.f32 %v2762, 1.442695
        %v2792 = vpow.pop %v2791
        %v2793 = vmul.f32 %v2763, 1.442695
        %v2794 = vpow.pop %v2793
        %v2795 = vmul.f32 %v2764, 1.442695
        %v2796 = vpow.pop %v2795
        %v2797 = vadd.f32 %v2766, 1.0
        %v2798 = vlog2.pop %v2797
        %v2799 = vmul.f32 %v2798, 0.6931472
        %v2800 = vmul.f32 -0.5, %v2766
        %v2801 = vadd.f32 %v2800, 1.0
        %v2802 = vmul.f32 %v2801, %v2766
        %v2803 = vand.u32 2147483647, %v2766
        %vm2804 = vcmp.lt.f32.partialorder %v2803, 0.0004427343
        %v2805 = vsel %vm2804, %v2802, %v2799
        %v2806 = vadd.f32 %v2768, 1.0
        %v2807 = vlog2.pop %v2806
        %v2808 = vmul.f32 %v2807, 0.6931472
        %v2809 = vmul.f32 -0.5, %v2768
        %v2810 = vadd.f32 %v2809, 1.0
        %v2811 = vmul.f32 %v2810, %v2768
        %v2812 = vand.u32 2147483647, %v2768
        %vm2813 = vcmp.lt.f32.partialorder %v2812, 0.0004427343
        %v2814 = vsel %vm2813, %v2811, %v2808
        %v2815 = vadd.f32 %v2770, 1.0
        %v2816 = vlog2.pop %v2815
        %v2817 = vmul.f32 %v2816, 0.6931472
        %v2818 = vmul.f32 -0.5, %v2770
        %v2819 = vadd.f32 %v2818, 1.0
        %v2820 = vmul.f32 %v2819, %v2770
        %v2821 = vand.u32 2147483647, %v2770
        %vm2822 = vcmp.lt.f32.partialorder %v2821, 0.0004427343
        %v2823 = vsel %vm2822, %v2820, %v2817
        %v2824 = vadd.f32 %v2772, 1.0
        %v2825 = vlog2.pop %v2824
        %v2826 = vmul.f32 %v2825, 0.6931472
        %v2827 = vmul.f32 -0.5, %v2772
        %v2828 = vadd.f32 %v2827, 1.0
        %v2829 = vmul.f32 %v2828, %v2772
        %v2830 = vand.u32 2147483647, %v2772
        %vm2831 = vcmp.lt.f32.partialorder %v2830, 0.0004427343
        %v2832 = vsel %vm2831, %v2829, %v2826
        %v2833 = vadd.f32 %v2774, 1.0
        %v2834 = vlog2.pop %v2833
        %v2835 = vmul.f32 %v2834, 0.6931472
        %v2836 = vmul.f32 -0.5, %v2774
        %v2837 = vadd.f32 %v2836, 1.0
        %v2838 = vmul.f32 %v2837, %v2774
        %v2839 = vand.u32 2147483647, %v2774
        %vm2840 = vcmp.lt.f32.partialorder %v2839, 0.0004427343
        %v2841 = vsel %vm2840, %v2838, %v2835
        %v2842 = vadd.f32 %v2776, 1.0
        %v2843 = vlog2.pop %v2842
        %v2844 = vmul.f32 %v2843, 0.6931472
        %v2845 = vmul.f32 -0.5, %v2776
        %v2846 = vadd.f32 %v2845, 1.0
        %v2847 = vmul.f32 %v2846, %v2776
        %v2848 = vand.u32 2147483647, %v2776
        %vm2849 = vcmp.lt.f32.partialorder %v2848, 0.0004427343
        %v2850 = vsel %vm2849, %v2847, %v2844
        %v2851 = vadd.f32 %v2778, 1.0
        %v2852 = vlog2.pop %v2851
        %v2853 = vmul.f32 %v2852, 0.6931472
        %v2854 = vmul.f32 -0.5, %v2778
        %v2855 = vadd.f32 %v2854, 1.0
        %v2856 = vmul.f32 %v2855, %v2778
        %v2857 = vand.u32 2147483647, %v2778
        %vm2858 = vcmp.lt.f32.partialorder %v2857, 0.0004427343
        %v2859 = vsel %vm2858, %v2856, %v2853
        %v2860 = vadd.f32 %v2780, 1.0
        %v2861 = vlog2.pop %v2860
        %v2862 = vmul.f32 %v2861, 0.6931472
        %v2863 = vmul.f32 -0.5, %v2780
        %v2864 = vadd.f32 %v2863, 1.0
        %v2865 = vmul.f32 %v2864, %v2780
        %v2866 = vand.u32 2147483647, %v2780
        %vm2867 = vcmp.lt.f32.partialorder %v2866, 0.0004427343
        %v2868 = vsel %vm2867, %v2865, %v2862
        %v2869 = vadd.f32 %v2782, 1.0
        %v2870 = vlog2.pop %v2869
        %v2871 = vmul.f32 %v2870, 0.6931472
        %v2872 = vmul.f32 -0.5, %v2782
        %v2873 = vadd.f32 %v2872, 1.0
        %v2874 = vmul.f32 %v2873, %v2782
        %v2875 = vand.u32 2147483647, %v2782
        %vm2876 = vcmp.lt.f32.partialorder %v2875, 0.0004427343
        %v2877 = vsel %vm2876, %v2874, %v2871
        %v2878 = vadd.f32 %v2784, 1.0
        %v2879 = vlog2.pop %v2878
        %v2880 = vmul.f32 %v2879, 0.6931472
        %v2881 = vmul.f32 -0.5, %v2784
        %v2882 = vadd.f32 %v2881, 1.0
        %v2883 = vmul.f32 %v2882, %v2784
        %v2884 = vand.u32 2147483647, %v2784
        %vm2885 = vcmp.lt.f32.partialorder %v2884, 0.0004427343
        %v2886 = vsel %vm2885, %v2883, %v2880
        %v2887 = vadd.f32 %v2786, 1.0
        %v2888 = vlog2.pop %v2887
        %v2889 = vmul.f32 %v2888, 0.6931472
        %v2890 = vmul.f32 -0.5, %v2786
        %v2891 = vadd.f32 %v2890, 1.0
        %v2892 = vmul.f32 %v2891, %v2786
        %v2893 = vand.u32 2147483647, %v2786
        %vm2894 = vcmp.lt.f32.partialorder %v2893, 0.0004427343
        %v2895 = vsel %vm2894, %v2892, %v2889
        %v2896 = vadd.f32 %v2788, 1.0
        %v2897 = vlog2.pop %v2896
        %v2898 = vmul.f32 %v2897, 0.6931472
        %v2899 = vmul.f32 -0.5, %v2788
        %v2900 = vadd.f32 %v2899, 1.0
        %v2901 = vmul.f32 %v2900, %v2788
        %v2902 = vand.u32 2147483647, %v2788
        %vm2903 = vcmp.lt.f32.partialorder %v2902, 0.0004427343
        %v2904 = vsel %vm2903, %v2901, %v2898
        %v2905 = vadd.f32 %v2790, 1.0
        %v2906 = vlog2.pop %v2905
        %v2907 = vmul.f32 %v2906, 0.6931472
        %v2908 = vmul.f32 -0.5, %v2790
        %v2909 = vadd.f32 %v2908, 1.0
        %v2910 = vmul.f32 %v2909, %v2790
        %v2911 = vand.u32 2147483647, %v2790
        %vm2912 = vcmp.lt.f32.partialorder %v2911, 0.0004427343
        %v2913 = vsel %vm2912, %v2910, %v2907
        %v2914 = vadd.f32 %v2792, 1.0
        %v2915 = vlog2.pop %v2914
        %v2916 = vmul.f32 %v2915, 0.6931472
        %v2917 = vmul.f32 -0.5, %v2792
        %v2918 = vadd.f32 %v2917, 1.0
        %v2919 = vmul.f32 %v2918, %v2792
        %v2920 = vand.u32 2147483647, %v2792
        %vm2921 = vcmp.lt.f32.partialorder %v2920, 0.0004427343
        %v2922 = vsel %vm2921, %v2919, %v2916
        %v2923 = vadd.f32 %v2794, 1.0
        %v2924 = vlog2.pop %v2923
        %v2925 = vmul.f32 %v2924, 0.6931472
        %v2926 = vmul.f32 -0.5, %v2794
        %v2927 = vadd.f32 %v2926, 1.0
        %v2928 = vmul.f32 %v2927, %v2794
        %v2929 = vand.u32 2147483647, %v2794
        %vm2930 = vcmp.lt.f32.partialorder %v2929, 0.0004427343
        %v2931 = vsel %vm2930, %v2928, %v2925
        %v2932 = vadd.f32 %v2796, 1.0
        %v2933 = vlog2.pop %v2932
        %v2934 = vmul.f32 %v2933, 0.6931472
        %v2935 = vmul.f32 -0.5, %v2796
        %v2936 = vadd.f32 %v2935, 1.0
        %v2937 = vmul.f32 %v2936, %v2796
        %v2938 = vand.u32 2147483647, %v2796
        %vm2939 = vcmp.lt.f32.partialorder %v2938, 0.0004427343
        %v2940 = vsel %vm2939, %v2937, %v2934
        %v2941 = vadd.f32 %v2717, %v2805
        %v2942 = vadd.f32 %v2718, %v2814
        %v2943 = vadd.f32 %v2719, %v2823
        %v2944 = vadd.f32 %v2720, %v2832
        %v2945 = vadd.f32 %v2721, %v2841
        %v2946 = vadd.f32 %v2722, %v2850
        %v2947 = vadd.f32 %v2723, %v2859
        %v2948 = vadd.f32 %v2724, %v2868
        %v2949 = vadd.f32 %v2725, %v2877
        %v2950 = vadd.f32 %v2726, %v2886
        %v2951 = vadd.f32 %v2727, %v2895
        %v2952 = vadd.f32 %v2728, %v2904
        %v2953 = vadd.f32 %v2729, %v2913
        %v2954 = vadd.f32 %v2730, %v2922
        %v2955 = vadd.f32 %v2731, %v2931
        %v2956 = vadd.f32 %v2732, %v2940
        %2957 = vmatprep.subr.mxu0 %v2942
        %2958 = vmatpush1.msra.mxu0 %v2941
        %2959 = vmatprep.subr.mxu0 %v2944
        %2960 = vmatpush1.msra.mxu0 %v2943
        %2961 = vmatprep.subr.mxu0 %v2946
        %2962 = vmatpush1.msra.mxu0 %v2945
        %2963 = vmatprep.subr.mxu0 %v2948
        %2964 = vmatpush1.msra.mxu0 %v2947
        %2965 = vmatprep.subr.mxu0 %v2950
        %2966 = vmatpush1.msra.mxu0 %v2949
        %2967 = vmatprep.subr.mxu0 %v2952
        %2968 = vmatpush1.msra.mxu0 %v2951
        %2969 = vmatprep.subr.mxu0 %v2954
        %2970 = vmatpush1.msra.mxu0 %v2953
        %2971 = vmatprep.subr.mxu0 %v2956
        %2972 = vmatpush1.msra.mxu0 %v2955
        %2973 = vmatprep.subr.mxu0 0.0
        %2974 = vmatpush1.msra.mxu0 0.0
        %2975 = vmatprep.subr.mxu0 0.0
        %2976 = vmatpush1.msra.mxu0 0.0
        %2977 = vmatprep.subr.mxu0 0.0
        %2978 = vmatpush1.msra.mxu0 0.0
        %2979 = vmatprep.subr.mxu0 0.0
        %2980 = vmatpush1.msra.mxu0 0.0
        %2981 = vmatprep.subr.mxu0 0.0
        %2982 = vmatpush1.msra.mxu0 0.0
        %2983 = vmatprep.subr.mxu0 0.0
        %2984 = vmatpush1.msra.mxu0 0.0
        %2985 = vmatprep.subr.mxu0 0.0
        %2986 = vmatpush1.msra.mxu0 0.0
        %2987 = vmatprep.subr.mxu0 0.0
        %2988 = vmatpush1.msra.mxu0 0.0
        %2989 = vmatprep.subr.mxu0 0.0
        %2990 = vmatpush1.msra.mxu0 0.0
        %2991 = vmatprep.subr.mxu0 0.0
        %2992 = vmatpush1.msra.mxu0 0.0
        %2993 = vmatprep.subr.mxu0 0.0
        %2994 = vmatpush1.msra.mxu0 0.0
        %2995 = vmatprep.subr.mxu0 0.0
        %2996 = vmatpush1.msra.mxu0 0.0
        %2997 = vmatprep.subr.mxu0 0.0
        %2998 = vmatpush1.msra.mxu0 0.0
        %2999 = vmatprep.subr.mxu0 0.0
        %3000 = vmatpush1.msra.mxu0 0.0
        %3001 = vmatprep.subr.mxu0 0.0
        %3002 = vmatpush1.msra.mxu0 0.0
        %3003 = vmatprep.subr.mxu0 0.0
        %3004 = vmatpush1.msra.mxu0 0.0
        %3005 = vmatprep.subr.mxu0 0.0
        %3006 = vmatpush1.msra.mxu0 0.0
        %3007 = vmatprep.subr.mxu0 0.0
        %3008 = vmatpush1.msra.mxu0 0.0
        %3009 = vmatprep.subr.mxu0 0.0
        %3010 = vmatpush1.msra.mxu0 0.0
        %3011 = vmatprep.subr.mxu0 0.0
        %3012 = vmatpush1.msra.mxu0 0.0
        %3013 = vmatprep.subr.mxu0 0.0
        %3014 = vmatpush1.msra.mxu0 0.0
        %3015 = vmatprep.subr.mxu0 0.0
        %3016 = vmatpush1.msra.mxu0 0.0
        %3017 = vmatprep.subr.mxu0 0.0
        %3018 = vmatpush1.msra.mxu0 0.0
        %3019 = vmatprep.subr.mxu0 0.0
        %3020 = vmatpush1.msra.mxu0 0.0
        %3021 = vmatprep.mubr.f32.mxu0 0.0
        %3022 = vmatmul.mubr.f32.gmra.mrb[0].mxu0 %v1011
        %v3023 = vpop.f32.mrb[0].mxu0
        %v3024 = vadd.f32 %v617, %v3023
        %v3025 = vpop.f32.mrb[0].mxu0
        %v3026 = vadd.f32 %v617, %v3025
        %3027 = vmatprep.mubr.f32.mxu0 0.0
        %3028 = vmatmul.mubr.f32.gmra.mrb[0].mxu0 %v1014
        %v3029 = vpop.f32.mrb[0].mxu0
        %v3030 = vadd.f32 %v622, %v3029
        %v3031 = vpop.f32.mrb[0].mxu0
        %v3032 = vadd.f32 %v622, %v3031
        %3033 = vmatprep.mubr.f32.mxu0 0.0
        %3034 = vmatmul.mubr.f32.gmra.mrb[0].mxu0 %v1017
        %v3035 = vpop.f32.mrb[0].mxu0
        %v3036 = vadd.f32 %v627, %v3035
        %v3037 = vpop.f32.mrb[0].mxu0
        %v3038 = vadd.f32 %v627, %v3037
        %3039 = vmatprep.mubr.f32.mxu0 0.0
        %3040 = vmatmul.mubr.f32.gmra.mrb[0].mxu0 %v1020
        %v3041 = vpop.f32.mrb[0].mxu0
        %v3042 = vadd.f32 %v632, %v3041
        %v3043 = vpop.f32.mrb[0].mxu0
        %v3044 = vadd.f32 %v632, %v3043
        %3045 = vmatprep.mubr.f32.mxu0 0.0
        %3046 = vmatmul.mubr.f32.gmra.mrb[0].mxu0 %v1023
        %v3047 = vpop.f32.mrb[0].mxu0
        %v3048 = vadd.f32 %v637, %v3047
        %v3049 = vpop.f32.mrb[0].mxu0
        %v3050 = vadd.f32 %v637, %v3049
        %3051 = vdwg.mxu0
        %s3052 = sld [smem:[#allocation4 + $0x4]]
        %s3053 = ssub.f32 0.0, %s3052
        %v3054 = vmax.f32 %v3048, 0.0
        %v3055 = vmax.f32 %v3050, 0.0
        %v3056 = vstv %s3053
        %v3057 = vmul.f32 %v3056, %v3054
        %v3058 = vmul.f32 %v3056, %v3055
        %v3059 = vmul.f32 %v3057, 1.442695
        %v3060 = vpow.pop %v3059
        %v3061 = vmul.f32 %v3058, 1.442695
        %v3062 = vpow.pop %v3061
        %v3063 = vsub.f32 1.0, %v3060
        %v3064 = vsub.f32 1.0, %v3062
        %v3065 = vmul.f32 %v3063, %v2617
        %v3066 = vmul.f32 %v3064, %v2618
        %v3067 = vlaneseq
        %v3068 = vshrl.u32 %v3067, 7
        %v3069 = vsub.s32 0, %v3068
        %v3070 = vrot.slane %v3065, %v3069
        %v3071 = vlaneseq
        %v3072 = vshrl.u32 %v3071, 7
        %v3073 = vsub.s32 0, %v3072
        %v3074 = vrot.slane %v3066, %v3073
        %v3075 = vmul.f32 %v3070, %v3024
        %v3076 = vmul.f32 %v3074, %v3026
        %v3077 = vmul.f32 %v3070, %v3030
        %v3078 = vmul.f32 %v3074, %v3032
        %v3079 = vmul.f32 %v3070, %v3036
        %v3080 = vmul.f32 %v3074, %v3038
        %v3081 = vmul.f32 %v3070, %v3042
        %v3082 = vmul.f32 %v3074, %v3044
        %v3083 = vadd.f32 %v2599, %v3075
        %v3084 = vadd.f32 %v2600, %v3076
        %v3085 = vadd.f32 %v2601, %v3077
        %v3086 = vadd.f32 %v2602, %v3078
        %v3087 = vadd.f32 %v2603, %v3079
        %v3088 = vadd.f32 %v2604, %v3080
        %v3089 = vadd.f32 %v2605, %v3081
        %v3090 = vadd.f32 %v2606, %v3082
        %s3091 = sld [smem:[#allocation2 + $0x4]]
        %v3092 = vstv %s3091
        %v3093 = vmul.f32 %v3065, %v3092
        %v3094 = vmul.f32 %v3066, %v3092
        %v3095 = vadd.f32 %v2611, %v3093
        %v3096 = vadd.f32 %v2612, %v3094
        %v3097 = vsub.f32 1.0, %v3063
        %v3098 = vsub.f32 1.0, %v3064
        %v3099 = vadd.f32 %v3097, 1e-10
        %v3100 = vadd.f32 %v3098, 1e-10
        %v3101 = vmul.f32 %v2617, %v3099
        %v3102 = vmul.f32 %v2618, %v3100
        %s3103 = scalar_lea.vmem %s502, 160 [#allocation6]
        %v3104 = vld [vmem:[%s3103] sm:$0xff]
        %v3105 = vld [vmem:[%s3103 + $0x8] sm:$0xff]
        %v3106 = vld [vmem:[%s3103 + $0x10] sm:$0xff]
        %v3107 = vld [vmem:[%s3103 + $0x18] sm:$0xff]
        %v3112 = vunpack.c.l.b16 %v3104
        %v3113 = vunpack.c.h.b16 %v3104
        %v3114 = vunpack.c.l.b16 %v3105
        %v3115 = vunpack.c.h.b16 %v3105
        %v3116 = vunpack.c.l.b16 %v3106
        %v3117 = vunpack.c.h.b16 %v3106
        %v3118 = vunpack.c.l.b16 %v3107
        %v3119 = vunpack.c.h.b16 %v3107
        %v3120 = vpack.c.b16 %v3114, %v3112
        %v3121 = vpack.c.b16 %v3115, %v3113
        %v3122 = vpack.c.b16 %v3118, %v3116
        %v3123 = vpack.c.b16 %v3119, %v3117
        %3128 = vmatprep.subr.bf16.mxu0 %v3121
        %3129 = vmatpush1.bf16.msra.mxu0 %v3120
        %3130 = vmatprep.subr.bf16.mxu0 %v3123
        %3131 = vmatpush1.bf16.msra.mxu0 %v3122
        %3132 = vmatprep.subr.bf16.mxu0 0
        %3133 = vmatpush1.bf16.msra.mxu0 0
        %3134 = vmatprep.subr.bf16.mxu0 0
        %3135 = vmatpush1.bf16.msra.mxu0 0
        %3136 = vmatprep.subr.bf16.mxu0 0
        %3137 = vmatpush1.bf16.msra.mxu0 0
        %3138 = vmatprep.subr.bf16.mxu0 0
        %3139 = vmatpush1.bf16.msra.mxu0 0
        %3140 = vmatprep.subr.bf16.mxu0 0
        %3141 = vmatpush1.bf16.msra.mxu0 0
        %3142 = vmatprep.subr.bf16.mxu0 0
        %3143 = vmatpush1.bf16.msra.mxu0 0
        %3144 = vmatprep.subr.bf16.mxu0 0
        %3145 = vmatpush1.bf16.msra.mxu0 0
        %3146 = vmatprep.subr.bf16.mxu0 0
        %3147 = vmatpush1.bf16.msra.mxu0 0
        %3148 = vmatprep.subr.bf16.mxu0 0
        %3149 = vmatpush1.bf16.msra.mxu0 0
        %3150 = vmatprep.subr.bf16.mxu0 0
        %3151 = vmatpush1.bf16.msra.mxu0 0
        %3152 = vmatprep.subr.bf16.mxu0 0
        %3153 = vmatpush1.bf16.msra.mxu0 0
        %3154 = vmatprep.subr.bf16.mxu0 0
        %3155 = vmatpush1.bf16.msra.mxu0 0
        %3156 = vmatprep.subr.bf16.mxu0 0
        %3157 = vmatpush1.bf16.msra.mxu0 0
        %3158 = vmatprep.subr.bf16.mxu0 0
        %3159 = vmatpush1.bf16.msra.mxu0 0
        %3160 = vmatprep.mubr.bf16.mxu0 0
        %3161 = vmatmul.mubr.bf16.gmra.mrb[0].mxu0 %v685
        %v3162 = vpop.f32.mrb[0].mxu0
        %v3163 = vadd.f32 %v572, %v3162
        %v3164 = vpop.f32.mrb[0].mxu0
        %v3165 = vadd.f32 %v572, %v3164
        %v3166 = vpop.f32.mrb[0].mxu0
        %v3167 = vadd.f32 %v577, %v3166
        %v3168 = vpop.f32.mrb[0].mxu0
        %v3169 = vadd.f32 %v577, %v3168
        %3170 = vmatprep.mubr.bf16.mxu0 0
        %3171 = vmatmul.mubr.bf16.gmra.mrb[0].mxu0 %v688
        %v3172 = vpop.f32.mrb[0].mxu0
        %v3173 = vadd.f32 %v582, %v3172
        %v3174 = vpop.f32.mrb[0].mxu0
        %v3175 = vadd.f32 %v582, %v3174
        %v3176 = vpop.f32.mrb[0].mxu0
        %v3177 = vadd.f32 %v587, %v3176
        %v3178 = vpop.f32.mrb[0].mxu0
        %v3179 = vadd.f32 %v587, %v3178
        %3180 = vmatprep.mubr.bf16.mxu0 0
        %3181 = vmatmul.mubr.bf16.gmra.mrb[0].mxu0 %v691
        %v3182 = vpop.f32.mrb[0].mxu0
        %v3183 = vadd.f32 %v592, %v3182
        %v3184 = vpop.f32.mrb[0].mxu0
        %v3185 = vadd.f32 %v592, %v3184
        %v3186 = vpop.f32.mrb[0].mxu0
        %v3187 = vadd.f32 %v597, %v3186
        %v3188 = vpop.f32.mrb[0].mxu0
        %v3189 = vadd.f32 %v597, %v3188
        %3190 = vmatprep.mubr.bf16.mxu0 0
        %3191 = vmatmul.mubr.bf16.gmra.mrb[0].mxu0 %v694
        %v3192 = vpop.f32.mrb[0].mxu0
        %v3193 = vadd.f32 %v602, %v3192
        %v3194 = vpop.f32.mrb[0].mxu0
        %v3195 = vadd.f32 %v602, %v3194
        %v3196 = vpop.f32.mrb[0].mxu0
        %v3197 = vadd.f32 %v607, %v3196
        %v3198 = vpop.f32.mrb[0].mxu0
        %v3199 = vadd.f32 %v607, %v3198
        %3200 = vdwg.mxu0
        %v3201 = vmax.f32 %v3163, 0.0
        %v3202 = vmax.f32 %v3165, 0.0
        %v3203 = vmax.f32 %v3167, 0.0
        %v3204 = vmax.f32 %v3169, 0.0
        %v3205 = vmax.f32 %v3173, 0.0
        %v3206 = vmax.f32 %v3175, 0.0
        %v3207 = vmax.f32 %v3177, 0.0
        %v3208 = vmax.f32 %v3179, 0.0
        %v3209 = vmax.f32 %v3183, 0.0
        %v3210 = vmax.f32 %v3185, 0.0
        %v3211 = vmax.f32 %v3187, 0.0
        %v3212 = vmax.f32 %v3189, 0.0
        %v3213 = vmax.f32 %v3193, 0.0
        %v3214 = vmax.f32 %v3195, 0.0
        %v3215 = vmax.f32 %v3197, 0.0
        %v3216 = vmax.f32 %v3199, 0.0
        %v3217 = vand.u32 2147483647, %v3163
        %v3218 = vand.u32 2147483647, %v3165
        %v3219 = vand.u32 2147483647, %v3167
        %v3220 = vand.u32 2147483647, %v3169
        %v3221 = vand.u32 2147483647, %v3173
        %v3222 = vand.u32 2147483647, %v3175
        %v3223 = vand.u32 2147483647, %v3177
        %v3224 = vand.u32 2147483647, %v3179
        %v3225 = vand.u32 2147483647, %v3183
        %v3226 = vand.u32 2147483647, %v3185
        %v3227 = vand.u32 2147483647, %v3187
        %v3228 = vand.u32 2147483647, %v3189
        %v3229 = vand.u32 2147483647, %v3193
        %v3230 = vand.u32 2147483647, %v3195
        %v3231 = vand.u32 2147483647, %v3197
        %v3232 = vand.u32 2147483647, %v3199
        %v3233 = vsub.f32 0.0, %v3217
        %v3234 = vsub.f32 0.0, %v3218
        %v3235 = vsub.f32 0.0, %v3219
        %v3236 = vsub.f32 0.0, %v3220
        %v3237 = vsub.f32 0.0, %v3221
        %v3238 = vsub.f32 0.0, %v3222
        %v3239 = vsub.f32 0.0, %v3223
        %v3240 = vsub.f32 0.0, %v3224
        %v3241 = vsub.f32 0.0, %v3225
        %v3242 = vsub.f32 0.0, %v3226
        %v3243 = vsub.f32 0.0, %v3227
        %v3244 = vsub.f32 0.0, %v3228
        %v3245 = vsub.f32 0.0, %v3229
        %v3246 = vsub.f32 0.0, %v3230
        %v3247 = vsub.f32 0.0, %v3231
        %v3248 = vsub.f32 0.0, %v3232
        %v3249 = vmul.f32 %v3233, 1.442695
        %v3250 = vpow.pop %v3249
        %v3251 = vmul.f32 %v3234, 1.442695
        %v3252 = vpow.pop %v3251
        %v3253 = vmul.f32 %v3235, 1.442695
        %v3254 = vpow.pop %v3253
        %v3255 = vmul.f32 %v3236, 1.442695
        %v3256 = vpow.pop %v3255
        %v3257 = vmul.f32 %v3237, 1.442695
        %v3258 = vpow.pop %v3257
        %v3259 = vmul.f32 %v3238, 1.442695
        %v3260 = vpow.pop %v3259
        %v3261 = vmul.f32 %v3239, 1.442695
        %v3262 = vpow.pop %v3261
        %v3263 = vmul.f32 %v3240, 1.442695
        %v3264 = vpow.pop %v3263
        %v3265 = vmul.f32 %v3241, 1.442695
        %v3266 = vpow.pop %v3265
        %v3267 = vmul.f32 %v3242, 1.442695
        %v3268 = vpow.pop %v3267
        %v3269 = vmul.f32 %v3243, 1.442695
        %v3270 = vpow.pop %v3269
        %v3271 = vmul.f32 %v3244, 1.442695
        %v3272 = vpow.pop %v3271
        %v3273 = vmul.f32 %v3245, 1.442695
        %v3274 = vpow.pop %v3273
        %v3275 = vmul.f32 %v3246, 1.442695
        %v3276 = vpow.pop %v3275
        %v3277 = vmul.f32 %v3247, 1.442695
        %v3278 = vpow.pop %v3277
        %v3279 = vmul.f32 %v3248, 1.442695
        %v3280 = vpow.pop %v3279
        %v3281 = vadd.f32 %v3250, 1.0
        %v3282 = vlog2.pop %v3281
        %v3283 = vmul.f32 %v3282, 0.6931472
        %v3284 = vmul.f32 -0.5, %v3250
        %v3285 = vadd.f32 %v3284, 1.0
        %v3286 = vmul.f32 %v3285, %v3250
        %v3287 = vand.u32 2147483647, %v3250
        %vm3288 = vcmp.lt.f32.partialorder %v3287, 0.0004427343
        %v3289 = vsel %vm3288, %v3286, %v3283
        %v3290 = vadd.f32 %v3252, 1.0
        %v3291 = vlog2.pop %v3290
        %v3292 = vmul.f32 %v3291, 0.6931472
        %v3293 = vmul.f32 -0.5, %v3252
        %v3294 = vadd.f32 %v3293, 1.0
        %v3295 = vmul.f32 %v3294, %v3252
        %v3296 = vand.u32 2147483647, %v3252
        %vm3297 = vcmp.lt.f32.partialorder %v3296, 0.0004427343
        %v3298 = vsel %vm3297, %v3295, %v3292
        %v3299 = vadd.f32 %v3254, 1.0
        %v3300 = vlog2.pop %v3299
        %v3301 = vmul.f32 %v3300, 0.6931472
        %v3302 = vmul.f32 -0.5, %v3254
        %v3303 = vadd.f32 %v3302, 1.0
        %v3304 = vmul.f32 %v3303, %v3254
        %v3305 = vand.u32 2147483647, %v3254
        %vm3306 = vcmp.lt.f32.partialorder %v3305, 0.0004427343
        %v3307 = vsel %vm3306, %v3304, %v3301
        %v3308 = vadd.f32 %v3256, 1.0
        %v3309 = vlog2.pop %v3308
        %v3310 = vmul.f32 %v3309, 0.6931472
        %v3311 = vmul.f32 -0.5, %v3256
        %v3312 = vadd.f32 %v3311, 1.0
        %v3313 = vmul.f32 %v3312, %v3256
        %v3314 = vand.u32 2147483647, %v3256
        %vm3315 = vcmp.lt.f32.partialorder %v3314, 0.0004427343
        %v3316 = vsel %vm3315, %v3313, %v3310
        %v3317 = vadd.f32 %v3258, 1.0
        %v3318 = vlog2.pop %v3317
        %v3319 = vmul.f32 %v3318, 0.6931472
        %v3320 = vmul.f32 -0.5, %v3258
        %v3321 = vadd.f32 %v3320, 1.0
        %v3322 = vmul.f32 %v3321, %v3258
        %v3323 = vand.u32 2147483647, %v3258
        %vm3324 = vcmp.lt.f32.partialorder %v3323, 0.0004427343
        %v3325 = vsel %vm3324, %v3322, %v3319
        %v3326 = vadd.f32 %v3260, 1.0
        %v3327 = vlog2.pop %v3326
        %v3328 = vmul.f32 %v3327, 0.6931472
        %v3329 = vmul.f32 -0.5, %v3260
        %v3330 = vadd.f32 %v3329, 1.0
        %v3331 = vmul.f32 %v3330, %v3260
        %v3332 = vand.u32 2147483647, %v3260
        %vm3333 = vcmp.lt.f32.partialorder %v3332, 0.0004427343
        %v3334 = vsel %vm3333, %v3331, %v3328
        %v3335 = vadd.f32 %v3262, 1.0
        %v3336 = vlog2.pop %v3335
        %v3337 = vmul.f32 %v3336, 0.6931472
        %v3338 = vmul.f32 -0.5, %v3262
        %v3339 = vadd.f32 %v3338, 1.0
        %v3340 = vmul.f32 %v3339, %v3262
        %v3341 = vand.u32 2147483647, %v3262
        %vm3342 = vcmp.lt.f32.partialorder %v3341, 0.0004427343
        %v3343 = vsel %vm3342, %v3340, %v3337
        %v3344 = vadd.f32 %v3264, 1.0
        %v3345 = vlog2.pop %v3344
        %v3346 = vmul.f32 %v3345, 0.6931472
        %v3347 = vmul.f32 -0.5, %v3264
        %v3348 = vadd.f32 %v3347, 1.0
        %v3349 = vmul.f32 %v3348, %v3264
        %v3350 = vand.u32 2147483647, %v3264
        %vm3351 = vcmp.lt.f32.partialorder %v3350, 0.0004427343
        %v3352 = vsel %vm3351, %v3349, %v3346
        %v3353 = vadd.f32 %v3266, 1.0
        %v3354 = vlog2.pop %v3353
        %v3355 = vmul.f32 %v3354, 0.6931472
        %v3356 = vmul.f32 -0.5, %v3266
        %v3357 = vadd.f32 %v3356, 1.0
        %v3358 = vmul.f32 %v3357, %v3266
        %v3359 = vand.u32 2147483647, %v3266
        %vm3360 = vcmp.lt.f32.partialorder %v3359, 0.0004427343
        %v3361 = vsel %vm3360, %v3358, %v3355
        %v3362 = vadd.f32 %v3268, 1.0
        %v3363 = vlog2.pop %v3362
        %v3364 = vmul.f32 %v3363, 0.6931472
        %v3365 = vmul.f32 -0.5, %v3268
        %v3366 = vadd.f32 %v3365, 1.0
        %v3367 = vmul.f32 %v3366, %v3268
        %v3368 = vand.u32 2147483647, %v3268
        %vm3369 = vcmp.lt.f32.partialorder %v3368, 0.0004427343
        %v3370 = vsel %vm3369, %v3367, %v3364
        %v3371 = vadd.f32 %v3270, 1.0
        %v3372 = vlog2.pop %v3371
        %v3373 = vmul.f32 %v3372, 0.6931472
        %v3374 = vmul.f32 -0.5, %v3270
        %v3375 = vadd.f32 %v3374, 1.0
        %v3376 = vmul.f32 %v3375, %v3270
        %v3377 = vand.u32 2147483647, %v3270
        %vm3378 = vcmp.lt.f32.partialorder %v3377, 0.0004427343
        %v3379 = vsel %vm3378, %v3376, %v3373
        %v3380 = vadd.f32 %v3272, 1.0
        %v3381 = vlog2.pop %v3380
        %v3382 = vmul.f32 %v3381, 0.6931472
        %v3383 = vmul.f32 -0.5, %v3272
        %v3384 = vadd.f32 %v3383, 1.0
        %v3385 = vmul.f32 %v3384, %v3272
        %v3386 = vand.u32 2147483647, %v3272
        %vm3387 = vcmp.lt.f32.partialorder %v3386, 0.0004427343
        %v3388 = vsel %vm3387, %v3385, %v3382
        %v3389 = vadd.f32 %v3274, 1.0
        %v3390 = vlog2.pop %v3389
        %v3391 = vmul.f32 %v3390, 0.6931472
        %v3392 = vmul.f32 -0.5, %v3274
        %v3393 = vadd.f32 %v3392, 1.0
        %v3394 = vmul.f32 %v3393, %v3274
        %v3395 = vand.u32 2147483647, %v3274
        %vm3396 = vcmp.lt.f32.partialorder %v3395, 0.0004427343
        %v3397 = vsel %vm3396, %v3394, %v3391
        %v3398 = vadd.f32 %v3276, 1.0
        %v3399 = vlog2.pop %v3398
        %v3400 = vmul.f32 %v3399, 0.6931472
        %v3401 = vmul.f32 -0.5, %v3276
        %v3402 = vadd.f32 %v3401, 1.0
        %v3403 = vmul.f32 %v3402, %v3276
        %v3404 = vand.u32 2147483647, %v3276
        %vm3405 = vcmp.lt.f32.partialorder %v3404, 0.0004427343
        %v3406 = vsel %vm3405, %v3403, %v3400
        %v3407 = vadd.f32 %v3278, 1.0
        %v3408 = vlog2.pop %v3407
        %v3409 = vmul.f32 %v3408, 0.6931472
        %v3410 = vmul.f32 -0.5, %v3278
        %v3411 = vadd.f32 %v3410, 1.0
        %v3412 = vmul.f32 %v3411, %v3278
        %v3413 = vand.u32 2147483647, %v3278
        %vm3414 = vcmp.lt.f32.partialorder %v3413, 0.0004427343
        %v3415 = vsel %vm3414, %v3412, %v3409
        %v3416 = vadd.f32 %v3280, 1.0
        %v3417 = vlog2.pop %v3416
        %v3418 = vmul.f32 %v3417, 0.6931472
        %v3419 = vmul.f32 -0.5, %v3280
        %v3420 = vadd.f32 %v3419, 1.0
        %v3421 = vmul.f32 %v3420, %v3280
        %v3422 = vand.u32 2147483647, %v3280
        %vm3423 = vcmp.lt.f32.partialorder %v3422, 0.0004427343
        %v3424 = vsel %vm3423, %v3421, %v3418
        %v3425 = vadd.f32 %v3201, %v3289
        %v3426 = vadd.f32 %v3202, %v3298
        %v3427 = vadd.f32 %v3203, %v3307
        %v3428 = vadd.f32 %v3204, %v3316
        %v3429 = vadd.f32 %v3205, %v3325
        %v3430 = vadd.f32 %v3206, %v3334
        %v3431 = vadd.f32 %v3207, %v3343
        %v3432 = vadd.f32 %v3208, %v3352
        %v3433 = vadd.f32 %v3209, %v3361
        %v3434 = vadd.f32 %v3210, %v3370
        %v3435 = vadd.f32 %v3211, %v3379
        %v3436 = vadd.f32 %v3212, %v3388
        %v3437 = vadd.f32 %v3213, %v3397
        %v3438 = vadd.f32 %v3214, %v3406
        %v3439 = vadd.f32 %v3215, %v3415
        %v3440 = vadd.f32 %v3216, %v3424
        %3441 = vmatprep.subr.mxu0 %v3426
        %3442 = vmatpush1.msra.mxu0 %v3425
        %3443 = vmatprep.subr.mxu0 %v3428
        %3444 = vmatpush1.msra.mxu0 %v3427
        %3445 = vmatprep.subr.mxu0 %v3430
        %3446 = vmatpush1.msra.mxu0 %v3429
        %3447 = vmatprep.subr.mxu0 %v3432
        %3448 = vmatpush1.msra.mxu0 %v3431
        %3449 = vmatprep.subr.mxu0 %v3434
        %3450 = vmatpush1.msra.mxu0 %v3433
        %3451 = vmatprep.subr.mxu0 %v3436
        %3452 = vmatpush1.msra.mxu0 %v3435
        %3453 = vmatprep.subr.mxu0 %v3438
        %3454 = vmatpush1.msra.mxu0 %v3437
        %3455 = vmatprep.subr.mxu0 %v3440
        %3456 = vmatpush1.msra.mxu0 %v3439
        %3457 = vmatprep.subr.mxu0 0.0
        %3458 = vmatpush1.msra.mxu0 0.0
        %3459 = vmatprep.subr.mxu0 0.0
        %3460 = vmatpush1.msra.mxu0 0.0
        %3461 = vmatprep.subr.mxu0 0.0
        %3462 = vmatpush1.msra.mxu0 0.0
        %3463 = vmatprep.subr.mxu0 0.0
        %3464 = vmatpush1.msra.mxu0 0.0
        %3465 = vmatprep.subr.mxu0 0.0
        %3466 = vmatpush1.msra.mxu0 0.0
        %3467 = vmatprep.subr.mxu0 0.0
        %3468 = vmatpush1.msra.mxu0 0.0
        %3469 = vmatprep.subr.mxu0 0.0
        %3470 = vmatpush1.msra.mxu0 0.0
        %3471 = vmatprep.subr.mxu0 0.0
        %3472 = vmatpush1.msra.mxu0 0.0
        %3473 = vmatprep.subr.mxu0 0.0
        %3474 = vmatpush1.msra.mxu0 0.0
        %3475 = vmatprep.subr.mxu0 0.0
        %3476 = vmatpush1.msra.mxu0 0.0
        %3477 = vmatprep.subr.mxu0 0.0
        %3478 = vmatpush1.msra.mxu0 0.0
        %3479 = vmatprep.subr.mxu0 0.0
        %3480 = vmatpush1.msra.mxu0 0.0
        %3481 = vmatprep.subr.mxu0 0.0
        %3482 = vmatpush1.msra.mxu0 0.0
        %3483 = vmatprep.subr.mxu0 0.0
        %3484 = vmatpush1.msra.mxu0 0.0
        %3485 = vmatprep.subr.mxu0 0.0
        %3486 = vmatpush1.msra.mxu0 0.0
        %3487 = vmatprep.subr.mxu0 0.0
        %3488 = vmatpush1.msra.mxu0 0.0
        %3489 = vmatprep.subr.mxu0 0.0
        %3490 = vmatpush1.msra.mxu0 0.0
        %3491 = vmatprep.subr.mxu0 0.0
        %3492 = vmatpush1.msra.mxu0 0.0
        %3493 = vmatprep.subr.mxu0 0.0
        %3494 = vmatpush1.msra.mxu0 0.0
        %3495 = vmatprep.subr.mxu0 0.0
        %3496 = vmatpush1.msra.mxu0 0.0
        %3497 = vmatprep.subr.mxu0 0.0
        %3498 = vmatpush1.msra.mxu0 0.0
        %3499 = vmatprep.subr.mxu0 0.0
        %3500 = vmatpush1.msra.mxu0 0.0
        %3501 = vmatprep.subr.mxu0 0.0
        %3502 = vmatpush1.msra.mxu0 0.0
        %3503 = vmatprep.subr.mxu0 0.0
        %3504 = vmatpush1.msra.mxu0 0.0
        %3505 = vmatprep.mubr.f32.mxu0 0.0
        %3506 = vmatmul.mubr.f32.gmra.mrb[0].mxu0 %v1011
        %v3507 = vpop.f32.mrb[0].mxu0
        %v3508 = vadd.f32 %v617, %v3507
        %v3509 = vpop.f32.mrb[0].mxu0
        %v3510 = vadd.f32 %v617, %v3509
        %3511 = vmatprep.mubr.f32.mxu0 0.0
        %3512 = vmatmul.mubr.f32.gmra.mrb[0].mxu0 %v1014
        %v3513 = vpop.f32.mrb[0].mxu0
        %v3514 = vadd.f32 %v622, %v3513
        %v3515 = vpop.f32.mrb[0].mxu0
        %v3516 = vadd.f32 %v622, %v3515
        %3517 = vmatprep.mubr.f32.mxu0 0.0
        %3518 = vmatmul.mubr.f32.gmra.mrb[0].mxu0 %v1017
        %v3519 = vpop.f32.mrb[0].mxu0
        %v3520 = vadd.f32 %v627, %v3519
        %v3521 = vpop.f32.mrb[0].mxu0
        %v3522 = vadd.f32 %v627, %v3521
        %3523 = vmatprep.mubr.f32.mxu0 0.0
        %3524 = vmatmul.mubr.f32.gmra.mrb[0].mxu0 %v1020
        %v3525 = vpop.f32.mrb[0].mxu0
        %v3526 = vadd.f32 %v632, %v3525
        %v3527 = vpop.f32.mrb[0].mxu0
        %v3528 = vadd.f32 %v632, %v3527
        %3529 = vmatprep.mubr.f32.mxu0 0.0
        %3530 = vmatmul.mubr.f32.gmra.mrb[0].mxu0 %v1023
        %v3531 = vpop.f32.mrb[0].mxu0
        %v3532 = vadd.f32 %v637, %v3531
        %v3533 = vpop.f32.mrb[0].mxu0
        %v3534 = vadd.f32 %v637, %v3533
        %3535 = vdwg.mxu0
        %s3536 = sld [smem:[#allocation4 + $0x5]]
        %s3537 = ssub.f32 0.0, %s3536
        %v3538 = vmax.f32 %v3532, 0.0
        %v3539 = vmax.f32 %v3534, 0.0
        %v3540 = vstv %s3537
        %v3541 = vmul.f32 %v3540, %v3538
        %v3542 = vmul.f32 %v3540, %v3539
        %v3543 = vmul.f32 %v3541, 1.442695
        %v3544 = vpow.pop %v3543
        %v3545 = vmul.f32 %v3542, 1.442695
        %v3546 = vpow.pop %v3545
        %v3547 = vsub.f32 1.0, %v3544
        %v3548 = vsub.f32 1.0, %v3546
        %v3549 = vmul.f32 %v3547, %v3101
        %v3550 = vmul.f32 %v3548, %v3102
        %v3551 = vlaneseq
        %v3552 = vshrl.u32 %v3551, 7
        %v3553 = vsub.s32 0, %v3552
        %v3554 = vrot.slane %v3549, %v3553
        %v3555 = vlaneseq
        %v3556 = vshrl.u32 %v3555, 7
        %v3557 = vsub.s32 0, %v3556
        %v3558 = vrot.slane %v3550, %v3557
        %v3559 = vmul.f32 %v3554, %v3508
        %v3560 = vmul.f32 %v3558, %v3510
        %v3561 = vmul.f32 %v3554, %v3514
        %v3562 = vmul.f32 %v3558, %v3516
        %v3563 = vmul.f32 %v3554, %v3520
        %v3564 = vmul.f32 %v3558, %v3522
        %v3565 = vmul.f32 %v3554, %v3526
        %v3566 = vmul.f32 %v3558, %v3528
        %v3567 = vadd.f32 %v3083, %v3559
        %v3568 = vadd.f32 %v3084, %v3560
        %v3569 = vadd.f32 %v3085, %v3561
        %v3570 = vadd.f32 %v3086, %v3562
        %v3571 = vadd.f32 %v3087, %v3563
        %v3572 = vadd.f32 %v3088, %v3564
        %v3573 = vadd.f32 %v3089, %v3565
        %v3574 = vadd.f32 %v3090, %v3566
        %s3575 = sld [smem:[#allocation2 + $0x5]]
        %v3576 = vstv %s3575
        %v3577 = vmul.f32 %v3549, %v3576
        %v3578 = vmul.f32 %v3550, %v3576
        %v3579 = vadd.f32 %v3095, %v3577
        %v3580 = vadd.f32 %v3096, %v3578
        %v3581 = vsub.f32 1.0, %v3547
        %v3582 = vsub.f32 1.0, %v3548
        %v3583 = vadd.f32 %v3581, 1e-10
        %v3584 = vadd.f32 %v3582, 1e-10
        %v3585 = vmul.f32 %v3101, %v3583
        %v3586 = vmul.f32 %v3102, %v3584
        %s3587 = scalar_lea.vmem %s502, 192 [#allocation6]
        %v3588 = vld [vmem:[%s3587] sm:$0xff]
        %v3589 = vld [vmem:[%s3587 + $0x8] sm:$0xff]
        %v3590 = vld [vmem:[%s3587 + $0x10] sm:$0xff]
        %v3591 = vld [vmem:[%s3587 + $0x18] sm:$0xff]
        %v3596 = vunpack.c.l.b16 %v3588
        %v3597 = vunpack.c.h.b16 %v3588
        %v3598 = vunpack.c.l.b16 %v3589
        %v3599 = vunpack.c.h.b16 %v3589
        %v3600 = vunpack.c.l.b16 %v3590
        %v3601 = vunpack.c.h.b16 %v3590
        %v3602 = vunpack.c.l.b16 %v3591
        %v3603 = vunpack.c.h.b16 %v3591
        %v3604 = vpack.c.b16 %v3598, %v3596
        %v3605 = vpack.c.b16 %v3599, %v3597
        %v3606 = vpack.c.b16 %v3602, %v3600
        %v3607 = vpack.c.b16 %v3603, %v3601
        %3612 = vmatprep.subr.bf16.mxu0 %v3605
        %3613 = vmatpush1.bf16.msra.mxu0 %v3604
        %3614 = vmatprep.subr.bf16.mxu0 %v3607
        %3615 = vmatpush1.bf16.msra.mxu0 %v3606
        %3616 = vmatprep.subr.bf16.mxu0 0
        %3617 = vmatpush1.bf16.msra.mxu0 0
        %3618 = vmatprep.subr.bf16.mxu0 0
        %3619 = vmatpush1.bf16.msra.mxu0 0
        %3620 = vmatprep.subr.bf16.mxu0 0
        %3621 = vmatpush1.bf16.msra.mxu0 0
        %3622 = vmatprep.subr.bf16.mxu0 0
        %3623 = vmatpush1.bf16.msra.mxu0 0
        %3624 = vmatprep.subr.bf16.mxu0 0
        %3625 = vmatpush1.bf16.msra.mxu0 0
        %3626 = vmatprep.subr.bf16.mxu0 0
        %3627 = vmatpush1.bf16.msra.mxu0 0
        %3628 = vmatprep.subr.bf16.mxu0 0
        %3629 = vmatpush1.bf16.msra.mxu0 0
        %3630 = vmatprep.subr.bf16.mxu0 0
        %3631 = vmatpush1.bf16.msra.mxu0 0
        %3632 = vmatprep.subr.bf16.mxu0 0
        %3633 = vmatpush1.bf16.msra.mxu0 0
        %3634 = vmatprep.subr.bf16.mxu0 0
        %3635 = vmatpush1.bf16.msra.mxu0 0
        %3636 = vmatprep.subr.bf16.mxu0 0
        %3637 = vmatpush1.bf16.msra.mxu0 0
        %3638 = vmatprep.subr.bf16.mxu0 0
        %3639 = vmatpush1.bf16.msra.mxu0 0
        %3640 = vmatprep.subr.bf16.mxu0 0
        %3641 = vmatpush1.bf16.msra.mxu0 0
        %3642 = vmatprep.subr.bf16.mxu0 0
        %3643 = vmatpush1.bf16.msra.mxu0 0
        %3644 = vmatprep.mubr.bf16.mxu0 0
        %3645 = vmatmul.mubr.bf16.gmra.mrb[0].mxu0 %v685
        %v3646 = vpop.f32.mrb[0].mxu0
        %v3647 = vadd.f32 %v572, %v3646
        %v3648 = vpop.f32.mrb[0].mxu0
        %v3649 = vadd.f32 %v572, %v3648
        %v3650 = vpop.f32.mrb[0].mxu0
        %v3651 = vadd.f32 %v577, %v3650
        %v3652 = vpop.f32.mrb[0].mxu0
        %v3653 = vadd.f32 %v577, %v3652
        %3654 = vmatprep.mubr.bf16.mxu0 0
        %3655 = vmatmul.mubr.bf16.gmra.mrb[0].mxu0 %v688
        %v3656 = vpop.f32.mrb[0].mxu0
        %v3657 = vadd.f32 %v582, %v3656
        %v3658 = vpop.f32.mrb[0].mxu0
        %v3659 = vadd.f32 %v582, %v3658
        %v3660 = vpop.f32.mrb[0].mxu0
        %v3661 = vadd.f32 %v587, %v3660
        %v3662 = vpop.f32.mrb[0].mxu0
        %v3663 = vadd.f32 %v587, %v3662
        %3664 = vmatprep.mubr.bf16.mxu0 0
        %3665 = vmatmul.mubr.bf16.gmra.mrb[0].mxu0 %v691
        %v3666 = vpop.f32.mrb[0].mxu0
        %v3667 = vadd.f32 %v592, %v3666
        %v3668 = vpop.f32.mrb[0].mxu0
        %v3669 = vadd.f32 %v592, %v3668
        %v3670 = vpop.f32.mrb[0].mxu0
        %v3671 = vadd.f32 %v597, %v3670
        %v3672 = vpop.f32.mrb[0].mxu0
        %v3673 = vadd.f32 %v597, %v3672
        %3674 = vmatprep.mubr.bf16.mxu0 0
        %3675 = vmatmul.mubr.bf16.gmra.mrb[0].mxu0 %v694
        %v3676 = vpop.f32.mrb[0].mxu0
        %v3677 = vadd.f32 %v602, %v3676
        %v3678 = vpop.f32.mrb[0].mxu0
        %v3679 = vadd.f32 %v602, %v3678
        %v3680 = vpop.f32.mrb[0].mxu0
        %v3681 = vadd.f32 %v607, %v3680
        %v3682 = vpop.f32.mrb[0].mxu0
        %v3683 = vadd.f32 %v607, %v3682
        %3684 = vdwg.mxu0
        %v3685 = vmax.f32 %v3647, 0.0
        %v3686 = vmax.f32 %v3649, 0.0
        %v3687 = vmax.f32 %v3651, 0.0
        %v3688 = vmax.f32 %v3653, 0.0
        %v3689 = vmax.f32 %v3657, 0.0
        %v3690 = vmax.f32 %v3659, 0.0
        %v3691 = vmax.f32 %v3661, 0.0
        %v3692 = vmax.f32 %v3663, 0.0
        %v3693 = vmax.f32 %v3667, 0.0
        %v3694 = vmax.f32 %v3669, 0.0
        %v3695 = vmax.f32 %v3671, 0.0
        %v3696 = vmax.f32 %v3673, 0.0
        %v3697 = vmax.f32 %v3677, 0.0
        %v3698 = vmax.f32 %v3679, 0.0
        %v3699 = vmax.f32 %v3681, 0.0
        %v3700 = vmax.f32 %v3683, 0.0
        %v3701 = vand.u32 2147483647, %v3647
        %v3702 = vand.u32 2147483647, %v3649
        %v3703 = vand.u32 2147483647, %v3651
        %v3704 = vand.u32 2147483647, %v3653
        %v3705 = vand.u32 2147483647, %v3657
        %v3706 = vand.u32 2147483647, %v3659
        %v3707 = vand.u32 2147483647, %v3661
        %v3708 = vand.u32 2147483647, %v3663
        %v3709 = vand.u32 2147483647, %v3667
        %v3710 = vand.u32 2147483647, %v3669
        %v3711 = vand.u32 2147483647, %v3671
        %v3712 = vand.u32 2147483647, %v3673
        %v3713 = vand.u32 2147483647, %v3677
        %v3714 = vand.u32 2147483647, %v3679
        %v3715 = vand.u32 2147483647, %v3681
        %v3716 = vand.u32 2147483647, %v3683
        %v3717 = vsub.f32 0.0, %v3701
        %v3718 = vsub.f32 0.0, %v3702
        %v3719 = vsub.f32 0.0, %v3703
        %v3720 = vsub.f32 0.0, %v3704
        %v3721 = vsub.f32 0.0, %v3705
        %v3722 = vsub.f32 0.0, %v3706
        %v3723 = vsub.f32 0.0, %v3707
        %v3724 = vsub.f32 0.0, %v3708
        %v3725 = vsub.f32 0.0, %v3709
        %v3726 = vsub.f32 0.0, %v3710
        %v3727 = vsub.f32 0.0, %v3711
        %v3728 = vsub.f32 0.0, %v3712
        %v3729 = vsub.f32 0.0, %v3713
        %v3730 = vsub.f32 0.0, %v3714
        %v3731 = vsub.f32 0.0, %v3715
        %v3732 = vsub.f32 0.0, %v3716
        %v3733 = vmul.f32 %v3717, 1.442695
        %v3734 = vpow.pop %v3733
        %v3735 = vmul.f32 %v3718, 1.442695
        %v3736 = vpow.pop %v3735
        %v3737 = vmul.f32 %v3719, 1.442695
        %v3738 = vpow.pop %v3737
        %v3739 = vmul.f32 %v3720, 1.442695
        %v3740 = vpow.pop %v3739
        %v3741 = vmul.f32 %v3721, 1.442695
        %v3742 = vpow.pop %v3741
        %v3743 = vmul.f32 %v3722, 1.442695
        %v3744 = vpow.pop %v3743
        %v3745 = vmul.f32 %v3723, 1.442695
        %v3746 = vpow.pop %v3745
        %v3747 = vmul.f32 %v3724, 1.442695
        %v3748 = vpow.pop %v3747
        %v3749 = vmul.f32 %v3725, 1.442695
        %v3750 = vpow.pop %v3749
        %v3751 = vmul.f32 %v3726, 1.442695
        %v3752 = vpow.pop %v3751
        %v3753 = vmul.f32 %v3727, 1.442695
        %v3754 = vpow.pop %v3753
        %v3755 = vmul.f32 %v3728, 1.442695
        %v3756 = vpow.pop %v3755
        %v3757 = vmul.f32 %v3729, 1.442695
        %v3758 = vpow.pop %v3757
        %v3759 = vmul.f32 %v3730, 1.442695
        %v3760 = vpow.pop %v3759
        %v3761 = vmul.f32 %v3731, 1.442695
        %v3762 = vpow.pop %v3761
        %v3763 = vmul.f32 %v3732, 1.442695
        %v3764 = vpow.pop %v3763
        %v3765 = vadd.f32 %v3734, 1.0
        %v3766 = vlog2.pop %v3765
        %v3767 = vmul.f32 %v3766, 0.6931472
        %v3768 = vmul.f32 -0.5, %v3734
        %v3769 = vadd.f32 %v3768, 1.0
        %v3770 = vmul.f32 %v3769, %v3734
        %v3771 = vand.u32 2147483647, %v3734
        %vm3772 = vcmp.lt.f32.partialorder %v3771, 0.0004427343
        %v3773 = vsel %vm3772, %v3770, %v3767
        %v3774 = vadd.f32 %v3736, 1.0
        %v3775 = vlog2.pop %v3774
        %v3776 = vmul.f32 %v3775, 0.6931472
        %v3777 = vmul.f32 -0.5, %v3736
        %v3778 = vadd.f32 %v3777, 1.0
        %v3779 = vmul.f32 %v3778, %v3736
        %v3780 = vand.u32 2147483647, %v3736
        %vm3781 = vcmp.lt.f32.partialorder %v3780, 0.0004427343
        %v3782 = vsel %vm3781, %v3779, %v3776
        %v3783 = vadd.f32 %v3738, 1.0
        %v3784 = vlog2.pop %v3783
        %v3785 = vmul.f32 %v3784, 0.6931472
        %v3786 = vmul.f32 -0.5, %v3738
        %v3787 = vadd.f32 %v3786, 1.0
        %v3788 = vmul.f32 %v3787, %v3738
        %v3789 = vand.u32 2147483647, %v3738
        %vm3790 = vcmp.lt.f32.partialorder %v3789, 0.0004427343
        %v3791 = vsel %vm3790, %v3788, %v3785
        %v3792 = vadd.f32 %v3740, 1.0
        %v3793 = vlog2.pop %v3792
        %v3794 = vmul.f32 %v3793, 0.6931472
        %v3795 = vmul.f32 -0.5, %v3740
        %v3796 = vadd.f32 %v3795, 1.0
        %v3797 = vmul.f32 %v3796, %v3740
        %v3798 = vand.u32 2147483647, %v3740
        %vm3799 = vcmp.lt.f32.partialorder %v3798, 0.0004427343
        %v3800 = vsel %vm3799, %v3797, %v3794
        %v3801 = vadd.f32 %v3742, 1.0
        %v3802 = vlog2.pop %v3801
        %v3803 = vmul.f32 %v3802, 0.6931472
        %v3804 = vmul.f32 -0.5, %v3742
        %v3805 = vadd.f32 %v3804, 1.0
        %v3806 = vmul.f32 %v3805, %v3742
        %v3807 = vand.u32 2147483647, %v3742
        %vm3808 = vcmp.lt.f32.partialorder %v3807, 0.0004427343
        %v3809 = vsel %vm3808, %v3806, %v3803
        %v3810 = vadd.f32 %v3744, 1.0
        %v3811 = vlog2.pop %v3810
        %v3812 = vmul.f32 %v3811, 0.6931472
        %v3813 = vmul.f32 -0.5, %v3744
        %v3814 = vadd.f32 %v3813, 1.0
        %v3815 = vmul.f32 %v3814, %v3744
        %v3816 = vand.u32 2147483647, %v3744
        %vm3817 = vcmp.lt.f32.partialorder %v3816, 0.0004427343
        %v3818 = vsel %vm3817, %v3815, %v3812
        %v3819 = vadd.f32 %v3746, 1.0
        %v3820 = vlog2.pop %v3819
        %v3821 = vmul.f32 %v3820, 0.6931472
        %v3822 = vmul.f32 -0.5, %v3746
        %v3823 = vadd.f32 %v3822, 1.0
        %v3824 = vmul.f32 %v3823, %v3746
        %v3825 = vand.u32 2147483647, %v3746
        %vm3826 = vcmp.lt.f32.partialorder %v3825, 0.0004427343
        %v3827 = vsel %vm3826, %v3824, %v3821
        %v3828 = vadd.f32 %v3748, 1.0
        %v3829 = vlog2.pop %v3828
        %v3830 = vmul.f32 %v3829, 0.6931472
        %v3831 = vmul.f32 -0.5, %v3748
        %v3832 = vadd.f32 %v3831, 1.0
        %v3833 = vmul.f32 %v3832, %v3748
        %v3834 = vand.u32 2147483647, %v3748
        %vm3835 = vcmp.lt.f32.partialorder %v3834, 0.0004427343
        %v3836 = vsel %vm3835, %v3833, %v3830
        %v3837 = vadd.f32 %v3750, 1.0
        %v3838 = vlog2.pop %v3837
        %v3839 = vmul.f32 %v3838, 0.6931472
        %v3840 = vmul.f32 -0.5, %v3750
        %v3841 = vadd.f32 %v3840, 1.0
        %v3842 = vmul.f32 %v3841, %v3750
        %v3843 = vand.u32 2147483647, %v3750
        %vm3844 = vcmp.lt.f32.partialorder %v3843, 0.0004427343
        %v3845 = vsel %vm3844, %v3842, %v3839
        %v3846 = vadd.f32 %v3752, 1.0
        %v3847 = vlog2.pop %v3846
        %v3848 = vmul.f32 %v3847, 0.6931472
        %v3849 = vmul.f32 -0.5, %v3752
        %v3850 = vadd.f32 %v3849, 1.0
        %v3851 = vmul.f32 %v3850, %v3752
        %v3852 = vand.u32 2147483647, %v3752
        %vm3853 = vcmp.lt.f32.partialorder %v3852, 0.0004427343
        %v3854 = vsel %vm3853, %v3851, %v3848
        %v3855 = vadd.f32 %v3754, 1.0
        %v3856 = vlog2.pop %v3855
        %v3857 = vmul.f32 %v3856, 0.6931472
        %v3858 = vmul.f32 -0.5, %v3754
        %v3859 = vadd.f32 %v3858, 1.0
        %v3860 = vmul.f32 %v3859, %v3754
        %v3861 = vand.u32 2147483647, %v3754
        %vm3862 = vcmp.lt.f32.partialorder %v3861, 0.0004427343
        %v3863 = vsel %vm3862, %v3860, %v3857
        %v3864 = vadd.f32 %v3756, 1.0
        %v3865 = vlog2.pop %v3864
        %v3866 = vmul.f32 %v3865, 0.6931472
        %v3867 = vmul.f32 -0.5, %v3756
        %v3868 = vadd.f32 %v3867, 1.0
        %v3869 = vmul.f32 %v3868, %v3756
        %v3870 = vand.u32 2147483647, %v3756
        %vm3871 = vcmp.lt.f32.partialorder %v3870, 0.0004427343
        %v3872 = vsel %vm3871, %v3869, %v3866
        %v3873 = vadd.f32 %v3758, 1.0
        %v3874 = vlog2.pop %v3873
        %v3875 = vmul.f32 %v3874, 0.6931472
        %v3876 = vmul.f32 -0.5, %v3758
        %v3877 = vadd.f32 %v3876, 1.0
        %v3878 = vmul.f32 %v3877, %v3758
        %v3879 = vand.u32 2147483647, %v3758
        %vm3880 = vcmp.lt.f32.partialorder %v3879, 0.0004427343
        %v3881 = vsel %vm3880, %v3878, %v3875
        %v3882 = vadd.f32 %v3760, 1.0
        %v3883 = vlog2.pop %v3882
        %v3884 = vmul.f32 %v3883, 0.6931472
        %v3885 = vmul.f32 -0.5, %v3760
        %v3886 = vadd.f32 %v3885, 1.0
        %v3887 = vmul.f32 %v3886, %v3760
        %v3888 = vand.u32 2147483647, %v3760
        %vm3889 = vcmp.lt.f32.partialorder %v3888, 0.0004427343
        %v3890 = vsel %vm3889, %v3887, %v3884
        %v3891 = vadd.f32 %v3762, 1.0
        %v3892 = vlog2.pop %v3891
        %v3893 = vmul.f32 %v3892, 0.6931472
        %v3894 = vmul.f32 -0.5, %v3762
        %v3895 = vadd.f32 %v3894, 1.0
        %v3896 = vmul.f32 %v3895, %v3762
        %v3897 = vand.u32 2147483647, %v3762
        %vm3898 = vcmp.lt.f32.partialorder %v3897, 0.0004427343
        %v3899 = vsel %vm3898, %v3896, %v3893
        %v3900 = vadd.f32 %v3764, 1.0
        %v3901 = vlog2.pop %v3900
        %v3902 = vmul.f32 %v3901, 0.6931472
        %v3903 = vmul.f32 -0.5, %v3764
        %v3904 = vadd.f32 %v3903, 1.0
        %v3905 = vmul.f32 %v3904, %v3764
        %v3906 = vand.u32 2147483647, %v3764
        %vm3907 = vcmp.lt.f32.partialorder %v3906, 0.0004427343
        %v3908 = vsel %vm3907, %v3905, %v3902
        %v3909 = vadd.f32 %v3685, %v3773
        %v3910 = vadd.f32 %v3686, %v3782
        %v3911 = vadd.f32 %v3687, %v3791
        %v3912 = vadd.f32 %v3688, %v3800
        %v3913 = vadd.f32 %v3689, %v3809
        %v3914 = vadd.f32 %v3690, %v3818
        %v3915 = vadd.f32 %v3691, %v3827
        %v3916 = vadd.f32 %v3692, %v3836
        %v3917 = vadd.f32 %v3693, %v3845
        %v3918 = vadd.f32 %v3694, %v3854
        %v3919 = vadd.f32 %v3695, %v3863
        %v3920 = vadd.f32 %v3696, %v3872
        %v3921 = vadd.f32 %v3697, %v3881
        %v3922 = vadd.f32 %v3698, %v3890
        %v3923 = vadd.f32 %v3699, %v3899
        %v3924 = vadd.f32 %v3700, %v3908
        %3925 = vmatprep.subr.mxu0 %v3910
        %3926 = vmatpush1.msra.mxu0 %v3909
        %3927 = vmatprep.subr.mxu0 %v3912
        %3928 = vmatpush1.msra.mxu0 %v3911
        %3929 = vmatprep.subr.mxu0 %v3914
        %3930 = vmatpush1.msra.mxu0 %v3913
        %3931 = vmatprep.subr.mxu0 %v3916
        %3932 = vmatpush1.msra.mxu0 %v3915
        %3933 = vmatprep.subr.mxu0 %v3918
        %3934 = vmatpush1.msra.mxu0 %v3917
        %3935 = vmatprep.subr.mxu0 %v3920
        %3936 = vmatpush1.msra.mxu0 %v3919
        %3937 = vmatprep.subr.mxu0 %v3922
        %3938 = vmatpush1.msra.mxu0 %v3921
        %3939 = vmatprep.subr.mxu0 %v3924
        %3940 = vmatpush1.msra.mxu0 %v3923
        %3941 = vmatprep.subr.mxu0 0.0
        %3942 = vmatpush1.msra.mxu0 0.0
        %3943 = vmatprep.subr.mxu0 0.0
        %3944 = vmatpush1.msra.mxu0 0.0
        %3945 = vmatprep.subr.mxu0 0.0
        %3946 = vmatpush1.msra.mxu0 0.0
        %3947 = vmatprep.subr.mxu0 0.0
        %3948 = vmatpush1.msra.mxu0 0.0
        %3949 = vmatprep.subr.mxu0 0.0
        %3950 = vmatpush1.msra.mxu0 0.0
        %3951 = vmatprep.subr.mxu0 0.0
        %3952 = vmatpush1.msra.mxu0 0.0
        %3953 = vmatprep.subr.mxu0 0.0
        %3954 = vmatpush1.msra.mxu0 0.0
        %3955 = vmatprep.subr.mxu0 0.0
        %3956 = vmatpush1.msra.mxu0 0.0
        %3957 = vmatprep.subr.mxu0 0.0
        %3958 = vmatpush1.msra.mxu0 0.0
        %3959 = vmatprep.subr.mxu0 0.0
        %3960 = vmatpush1.msra.mxu0 0.0
        %3961 = vmatprep.subr.mxu0 0.0
        %3962 = vmatpush1.msra.mxu0 0.0
        %3963 = vmatprep.subr.mxu0 0.0
        %3964 = vmatpush1.msra.mxu0 0.0
        %3965 = vmatprep.subr.mxu0 0.0
        %3966 = vmatpush1.msra.mxu0 0.0
        %3967 = vmatprep.subr.mxu0 0.0
        %3968 = vmatpush1.msra.mxu0 0.0
        %3969 = vmatprep.subr.mxu0 0.0
        %3970 = vmatpush1.msra.mxu0 0.0
        %3971 = vmatprep.subr.mxu0 0.0
        %3972 = vmatpush1.msra.mxu0 0.0
        %3973 = vmatprep.subr.mxu0 0.0
        %3974 = vmatpush1.msra.mxu0 0.0
        %3975 = vmatprep.subr.mxu0 0.0
        %3976 = vmatpush1.msra.mxu0 0.0
        %3977 = vmatprep.subr.mxu0 0.0
        %3978 = vmatpush1.msra.mxu0 0.0
        %3979 = vmatprep.subr.mxu0 0.0
        %3980 = vmatpush1.msra.mxu0 0.0
        %3981 = vmatprep.subr.mxu0 0.0
        %3982 = vmatpush1.msra.mxu0 0.0
        %3983 = vmatprep.subr.mxu0 0.0
        %3984 = vmatpush1.msra.mxu0 0.0
        %3985 = vmatprep.subr.mxu0 0.0
        %3986 = vmatpush1.msra.mxu0 0.0
        %3987 = vmatprep.subr.mxu0 0.0
        %3988 = vmatpush1.msra.mxu0 0.0
        %3989 = vmatprep.mubr.f32.mxu0 0.0
        %3990 = vmatmul.mubr.f32.gmra.mrb[0].mxu0 %v1011
        %v3991 = vpop.f32.mrb[0].mxu0
        %v3992 = vadd.f32 %v617, %v3991
        %v3993 = vpop.f32.mrb[0].mxu0
        %v3994 = vadd.f32 %v617, %v3993
        %3995 = vmatprep.mubr.f32.mxu0 0.0
        %3996 = vmatmul.mubr.f32.gmra.mrb[0].mxu0 %v1014
        %v3997 = vpop.f32.mrb[0].mxu0
        %v3998 = vadd.f32 %v622, %v3997
        %v3999 = vpop.f32.mrb[0].mxu0
        %v4000 = vadd.f32 %v622, %v3999
        %4001 = vmatprep.mubr.f32.mxu0 0.0
        %4002 = vmatmul.mubr.f32.gmra.mrb[0].mxu0 %v1017
        %v4003 = vpop.f32.mrb[0].mxu0
        %v4004 = vadd.f32 %v627, %v4003
        %v4005 = vpop.f32.mrb[0].mxu0
        %v4006 = vadd.f32 %v627, %v4005
        %4007 = vmatprep.mubr.f32.mxu0 0.0
        %4008 = vmatmul.mubr.f32.gmra.mrb[0].mxu0 %v1020
        %v4009 = vpop.f32.mrb[0].mxu0
        %v4010 = vadd.f32 %v632, %v4009
        %v4011 = vpop.f32.mrb[0].mxu0
        %v4012 = vadd.f32 %v632, %v4011
        %4013 = vmatprep.mubr.f32.mxu0 0.0
        %4014 = vmatmul.mubr.f32.gmra.mrb[0].mxu0 %v1023
        %v4015 = vpop.f32.mrb[0].mxu0
        %v4016 = vadd.f32 %v637, %v4015
        %v4017 = vpop.f32.mrb[0].mxu0
        %v4018 = vadd.f32 %v637, %v4017
        %4019 = vdwg.mxu0
        %s4020 = sld [smem:[#allocation4 + $0x6]]
        %s4021 = ssub.f32 0.0, %s4020
        %v4022 = vmax.f32 %v4016, 0.0
        %v4023 = vmax.f32 %v4018, 0.0
        %v4024 = vstv %s4021
        %v4025 = vmul.f32 %v4024, %v4022
        %v4026 = vmul.f32 %v4024, %v4023
        %v4027 = vmul.f32 %v4025, 1.442695
        %v4028 = vpow.pop %v4027
        %v4029 = vmul.f32 %v4026, 1.442695
        %v4030 = vpow.pop %v4029
        %v4031 = vsub.f32 1.0, %v4028
        %v4032 = vsub.f32 1.0, %v4030
        %v4033 = vmul.f32 %v4031, %v3585
        %v4034 = vmul.f32 %v4032, %v3586
        %v4035 = vlaneseq
        %v4036 = vshrl.u32 %v4035, 7
        %v4037 = vsub.s32 0, %v4036
        %v4038 = vrot.slane %v4033, %v4037
        %v4039 = vlaneseq
        %v4040 = vshrl.u32 %v4039, 7
        %v4041 = vsub.s32 0, %v4040
        %v4042 = vrot.slane %v4034, %v4041
        %v4043 = vmul.f32 %v4038, %v3992
        %v4044 = vmul.f32 %v4042, %v3994
        %v4045 = vmul.f32 %v4038, %v3998
        %v4046 = vmul.f32 %v4042, %v4000
        %v4047 = vmul.f32 %v4038, %v4004
        %v4048 = vmul.f32 %v4042, %v4006
        %v4049 = vmul.f32 %v4038, %v4010
        %v4050 = vmul.f32 %v4042, %v4012
        %v4051 = vadd.f32 %v3567, %v4043
        %v4052 = vadd.f32 %v3568, %v4044
        %v4053 = vadd.f32 %v3569, %v4045
        %v4054 = vadd.f32 %v3570, %v4046
        %v4055 = vadd.f32 %v3571, %v4047
        %v4056 = vadd.f32 %v3572, %v4048
        %v4057 = vadd.f32 %v3573, %v4049
        %v4058 = vadd.f32 %v3574, %v4050
        %s4059 = sld [smem:[#allocation2 + $0x6]]
        %v4060 = vstv %s4059
        %v4061 = vmul.f32 %v4033, %v4060
        %v4062 = vmul.f32 %v4034, %v4060
        %v4063 = vadd.f32 %v3579, %v4061
        %v4064 = vadd.f32 %v3580, %v4062
        %v4065 = vsub.f32 1.0, %v4031
        %v4066 = vsub.f32 1.0, %v4032
        %v4067 = vadd.f32 %v4065, 1e-10
        %v4068 = vadd.f32 %v4066, 1e-10
        %v4069 = vmul.f32 %v3585, %v4067
        %v4070 = vmul.f32 %v3586, %v4068
        %s4071 = scalar_lea.vmem %s502, 224 [#allocation6]
        %v4072 = vld [vmem:[%s4071] sm:$0xff]
        %v4073 = vld [vmem:[%s4071 + $0x8] sm:$0xff]
        %v4074 = vld [vmem:[%s4071 + $0x10] sm:$0xff]
        %v4075 = vld [vmem:[%s4071 + $0x18] sm:$0xff]
        %v4080 = vunpack.c.l.b16 %v4072
        %v4081 = vunpack.c.h.b16 %v4072
        %v4082 = vunpack.c.l.b16 %v4073
        %v4083 = vunpack.c.h.b16 %v4073
        %v4084 = vunpack.c.l.b16 %v4074
        %v4085 = vunpack.c.h.b16 %v4074
        %v4086 = vunpack.c.l.b16 %v4075
        %v4087 = vunpack.c.h.b16 %v4075
        %v4088 = vpack.c.b16 %v4082, %v4080
        %v4089 = vpack.c.b16 %v4083, %v4081
        %v4090 = vpack.c.b16 %v4086, %v4084
        %v4091 = vpack.c.b16 %v4087, %v4085
        %4096 = vmatprep.subr.bf16.mxu0 %v4089
        %4097 = vmatpush1.bf16.msra.mxu0 %v4088
        %4098 = vmatprep.subr.bf16.mxu0 %v4091
        %4099 = vmatpush1.bf16.msra.mxu0 %v4090
        %4100 = vmatprep.subr.bf16.mxu0 0
        %4101 = vmatpush1.bf16.msra.mxu0 0
        %4102 = vmatprep.subr.bf16.mxu0 0
        %4103 = vmatpush1.bf16.msra.mxu0 0
        %4104 = vmatprep.subr.bf16.mxu0 0
        %4105 = vmatpush1.bf16.msra.mxu0 0
        %4106 = vmatprep.subr.bf16.mxu0 0
        %4107 = vmatpush1.bf16.msra.mxu0 0
        %4108 = vmatprep.subr.bf16.mxu0 0
        %4109 = vmatpush1.bf16.msra.mxu0 0
        %4110 = vmatprep.subr.bf16.mxu0 0
        %4111 = vmatpush1.bf16.msra.mxu0 0
        %4112 = vmatprep.subr.bf16.mxu0 0
        %4113 = vmatpush1.bf16.msra.mxu0 0
        %4114 = vmatprep.subr.bf16.mxu0 0
        %4115 = vmatpush1.bf16.msra.mxu0 0
        %4116 = vmatprep.subr.bf16.mxu0 0
        %4117 = vmatpush1.bf16.msra.mxu0 0
        %4118 = vmatprep.subr.bf16.mxu0 0
        %4119 = vmatpush1.bf16.msra.mxu0 0
        %4120 = vmatprep.subr.bf16.mxu0 0
        %4121 = vmatpush1.bf16.msra.mxu0 0
        %4122 = vmatprep.subr.bf16.mxu0 0
        %4123 = vmatpush1.bf16.msra.mxu0 0
        %4124 = vmatprep.subr.bf16.mxu0 0
        %4125 = vmatpush1.bf16.msra.mxu0 0
        %4126 = vmatprep.subr.bf16.mxu0 0
        %4127 = vmatpush1.bf16.msra.mxu0 0
        %4128 = vmatprep.mubr.bf16.mxu0 0
        %4129 = vmatmul.mubr.bf16.gmra.mrb[0].mxu0 %v685
        %v4130 = vpop.f32.mrb[0].mxu0
        %v4131 = vadd.f32 %v572, %v4130
        %v4132 = vpop.f32.mrb[0].mxu0
        %v4133 = vadd.f32 %v572, %v4132
        %v4134 = vpop.f32.mrb[0].mxu0
        %v4135 = vadd.f32 %v577, %v4134
        %v4136 = vpop.f32.mrb[0].mxu0
        %v4137 = vadd.f32 %v577, %v4136
        %4138 = vmatprep.mubr.bf16.mxu0 0
        %4139 = vmatmul.mubr.bf16.gmra.mrb[0].mxu0 %v688
        %v4140 = vpop.f32.mrb[0].mxu0
        %v4141 = vadd.f32 %v582, %v4140
        %v4142 = vpop.f32.mrb[0].mxu0
        %v4143 = vadd.f32 %v582, %v4142
        %v4144 = vpop.f32.mrb[0].mxu0
        %v4145 = vadd.f32 %v587, %v4144
        %v4146 = vpop.f32.mrb[0].mxu0
        %v4147 = vadd.f32 %v587, %v4146
        %4148 = vmatprep.mubr.bf16.mxu0 0
        %4149 = vmatmul.mubr.bf16.gmra.mrb[0].mxu0 %v691
        %v4150 = vpop.f32.mrb[0].mxu0
        %v4151 = vadd.f32 %v592, %v4150
        %v4152 = vpop.f32.mrb[0].mxu0
        %v4153 = vadd.f32 %v592, %v4152
        %v4154 = vpop.f32.mrb[0].mxu0
        %v4155 = vadd.f32 %v597, %v4154
        %v4156 = vpop.f32.mrb[0].mxu0
        %v4157 = vadd.f32 %v597, %v4156
        %4158 = vmatprep.mubr.bf16.mxu0 0
        %4159 = vmatmul.mubr.bf16.gmra.mrb[0].mxu0 %v694
        %v4160 = vpop.f32.mrb[0].mxu0
        %v4161 = vadd.f32 %v602, %v4160
        %v4162 = vpop.f32.mrb[0].mxu0
        %v4163 = vadd.f32 %v602, %v4162
        %v4164 = vpop.f32.mrb[0].mxu0
        %v4165 = vadd.f32 %v607, %v4164
        %v4166 = vpop.f32.mrb[0].mxu0
        %v4167 = vadd.f32 %v607, %v4166
        %4168 = vdwg.mxu0
        %v4169 = vmax.f32 %v4131, 0.0
        %v4170 = vmax.f32 %v4133, 0.0
        %v4171 = vmax.f32 %v4135, 0.0
        %v4172 = vmax.f32 %v4137, 0.0
        %v4173 = vmax.f32 %v4141, 0.0
        %v4174 = vmax.f32 %v4143, 0.0
        %v4175 = vmax.f32 %v4145, 0.0
        %v4176 = vmax.f32 %v4147, 0.0
        %v4177 = vmax.f32 %v4151, 0.0
        %v4178 = vmax.f32 %v4153, 0.0
        %v4179 = vmax.f32 %v4155, 0.0
        %v4180 = vmax.f32 %v4157, 0.0
        %v4181 = vmax.f32 %v4161, 0.0
        %v4182 = vmax.f32 %v4163, 0.0
        %v4183 = vmax.f32 %v4165, 0.0
        %v4184 = vmax.f32 %v4167, 0.0
        %v4185 = vand.u32 2147483647, %v4131
        %v4186 = vand.u32 2147483647, %v4133
        %v4187 = vand.u32 2147483647, %v4135
        %v4188 = vand.u32 2147483647, %v4137
        %v4189 = vand.u32 2147483647, %v4141
        %v4190 = vand.u32 2147483647, %v4143
        %v4191 = vand.u32 2147483647, %v4145
        %v4192 = vand.u32 2147483647, %v4147
        %v4193 = vand.u32 2147483647, %v4151
        %v4194 = vand.u32 2147483647, %v4153
        %v4195 = vand.u32 2147483647, %v4155
        %v4196 = vand.u32 2147483647, %v4157
        %v4197 = vand.u32 2147483647, %v4161
        %v4198 = vand.u32 2147483647, %v4163
        %v4199 = vand.u32 2147483647, %v4165
        %v4200 = vand.u32 2147483647, %v4167
        %v4201 = vsub.f32 0.0, %v4185
        %v4202 = vsub.f32 0.0, %v4186
        %v4203 = vsub.f32 0.0, %v4187
        %v4204 = vsub.f32 0.0, %v4188
        %v4205 = vsub.f32 0.0, %v4189
        %v4206 = vsub.f32 0.0, %v4190
        %v4207 = vsub.f32 0.0, %v4191
        %v4208 = vsub.f32 0.0, %v4192
        %v4209 = vsub.f32 0.0, %v4193
        %v4210 = vsub.f32 0.0, %v4194
        %v4211 = vsub.f32 0.0, %v4195
        %v4212 = vsub.f32 0.0, %v4196
        %v4213 = vsub.f32 0.0, %v4197
        %v4214 = vsub.f32 0.0, %v4198
        %v4215 = vsub.f32 0.0, %v4199
        %v4216 = vsub.f32 0.0, %v4200
        %v4217 = vmul.f32 %v4201, 1.442695
        %v4218 = vpow.pop %v4217
        %v4219 = vmul.f32 %v4202, 1.442695
        %v4220 = vpow.pop %v4219
        %v4221 = vmul.f32 %v4203, 1.442695
        %v4222 = vpow.pop %v4221
        %v4223 = vmul.f32 %v4204, 1.442695
        %v4224 = vpow.pop %v4223
        %v4225 = vmul.f32 %v4205, 1.442695
        %v4226 = vpow.pop %v4225
        %v4227 = vmul.f32 %v4206, 1.442695
        %v4228 = vpow.pop %v4227
        %v4229 = vmul.f32 %v4207, 1.442695
        %v4230 = vpow.pop %v4229
        %v4231 = vmul.f32 %v4208, 1.442695
        %v4232 = vpow.pop %v4231
        %v4233 = vmul.f32 %v4209, 1.442695
        %v4234 = vpow.pop %v4233
        %v4235 = vmul.f32 %v4210, 1.442695
        %v4236 = vpow.pop %v4235
        %v4237 = vmul.f32 %v4211, 1.442695
        %v4238 = vpow.pop %v4237
        %v4239 = vmul.f32 %v4212, 1.442695
        %v4240 = vpow.pop %v4239
        %v4241 = vmul.f32 %v4213, 1.442695
        %v4242 = vpow.pop %v4241
        %v4243 = vmul.f32 %v4214, 1.442695
        %v4244 = vpow.pop %v4243
        %v4245 = vmul.f32 %v4215, 1.442695
        %v4246 = vpow.pop %v4245
        %v4247 = vmul.f32 %v4216, 1.442695
        %v4248 = vpow.pop %v4247
        %v4249 = vadd.f32 %v4218, 1.0
        %v4250 = vlog2.pop %v4249
        %v4251 = vmul.f32 %v4250, 0.6931472
        %v4252 = vmul.f32 -0.5, %v4218
        %v4253 = vadd.f32 %v4252, 1.0
        %v4254 = vmul.f32 %v4253, %v4218
        %v4255 = vand.u32 2147483647, %v4218
        %vm4256 = vcmp.lt.f32.partialorder %v4255, 0.0004427343
        %v4257 = vsel %vm4256, %v4254, %v4251
        %v4258 = vadd.f32 %v4220, 1.0
        %v4259 = vlog2.pop %v4258
        %v4260 = vmul.f32 %v4259, 0.6931472
        %v4261 = vmul.f32 -0.5, %v4220
        %v4262 = vadd.f32 %v4261, 1.0
        %v4263 = vmul.f32 %v4262, %v4220
        %v4264 = vand.u32 2147483647, %v4220
        %vm4265 = vcmp.lt.f32.partialorder %v4264, 0.0004427343
        %v4266 = vsel %vm4265, %v4263, %v4260
        %v4267 = vadd.f32 %v4222, 1.0
        %v4268 = vlog2.pop %v4267
        %v4269 = vmul.f32 %v4268, 0.6931472
        %v4270 = vmul.f32 -0.5, %v4222
        %v4271 = vadd.f32 %v4270, 1.0
        %v4272 = vmul.f32 %v4271, %v4222
        %v4273 = vand.u32 2147483647, %v4222
        %vm4274 = vcmp.lt.f32.partialorder %v4273, 0.0004427343
        %v4275 = vsel %vm4274, %v4272, %v4269
        %v4276 = vadd.f32 %v4224, 1.0
        %v4277 = vlog2.pop %v4276
        %v4278 = vmul.f32 %v4277, 0.6931472
        %v4279 = vmul.f32 -0.5, %v4224
        %v4280 = vadd.f32 %v4279, 1.0
        %v4281 = vmul.f32 %v4280, %v4224
        %v4282 = vand.u32 2147483647, %v4224
        %vm4283 = vcmp.lt.f32.partialorder %v4282, 0.0004427343
        %v4284 = vsel %vm4283, %v4281, %v4278
        %v4285 = vadd.f32 %v4226, 1.0
        %v4286 = vlog2.pop %v4285
        %v4287 = vmul.f32 %v4286, 0.6931472
        %v4288 = vmul.f32 -0.5, %v4226
        %v4289 = vadd.f32 %v4288, 1.0
        %v4290 = vmul.f32 %v4289, %v4226
        %v4291 = vand.u32 2147483647, %v4226
        %vm4292 = vcmp.lt.f32.partialorder %v4291, 0.0004427343
        %v4293 = vsel %vm4292, %v4290, %v4287
        %v4294 = vadd.f32 %v4228, 1.0
        %v4295 = vlog2.pop %v4294
        %v4296 = vmul.f32 %v4295, 0.6931472
        %v4297 = vmul.f32 -0.5, %v4228
        %v4298 = vadd.f32 %v4297, 1.0
        %v4299 = vmul.f32 %v4298, %v4228
        %v4300 = vand.u32 2147483647, %v4228
        %vm4301 = vcmp.lt.f32.partialorder %v4300, 0.0004427343
        %v4302 = vsel %vm4301, %v4299, %v4296
        %v4303 = vadd.f32 %v4230, 1.0
        %v4304 = vlog2.pop %v4303
        %v4305 = vmul.f32 %v4304, 0.6931472
        %v4306 = vmul.f32 -0.5, %v4230
        %v4307 = vadd.f32 %v4306, 1.0
        %v4308 = vmul.f32 %v4307, %v4230
        %v4309 = vand.u32 2147483647, %v4230
        %vm4310 = vcmp.lt.f32.partialorder %v4309, 0.0004427343
        %v4311 = vsel %vm4310, %v4308, %v4305
        %v4312 = vadd.f32 %v4232, 1.0
        %v4313 = vlog2.pop %v4312
        %v4314 = vmul.f32 %v4313, 0.6931472
        %v4315 = vmul.f32 -0.5, %v4232
        %v4316 = vadd.f32 %v4315, 1.0
        %v4317 = vmul.f32 %v4316, %v4232
        %v4318 = vand.u32 2147483647, %v4232
        %vm4319 = vcmp.lt.f32.partialorder %v4318, 0.0004427343
        %v4320 = vsel %vm4319, %v4317, %v4314
        %v4321 = vadd.f32 %v4234, 1.0
        %v4322 = vlog2.pop %v4321
        %v4323 = vmul.f32 %v4322, 0.6931472
        %v4324 = vmul.f32 -0.5, %v4234
        %v4325 = vadd.f32 %v4324, 1.0
        %v4326 = vmul.f32 %v4325, %v4234
        %v4327 = vand.u32 2147483647, %v4234
        %vm4328 = vcmp.lt.f32.partialorder %v4327, 0.0004427343
        %v4329 = vsel %vm4328, %v4326, %v4323
        %v4330 = vadd.f32 %v4236, 1.0
        %v4331 = vlog2.pop %v4330
        %v4332 = vmul.f32 %v4331, 0.6931472
        %v4333 = vmul.f32 -0.5, %v4236
        %v4334 = vadd.f32 %v4333, 1.0
        %v4335 = vmul.f32 %v4334, %v4236
        %v4336 = vand.u32 2147483647, %v4236
        %vm4337 = vcmp.lt.f32.partialorder %v4336, 0.0004427343
        %v4338 = vsel %vm4337, %v4335, %v4332
        %v4339 = vadd.f32 %v4238, 1.0
        %v4340 = vlog2.pop %v4339
        %v4341 = vmul.f32 %v4340, 0.6931472
        %v4342 = vmul.f32 -0.5, %v4238
        %v4343 = vadd.f32 %v4342, 1.0
        %v4344 = vmul.f32 %v4343, %v4238
        %v4345 = vand.u32 2147483647, %v4238
        %vm4346 = vcmp.lt.f32.partialorder %v4345, 0.0004427343
        %v4347 = vsel %vm4346, %v4344, %v4341
        %v4348 = vadd.f32 %v4240, 1.0
        %v4349 = vlog2.pop %v4348
        %v4350 = vmul.f32 %v4349, 0.6931472
        %v4351 = vmul.f32 -0.5, %v4240
        %v4352 = vadd.f32 %v4351, 1.0
        %v4353 = vmul.f32 %v4352, %v4240
        %v4354 = vand.u32 2147483647, %v4240
        %vm4355 = vcmp.lt.f32.partialorder %v4354, 0.0004427343
        %v4356 = vsel %vm4355, %v4353, %v4350
        %v4357 = vadd.f32 %v4242, 1.0
        %v4358 = vlog2.pop %v4357
        %v4359 = vmul.f32 %v4358, 0.6931472
        %v4360 = vmul.f32 -0.5, %v4242
        %v4361 = vadd.f32 %v4360, 1.0
        %v4362 = vmul.f32 %v4361, %v4242
        %v4363 = vand.u32 2147483647, %v4242
        %vm4364 = vcmp.lt.f32.partialorder %v4363, 0.0004427343
        %v4365 = vsel %vm4364, %v4362, %v4359
        %v4366 = vadd.f32 %v4244, 1.0
        %v4367 = vlog2.pop %v4366
        %v4368 = vmul.f32 %v4367, 0.6931472
        %v4369 = vmul.f32 -0.5, %v4244
        %v4370 = vadd.f32 %v4369, 1.0
        %v4371 = vmul.f32 %v4370, %v4244
        %v4372 = vand.u32 2147483647, %v4244
        %vm4373 = vcmp.lt.f32.partialorder %v4372, 0.0004427343
        %v4374 = vsel %vm4373, %v4371, %v4368
        %v4375 = vadd.f32 %v4246, 1.0
        %v4376 = vlog2.pop %v4375
        %v4377 = vmul.f32 %v4376, 0.6931472
        %v4378 = vmul.f32 -0.5, %v4246
        %v4379 = vadd.f32 %v4378, 1.0
        %v4380 = vmul.f32 %v4379, %v4246
        %v4381 = vand.u32 2147483647, %v4246
        %vm4382 = vcmp.lt.f32.partialorder %v4381, 0.0004427343
        %v4383 = vsel %vm4382, %v4380, %v4377
        %v4384 = vadd.f32 %v4248, 1.0
        %v4385 = vlog2.pop %v4384
        %v4386 = vmul.f32 %v4385, 0.6931472
        %v4387 = vmul.f32 -0.5, %v4248
        %v4388 = vadd.f32 %v4387, 1.0
        %v4389 = vmul.f32 %v4388, %v4248
        %v4390 = vand.u32 2147483647, %v4248
        %vm4391 = vcmp.lt.f32.partialorder %v4390, 0.0004427343
        %v4392 = vsel %vm4391, %v4389, %v4386
        %v4393 = vadd.f32 %v4169, %v4257
        %v4394 = vadd.f32 %v4170, %v4266
        %v4395 = vadd.f32 %v4171, %v4275
        %v4396 = vadd.f32 %v4172, %v4284
        %v4397 = vadd.f32 %v4173, %v4293
        %v4398 = vadd.f32 %v4174, %v4302
        %v4399 = vadd.f32 %v4175, %v4311
        %v4400 = vadd.f32 %v4176, %v4320
        %v4401 = vadd.f32 %v4177, %v4329
        %v4402 = vadd.f32 %v4178, %v4338
        %v4403 = vadd.f32 %v4179, %v4347
        %v4404 = vadd.f32 %v4180, %v4356
        %v4405 = vadd.f32 %v4181, %v4365
        %v4406 = vadd.f32 %v4182, %v4374
        %v4407 = vadd.f32 %v4183, %v4383
        %v4408 = vadd.f32 %v4184, %v4392
        %4409 = vmatprep.subr.mxu0 %v4394
        %4410 = vmatpush1.msra.mxu0 %v4393
        %4411 = vmatprep.subr.mxu0 %v4396
        %4412 = vmatpush1.msra.mxu0 %v4395
        %4413 = vmatprep.subr.mxu0 %v4398
        %4414 = vmatpush1.msra.mxu0 %v4397
        %4415 = vmatprep.subr.mxu0 %v4400
        %4416 = vmatpush1.msra.mxu0 %v4399
        %4417 = vmatprep.subr.mxu0 %v4402
        %4418 = vmatpush1.msra.mxu0 %v4401
        %4419 = vmatprep.subr.mxu0 %v4404
        %4420 = vmatpush1.msra.mxu0 %v4403
        %4421 = vmatprep.subr.mxu0 %v4406
        %4422 = vmatpush1.msra.mxu0 %v4405
        %4423 = vmatprep.subr.mxu0 %v4408
        %4424 = vmatpush1.msra.mxu0 %v4407
        %4425 = vmatprep.subr.mxu0 0.0
        %4426 = vmatpush1.msra.mxu0 0.0
        %4427 = vmatprep.subr.mxu0 0.0
        %4428 = vmatpush1.msra.mxu0 0.0
        %4429 = vmatprep.subr.mxu0 0.0
        %4430 = vmatpush1.msra.mxu0 0.0
        %4431 = vmatprep.subr.mxu0 0.0
        %4432 = vmatpush1.msra.mxu0 0.0
        %4433 = vmatprep.subr.mxu0 0.0
        %4434 = vmatpush1.msra.mxu0 0.0
        %4435 = vmatprep.subr.mxu0 0.0
        %4436 = vmatpush1.msra.mxu0 0.0
        %4437 = vmatprep.subr.mxu0 0.0
        %4438 = vmatpush1.msra.mxu0 0.0
        %4439 = vmatprep.subr.mxu0 0.0
        %4440 = vmatpush1.msra.mxu0 0.0
        %4441 = vmatprep.subr.mxu0 0.0
        %4442 = vmatpush1.msra.mxu0 0.0
        %4443 = vmatprep.subr.mxu0 0.0
        %4444 = vmatpush1.msra.mxu0 0.0
        %4445 = vmatprep.subr.mxu0 0.0
        %4446 = vmatpush1.msra.mxu0 0.0
        %4447 = vmatprep.subr.mxu0 0.0
        %4448 = vmatpush1.msra.mxu0 0.0
        %4449 = vmatprep.subr.mxu0 0.0
        %4450 = vmatpush1.msra.mxu0 0.0
        %4451 = vmatprep.subr.mxu0 0.0
        %4452 = vmatpush1.msra.mxu0 0.0
        %4453 = vmatprep.subr.mxu0 0.0
        %4454 = vmatpush1.msra.mxu0 0.0
        %4455 = vmatprep.subr.mxu0 0.0
        %4456 = vmatpush1.msra.mxu0 0.0
        %4457 = vmatprep.subr.mxu0 0.0
        %4458 = vmatpush1.msra.mxu0 0.0
        %4459 = vmatprep.subr.mxu0 0.0
        %4460 = vmatpush1.msra.mxu0 0.0
        %4461 = vmatprep.subr.mxu0 0.0
        %4462 = vmatpush1.msra.mxu0 0.0
        %4463 = vmatprep.subr.mxu0 0.0
        %4464 = vmatpush1.msra.mxu0 0.0
        %4465 = vmatprep.subr.mxu0 0.0
        %4466 = vmatpush1.msra.mxu0 0.0
        %4467 = vmatprep.subr.mxu0 0.0
        %4468 = vmatpush1.msra.mxu0 0.0
        %4469 = vmatprep.subr.mxu0 0.0
        %4470 = vmatpush1.msra.mxu0 0.0
        %4471 = vmatprep.subr.mxu0 0.0
        %4472 = vmatpush1.msra.mxu0 0.0
        %4473 = vmatprep.mubr.f32.mxu0 0.0
        %4474 = vmatmul.mubr.f32.gmra.mrb[0].mxu0 %v1011
        %v4475 = vpop.f32.mrb[0].mxu0
        %v4476 = vadd.f32 %v617, %v4475
        %v4477 = vpop.f32.mrb[0].mxu0
        %v4478 = vadd.f32 %v617, %v4477
        %4479 = vmatprep.mubr.f32.mxu0 0.0
        %4480 = vmatmul.mubr.f32.gmra.mrb[0].mxu0 %v1014
        %v4481 = vpop.f32.mrb[0].mxu0
        %v4482 = vadd.f32 %v622, %v4481
        %v4483 = vpop.f32.mrb[0].mxu0
        %v4484 = vadd.f32 %v622, %v4483
        %4485 = vmatprep.mubr.f32.mxu0 0.0
        %4486 = vmatmul.mubr.f32.gmra.mrb[0].mxu0 %v1017
        %v4487 = vpop.f32.mrb[0].mxu0
        %v4488 = vadd.f32 %v627, %v4487
        %v4489 = vpop.f32.mrb[0].mxu0
        %v4490 = vadd.f32 %v627, %v4489
        %4491 = vmatprep.mubr.f32.mxu0 0.0
        %4492 = vmatmul.mubr.f32.gmra.mrb[0].mxu0 %v1020
        %v4493 = vpop.f32.mrb[0].mxu0
        %v4494 = vadd.f32 %v632, %v4493
        %v4495 = vpop.f32.mrb[0].mxu0
        %v4496 = vadd.f32 %v632, %v4495
        %4497 = vmatprep.mubr.f32.mxu0 0.0
        %4498 = vmatmul.mubr.f32.gmra.mrb[0].mxu0 %v1023
        %v4499 = vpop.f32.mrb[0].mxu0
        %v4500 = vadd.f32 %v637, %v4499
        %v4501 = vpop.f32.mrb[0].mxu0
        %v4502 = vadd.f32 %v637, %v4501
        %4503 = vdwg.mxu0
        %s4504 = sld [smem:[#allocation4 + $0x7]]
        %s4505 = ssub.f32 0.0, %s4504
        %v4506 = vmax.f32 %v4500, 0.0
        %v4507 = vmax.f32 %v4502, 0.0
        %v4508 = vstv %s4505
        %v4509 = vmul.f32 %v4508, %v4506
        %v4510 = vmul.f32 %v4508, %v4507
        %v4511 = vmul.f32 %v4509, 1.442695
        %v4512 = vpow.pop %v4511
        %v4513 = vmul.f32 %v4510, 1.442695
        %v4514 = vpow.pop %v4513
        %v4515 = vsub.f32 1.0, %v4512
        %v4516 = vsub.f32 1.0, %v4514
        %v4517 = vmul.f32 %v4515, %v4069
        %v4518 = vmul.f32 %v4516, %v4070
        %v4519 = vlaneseq
        %v4520 = vshrl.u32 %v4519, 7
        %v4521 = vsub.s32 0, %v4520
        %v4522 = vrot.slane %v4517, %v4521
        %v4523 = vlaneseq
        %v4524 = vshrl.u32 %v4523, 7
        %v4525 = vsub.s32 0, %v4524
        %v4526 = vrot.slane %v4518, %v4525
        %v4527 = vmul.f32 %v4522, %v4476
        %v4528 = vmul.f32 %v4526, %v4478
        %v4529 = vmul.f32 %v4522, %v4482
        %v4530 = vmul.f32 %v4526, %v4484
        %v4531 = vmul.f32 %v4522, %v4488
        %v4532 = vmul.f32 %v4526, %v4490
        %v4533 = vmul.f32 %v4522, %v4494
        %v4534 = vmul.f32 %v4526, %v4496
        %v4535 = vadd.f32 %v4051, %v4527
        %v4536 = vadd.f32 %v4052, %v4528
        %v4537 = vadd.f32 %v4053, %v4529
        %v4538 = vadd.f32 %v4054, %v4530
        %v4539 = vadd.f32 %v4055, %v4531
        %v4540 = vadd.f32 %v4056, %v4532
        %v4541 = vadd.f32 %v4057, %v4533
        %v4542 = vadd.f32 %v4058, %v4534
        %s4543 = sld [smem:[#allocation2 + $0x7]]
        %v4544 = vstv %s4543
        %v4545 = vmul.f32 %v4517, %v4544
        %v4546 = vmul.f32 %v4518, %v4544
        %v4547 = vadd.f32 %v4063, %v4545
        %v4548 = vadd.f32 %v4064, %v4546
        %v4549 = vsub.f32 1.0, %v4515
        %v4550 = vsub.f32 1.0, %v4516
        %v4551 = vadd.f32 %v4549, 1e-10
        %v4552 = vadd.f32 %v4550, 1e-10
        %v4553 = vmul.f32 %v4069, %v4551
        %v4554 = vmul.f32 %v4070, %v4552
        %v4555 = vld [vmem:[%s509] sm:$0xff]
        %v4556 = vld [vmem:[%s509 + $0x8] sm:$0xff]
        %v4557 = vld [vmem:[%s509 + $0x10] sm:$0xff]
        %v4558 = vld [vmem:[%s509 + $0x18] sm:$0xff]
        %v4559 = vld [vmem:[%s509 + $0x20] sm:$0xff]
        %v4560 = vld [vmem:[%s509 + $0x28] sm:$0xff]
        %v4561 = vld [vmem:[%s509 + $0x30] sm:$0xff]
        %v4562 = vld [vmem:[%s509 + $0x38] sm:$0xff]
        %s4563 = scalar_lea.vmem %s509, 64 [#allocation7]
        %v4564 = vld [vmem:[%s4563] ss:$8 sm:$0x3]
        %s4565 = scalar_lea.vmem %s509, 65 [#allocation7]
        %v4566 = vld [vmem:[%s4565] ss:$8 sm:$0x3]
        %v4568 = vlaneseq
        %v4569 = vshrl.u32 %v4568, 7
        %v4570 = vsub.s32 0, %v4569
        %v4571 = vrot.slane %v4564, %v4570
        %v4572 = vlaneseq
        %v4573 = vshrl.u32 %v4572, 7
        %v4574 = vsub.s32 1, %v4573
        %v4575 = vrot.slane %v4564, %v4574
        %v4578 = vmul.f32 %v4553, %v4571
        %v4579 = vmul.f32 %v4554, %v4575
        %v4580 = vlaneseq
        %v4581 = vshrl.u32 %v4580, 7
        %v4582 = vsub.s32 0, %v4581
        %v4583 = vrot.slane %v4578, %v4582
        %v4584 = vlaneseq
        %v4585 = vshrl.u32 %v4584, 7
        %v4586 = vsub.s32 0, %v4585
        %v4587 = vrot.slane %v4579, %v4586
        %v4588 = vmul.f32 %v4583, %v4555
        %v4589 = vmul.f32 %v4587, %v4556
        %v4590 = vmul.f32 %v4583, %v4557
        %v4591 = vmul.f32 %v4587, %v4558
        %v4592 = vmul.f32 %v4583, %v4559
        %v4593 = vmul.f32 %v4587, %v4560
        %v4594 = vmul.f32 %v4583, %v4561
        %v4595 = vmul.f32 %v4587, %v4562
        %v4596 = vadd.f32 %v4535, %v4588
        %v4597 = vadd.f32 %v4536, %v4589
        %v4598 = vadd.f32 %v4537, %v4590
        %v4599 = vadd.f32 %v4538, %v4591
        %v4600 = vadd.f32 %v4539, %v4592
        %v4601 = vadd.f32 %v4540, %v4593
        %v4602 = vadd.f32 %v4541, %v4594
        %v4603 = vadd.f32 %v4542, %v4595
        %v4605 = vlaneseq
        %v4606 = vshrl.u32 %v4605, 7
        %v4607 = vsub.s32 0, %v4606
        %v4608 = vrot.slane %v4566, %v4607
        %v4609 = vlaneseq
        %v4610 = vshrl.u32 %v4609, 7
        %v4611 = vsub.s32 1, %v4610
        %v4612 = vrot.slane %v4566, %v4611
        %v4615 = vmul.f32 %v4578, %v4608
        %v4616 = vmul.f32 %v4579, %v4612
        %v4617 = vadd.f32 %v4547, %v4615
        %v4618 = vadd.f32 %v4548, %v4616
        %4619 = vst [vmem:[%s543] sm:$0xff] %v4596
        %4620 = vst [vmem:[%s543 + $0x8] sm:$0xff] %v4597
        %4621 = vst [vmem:[%s543 + $0x10] sm:$0xff] %v4598
        %4622 = vst [vmem:[%s543 + $0x18] sm:$0xff] %v4599
        %4623 = vst [vmem:[%s543 + $0x20] sm:$0xff] %v4600
        %4624 = vst [vmem:[%s543 + $0x28] sm:$0xff] %v4601
        %4625 = vst [vmem:[%s543 + $0x30] sm:$0xff] %v4602
        %4626 = vst [vmem:[%s543 + $0x38] sm:$0xff] %v4603
        %v4629 = vcombine.low %v4617, %v4618
        %v4631 = vunpack.c.l.s4 1966171168
        %v4632 = vunpack.c.0.s8 %v4631
        %v4633 = vlaneseq
        %v4634 = vshrl.u32 %v4633, 7
        %v4635 = vsub.s32 %v4632, %v4634
        %v4636 = vrot.slane %v4629, %v4635
        %v4638 = vunpack.c.l.s4 1966171168
        %v4639 = vunpack.c.0.s8 %v4638
        %v4640 = vlaneseq
        %v4641 = vshrl.u32 %v4640, 7
        %v4642 = vsub.s32 %v4639, %v4641
        %v4643 = vrot.slane %v4636, %v4642
        %v4645 = vlaneseq
        %vm4646 = vcmp.ge.s32.totalorder %v4645, 0
        %vm4647 = vcmp.lt.s32.totalorder %v4645, 256
        %vm4648 = vmand %vm4646, %vm4647
        %s4649 = scalar_lea.vmem %s543, 64 [#allocation8]
        %4650 = vst.msk [vmem:[%s4649] ss:$8 sm:$0x3] %vm4648, %v4643
        %4651 = vst.msk [vmem:[%s4649] ss:$8 sm:$0x0] %vm4648, %v4643
        %4652 = vst [vmem:[%s543 + $0x40] sm:$0xfe] 0.0
        %4653 = vst [vmem:[%s543 + $0x48] sm:$0xfe] 0.0
        %s4654 = sand.u32 %s207, 1
        %s4655 = sand.u32 %s207, 1
        %s4656 = smul.addr %s4655, 80
        %s4657 = scalar_lea.vmem [#allocation8], %s4656
        // Predicated region
        $region122: #{eg3d_decoder_forward.1} parent=104 // pred_check
          %p4658 = pneg %p217
        $region123: #{eg3d_decoder_forward.1} parent=104 // pred_check_branch
          %4660 = sbr.rel (%p4658) target = $region125
        $region124: #{eg3d_decoder_forward.1} parent=104 // pred_region
          %s4661 = smul.u32 2, %s21
          %s4662 = smul.addr %s4661, 8
          %s4663 = scalar_lea.vmem %s8, %s4662
          // Predicated region
          $region126: #{eg3d_decoder_forward.1} parent=124 // pred_check
            _
          $region127: #{eg3d_decoder_forward.1} parent=124 // pred_check_branch
            %4665 = sbr.rel (0) target = $region129
          $region128: #{eg3d_decoder_forward.1} parent=124 // pred_region
            // Predicated region
            $region130: #{eg3d_decoder_forward.1} parent=128 // pred_check
              _
            $region131: #{eg3d_decoder_forward.1} parent=128 // pred_check_branch
              %4667 = sbr.rel (0) target = $region133
            $region132: #{eg3d_decoder_forward.1} parent=128 // pred_region
              loop: start=0, step=1, limit=1
              $region134: #{eg3d_decoder_forward.1} parent=132 // loop_pre_header
                _
              $region135: #{eg3d_decoder_forward.1} parent=132 // loop_header
                %s4669 = sphi 0, %s4673
                %p4670 = scmp.ge.s32.totalorder %s4669, 1
                %s4674 = sphi %s4657, %s4657
                %s4675 = sphi %s4663, %s4663
              $region136: #{eg3d_decoder_forward.1} parent=132 // loop_header_branch
                %4672 = sbr.rel (%p4670) target = $region140
              $region137: #{eg3d_decoder_forward.1} parent=132 // loop_body
                %v4676 = vld [vmem:[%s4674] sm:$0xff]
                %4677 = vst [vmem:[%s4675] sm:$0xff] %v4676
                %v4678 = vld [vmem:[%s4674 + $0x8] sm:$0xff]
                %4679 = vst [vmem:[%s4675 + $0x8] sm:$0xff] %v4678
                %v4680 = vld [vmem:[%s4674 + $0x10] sm:$0xff]
                %4681 = vst [vmem:[%s4675 + $0x20] sm:$0xff] %v4680
                %v4682 = vld [vmem:[%s4674 + $0x18] sm:$0xff]
                %4683 = vst [vmem:[%s4675 + $0x28] sm:$0xff] %v4682
                %v4684 = vld [vmem:[%s4674 + $0x20] sm:$0xff]
                %4685 = vst [vmem:[%s4675 + $0x40] sm:$0xff] %v4684
                %v4686 = vld [vmem:[%s4674 + $0x28] sm:$0xff]
                %4687 = vst [vmem:[%s4675 + $0x48] sm:$0xff] %v4686
                %v4688 = vld [vmem:[%s4674 + $0x30] sm:$0xff]
                %4689 = vst [vmem:[%s4675 + $0x60] sm:$0xff] %v4688
                %v4690 = vld [vmem:[%s4674 + $0x38] sm:$0xff]
                %4691 = vst [vmem:[%s4675 + $0x68] sm:$0xff] %v4690
                %v4692 = vld [vmem:[%s4674 + $0x40] sm:$0xff]
                %4693 = vst [vmem:[%s4675 + $0x80] sm:$0xff] %v4692
                %v4694 = vld [vmem:[%s4674 + $0x48] sm:$0xff]
                %4695 = vst [vmem:[%s4675 + $0x88] sm:$0xff] %v4694
              $region138: #{eg3d_decoder_forward.1} parent=132 // loop_footer
                %s4673 = sadd.s32 1, %s4669
              $region139: #{eg3d_decoder_forward.1} parent=132 // loop_footer_branch
                %4668 = sbr.rel target = $region135
              $region140: #{eg3d_decoder_forward.1} parent=132 // loop_exit
                _
            $region133: #{eg3d_decoder_forward.1} parent=128 // pred_fallthru
              _
            // Predicated region
            $region141: #{eg3d_decoder_forward.1} parent=128 // pred_check
              _
            $region142: #{eg3d_decoder_forward.1} parent=128 // pred_check_branch
              %4697 = sbr.rel target = $region144
            $region143: #{eg3d_decoder_forward.1} parent=128 // pred_region
              _
            $region144: #{eg3d_decoder_forward.1} parent=128 // pred_fallthru
              _
          $region129: #{eg3d_decoder_forward.1} parent=124 // pred_fallthru
            _
          %4698 = vnop
        $region125: #{eg3d_decoder_forward.1} parent=104 // pred_fallthru
          _
      $region105: #{eg3d_decoder_forward.1} parent=5 // pred_fallthru
        _
      %p4699 = scmp.le.s32.totalorder 2, %s16
      // Predicated region
      $region145: #{eg3d_decoder_forward.1} parent=5 // pred_check
        %p4700 = pneg %p4699
      $region146: #{eg3d_decoder_forward.1} parent=5 // pred_check_branch
        %4702 = sbr.rel (%p4700) target = $region148
      $region147: #{eg3d_decoder_forward.1} parent=5 // pred_region
        %s4703 = ssub.s32 %s16, 2
        // Predicated region
        $region149: #{eg3d_decoder_forward.1} parent=147 // pred_check
          %p4704 = pneg %p223
        $region150: #{eg3d_decoder_forward.1} parent=147 // pred_check_branch
          %4706 = sbr.rel (%p4704) target = $region152
        $region151: #{eg3d_decoder_forward.1} parent=147 // pred_region
          %s4707 = sand.u32 %s208, 1
          %s4708 = sand.u32 %s208, 1
          %s4709 = smul.addr %s4708, 80
          %s4710 = scalar_lea.vmem [#allocation8], %s4709
        $region152: #{eg3d_decoder_forward.1} parent=147 // pred_fallthru
          _
      $region148: #{eg3d_decoder_forward.1} parent=5 // pred_fallthru
        _
    $region6: #{eg3d_decoder_forward.1} parent=1 // loop_footer
      %s20 = sadd.s32 1, %s16
    $region7: #{eg3d_decoder_forward.1} parent=1 // loop_footer_branch
      %15 = sbr.rel target = $region3
    $region8: #{eg3d_decoder_forward.1} parent=1 // loop_exit
      _
    %4711 = vsyncpa [#allocation3], 1
    %s4712 = scalar_lea.sflag [#allocation3], 1
    %4713 = vsyncpa %s4712, 1
    %4714 = vsyncpa [#allocation5], 1

</llo_original>
